<compile_context>
chip_gen: v6e
topology: v6e:2x2x1
jax: 0.10.0
libtpu: 0.0.40
codegen_flags: <defaults>
</compile_context>

<pallas_src>
import functools
import math

import jax
import jax.numpy as jnp
import numpy as np
from jax.experimental import pallas as pl
from jax.experimental.pallas import tpu as pltpu


def vae_kernel(feats_ref, eps_ref,
               e_wih0_ref, e_whh0_ref, enc_w1_ref, enc_b_ref,
               mv_w_ref, mv_b_ref,
               dec_w0_ref, dec_w1_ref, dec_b_ref,
               h_mu_ref, h_logvar_ref, dec_ref,
               *, seq_len, hidden):
    H = hidden
    f32, bf16 = jnp.float32, jnp.bfloat16

    # ---- hoist all loop-invariant weight loads (loaded once, reused S times) ----
    e_wih0 = e_wih0_ref[...]          # (D, 4H)  bf16  W_ih.T layer 0 (g-cols x2)
    e_whh0 = e_whh0_ref[...]          # (H, 4H)  bf16  W_hh.T layer 0 (g-cols x2)
    enc_w1 = enc_w1_ref[...]          # (2H, 4H) bf16  [W_ih1.T ; W_hh1.T]
    enc_b0 = enc_b_ref[0:1, :]        # (1, 4H)  f32
    enc_b1 = enc_b_ref[1:2, :]
    dec_w0 = dec_w0_ref[...]          # (2H, 4H) bf16  [W_hh0_dec ; out_w.T @ W_ih0_dec]
    dec_w1 = dec_w1_ref[...]          # (2H, 4H) bf16  [W_ih1_dec.T ; W_hh1_dec.T]
    dec_b0_first = dec_b_ref[0:1, :]  # (1, 4H)  f32   bias for t == 0 (x == 0)
    dec_b0_rest = dec_b_ref[1:2, :]   # (1, 4H)  f32   bias + folded out-bias (t > 0)
    dec_b1 = dec_b_ref[2:3, :]
    mv_w = mv_w_ref[...]              # (H, 2H)  bf16  [mu_w.T | var_w.T]
    mv_b = mv_b_ref[...]              # (1, 2H)  f32

    def gates_act(g, c):
        # g-gate pre-activation is pre-scaled by 2 in the weights/biases, so
        # tanh(g_orig) = 2*sigmoid(2*g_orig) - 1 comes from ONE full-128-lane
        # sigmoid instead of 3 sliced sigmoids + a sliced tanh.
        s = jax.nn.sigmoid(g)                         # (1, 4H), single EUP push
        i = s[:, 0 * H:1 * H]
        f = s[:, 1 * H:2 * H]
        sg = s[:, 2 * H:3 * H]
        o = s[:, 3 * H:4 * H]
        c_new = f * c + i * (2.0 * sg - 1.0)
        h_new = o * jnp.tanh(c_new)                   # second (and last) EUP push
        return h_new, c_new

    def fused_cell(x, h, c, w, b):
        # one MXU dot per cell: [x, h] @ [W_ih.T ; W_hh.T]
        xh = jnp.concatenate([x, h], axis=-1).astype(bf16)
        g = jnp.dot(xh, w, preferred_element_type=f32) + b
        return gates_act(g, c)

    # ---------------- encoder: 2-layer LSTM, fully unrolled ----------------
    # Bulk layer-0 input projection (one off-chain MXU op), bias pre-added.
    xW0 = jnp.dot(feats_ref[...].astype(bf16), e_wih0,
                  preferred_element_type=f32) + enc_b0          # (S, 4H)

    zeros = jnp.zeros((1, H), f32)
    h0 = c0 = h1 = c1 = zeros
    for t in range(seq_len):
        g0 = jnp.dot(h0.astype(bf16), e_whh0,
                     preferred_element_type=f32) + xW0[t:t + 1, :]
        h0, c0 = gates_act(g0, c0)
        h1, c1 = fused_cell(h0, h1, c1, enc_w1, enc_b1)

    # h_last.squeeze(1) -> (num_layers, H)   (requires batch == 1)
    h_sq = jnp.concatenate([h0, h1], axis=0)                     # (2, H)

    # fused mu/var projection: one bf16 dot, then slice
    mv = jnp.dot(h_sq.astype(bf16), mv_w, preferred_element_type=f32) + mv_b
    h_mu = mv[:, 0:H]
    var_pre = mv[:, H:2 * H]
    # softplus (beta=1, threshold=20), then log
    sp = jnp.where(var_pre > 20.0, var_pre,
                   jnp.log1p(jnp.exp(jnp.minimum(var_pre, 20.0))))
    h_logvar = jnp.log(sp)
    h_mu_ref[...] = h_mu
    h_logvar_ref[...] = h_logvar

    # ---------------- reparameterize ----------------
    std = jnp.exp(0.5 * h_logvar)
    z = h_mu + eps_ref[...] * std                                # (2, H)
    dh0, dh1 = z[0:1, :], z[1:2, :]
    dc0, dc1 = c0, c1

    # ---------------- decoder: stacked LSTM cells, fully unrolled ----------
    # Layer-0 gates use ONE fused dot: lhs = [dh0_prev, x_src] where
    # x_src = dh1_prev (the layer-1 hidden fed through the folded out-proj
    # rows of dec_w0).  At t == 0 the original x is exactly zero, so the x
    # half of the lhs is zero and the folded out-bias is dropped.
    for t in range(seq_len):
        if t == 0:
            x_src = zeros
            b0 = dec_b0_first
        else:
            x_src = dh1
            b0 = dec_b0_rest
        lhs0 = jnp.concatenate([dh0, x_src], axis=-1).astype(bf16)   # (1, 2H)
        g0 = jnp.dot(lhs0, dec_w0, preferred_element_type=f32) + b0
        dh0, dc0 = gates_act(g0, dc0)
        dh1, dc1 = fused_cell(dh0, dh1, dc1, dec_w1, dec_b1)
        # per-step store rides the otherwise-idle vst slot
        dec_ref[pl.ds(t, 1), :] = dh1


def vae_forward(feats, eps, params):
    S, B, D = feats.shape
    H = params["mu_w"].shape[0]
    assert B == 1, "PyTorch VAE.forward relies on batch == 1 (h.squeeze(1))"
    assert D == H, "module requires input_size == hidden_size (dLSTM zero init)"

    bf16 = jnp.bfloat16

    def scale_g(w):
        # pre-scale the g-gate block (columns 2H:3H of the 4H gate axis) by 2
        # so the kernel can use tanh(g) = 2*sigmoid(2g) - 1 on a full vreg.
        return w.at[..., 2 * H:3 * H].multiply(2.0)

    # ---- encoder nn.LSTM(input, hidden, num_layers=2) ----
    e_wih0 = scale_g(params["e_wih"][0].swapaxes(-1, -2))            # (D, 4H)
    e_whh0 = scale_g(params["e_whh"][0].swapaxes(-1, -2))            # (H, 4H)
    enc_w1 = scale_g(jnp.concatenate([params["e_wih"][1].swapaxes(-1, -2),
                                      params["e_whh"][1].swapaxes(-1, -2)],
                                     axis=0))                        # (2H, 4H)
    enc_b = scale_g(params["e_b"])                                   # (2, 4H)

    # ---- fused mu/var projection (bf16 MXU operands) ----
    mv_w = jnp.concatenate([params["mu_w"].T, params["var_w"].T], axis=1)
    mv_b = jnp.concatenate([params["mu_b"], params["var_b"]], axis=1)

    # ---- decoder layer 0: recurrent weight fused with the out-projection ----
    # x-path is pre-projected through `out`:  x_contrib =
    # dh1_prev @ (out_w.T @ W_ih0_dec.T) + out_b @ W_ih0_dec.T.
    # Products kept in f32; cast to bf16 once at the end.
    d_wih0_t = params["d_wih"][0].T                                  # (D, 4H) f32
    dec_whh0 = params["d_whh"][0].T                                  # (H, 4H) f32
    xproj_w = params["out_w"].T @ d_wih0_t                           # (H, 4H) f32
    xproj_b = params["out_b"] @ d_wih0_t                             # (1, 4H) f32
    dec_w0 = scale_g(jnp.concatenate([dec_whh0, xproj_w], axis=0))   # (2H, 4H)
    dec_w1 = scale_g(jnp.concatenate([params["d_wih"][1].T,
                                      params["d_whh"][1].T], axis=0))
    dec_b0 = scale_g(params["d_b"][0:1])
    dec_b1 = scale_g(params["d_b"][1:2])
    xproj_b_s = scale_g(xproj_b)
    # row 0: bias at t==0 (x == 0, folded out-bias dropped)
    # row 1: bias for t>0 (includes folded out-bias)
    # row 2: layer-1 bias
    dec_b = jnp.concatenate([dec_b0, dec_b0 + xproj_b_s, dec_b1], axis=0)

    kernel = functools.partial(vae_kernel, seq_len=S, hidden=H)
    feats2d = feats[:, 0, :]                          # drop size-1 batch dim
    inputs = (feats2d, eps,
              e_wih0.astype(bf16), e_whh0.astype(bf16),
              enc_w1.astype(bf16), enc_b,
              mv_w.astype(bf16), mv_b,
              dec_w0.astype(bf16), dec_w1.astype(bf16), dec_b)

    vmem = lambda: pl.BlockSpec(memory_space=pltpu.MemorySpace.VMEM)
    out_shape = (
        jax.ShapeDtypeStruct((2, H), jnp.float32),    # h_mu
        jax.ShapeDtypeStruct((2, H), jnp.float32),    # h_log_variance
        jax.ShapeDtypeStruct((S, H), jnp.float32),    # decoded (forward order)
    )
    h_mu, h_logvar, dec_fwd = pl.pallas_call(
        kernel,
        out_shape=out_shape,
        in_specs=[vmem() for _ in inputs],
        out_specs=tuple(vmem() for _ in out_shape),
    )(*inputs)
    # decoded_feats.reverse() + restore the size-1 batch dim (free in XLA).
    decoded = jnp.flip(dec_fwd, axis=0)[:, None, :]   # (S, 1, H)
    return h_mu, h_logvar, decoded


def init_params(key, D, H):
    assert D == H, "PyTorch module only works with input_size == hidden_size"
    k = 1.0 / math.sqrt(H)

    def u(kk, shape):
        return jax.random.uniform(kk, shape, jnp.float32, -k, k)

    keys = jax.random.split(key, 18)
    return {
        # encoder nn.LSTM(input, hidden, num_layers=2)
        "e_wih": jnp.stack([u(keys[0], (4 * H, D)), u(keys[1], (4 * H, H))]),
        "e_whh": jnp.stack([u(keys[2], (4 * H, H)), u(keys[3], (4 * H, H))]),
        "e_b":   u(keys[4], (2, 4 * H)) + u(keys[5], (2, 4 * H)),  # b_ih + b_hh
        # linear_mu / linear_var
        "mu_w":  u(keys[6], (H, H)),  "mu_b":  u(keys[7], (1, H)),
        "var_w": u(keys[8], (H, H)),  "var_b": u(keys[9], (1, H)),
        # decoder StackedLSTMCell (2 layers)
        "d_wih": jnp.stack([u(keys[10], (4 * H, D)), u(keys[11], (4 * H, H))]),
        "d_whh": jnp.stack([u(keys[12], (4 * H, H)), u(keys[13], (4 * H, H))]),
        "d_b":   u(keys[14], (2, 4 * H)) + u(keys[15], (2, 4 * H)),
        # decoder out: Linear(hidden_size, input_size)
        "out_w": u(keys[16], (D, H)), "out_b": u(keys[17], (1, D)),
    }


def vae_reference(feats, eps, params):
    """Pure-JAX f32 reference with identical semantics (for verification)."""
    S, B, D = feats.shape
    H = D

    def cell(x, h, c, wih, whh, b):
        g = x @ wih.T + h @ whh.T + b
        i, f, gg, o = jnp.split(g, 4, axis=-1)
        c = jax.nn.sigmoid(f) * c + jax.nn.sigmoid(i) * jnp.tanh(gg)
        h = jax.nn.sigmoid(o) * jnp.tanh(c)
        return h, c

    h0 = c0 = h1 = c1 = jnp.zeros((B, H), jnp.float32)
    for t in range(S):
        h0, c0 = cell(feats[t], h0, c0, params["e_wih"][0], params["e_whh"][0],
                      params["e_b"][0:1])
        h1, c1 = cell(h0, h1, c1, params["e_wih"][1], params["e_whh"][1],
                      params["e_b"][1:2])
    h_sq = jnp.concatenate([h0, h1], 0)
    h_mu = h_sq @ params["mu_w"].T + params["mu_b"]
    vp = h_sq @ params["var_w"].T + params["var_b"]
    sp = jnp.where(vp > 20.0, vp, jnp.log1p(jnp.exp(jnp.minimum(vp, 20.0))))
    h_lv = jnp.log(sp)
    z = h_mu + eps * jnp.exp(0.5 * h_lv)
    dh0, dh1, dc0, dc1 = z[0:1], z[1:2], c0, c1
    x = jnp.zeros((B, H), jnp.float32)
    outs = []
    for t in range(S):
        dh0, dc0 = cell(x, dh0, dc0, params["d_wih"][0], params["d_whh"][0],
                        params["d_b"][0:1])
        dh1, dc1 = cell(dh0, dh1, dc1, params["d_wih"][1], params["d_whh"][1],
                        params["d_b"][1:2])
        outs.append(dh1)
        x = dh1 @ params["out_w"].T + params["out_b"]
    outs.reverse()
    return h_mu, h_lv, jnp.stack(outs)


if __name__ == "__main__":
    S, B, D, H = 8, 1, 32, 32   # seq=8, batch=1 (required), input=hidden=32
    key = jax.random.PRNGKey(0)
    kp, kf, ke = jax.random.split(key, 3)

    params = init_params(kp, D, H)
    feats = jax.random.normal(kf, (S, B, D), jnp.float32)
    # TODO(synk): torch.randn epsilon inside reparameterize has no in-kernel
    # equivalent tied to torch's RNG; the noise is generated here and fed in.
    eps = jax.random.normal(ke, (2, H), jnp.float32)

    fwd = jax.jit(vae_forward)
    h_mu, h_logvar, decoded = jax.block_until_ready(fwd(feats, eps, params))

    # kernel uses bf16 MXU inputs (f32 accumulation) including the folded
    # out-projection product and the mu/var dot; compare vs the f32 reference
    # with a tolerance that covers the bf16 rounding drift.
    r_mu, r_lv, r_dec = vae_reference(feats, eps, params)
    assert np.allclose(np.asarray(h_mu), np.asarray(r_mu), atol=3e-2, rtol=3e-2)
    assert np.allclose(np.asarray(h_logvar), np.asarray(r_lv), atol=3e-2, rtol=3e-2)
    assert np.allclose(np.asarray(decoded), np.asarray(r_dec), atol=3e-2, rtol=3e-2)

    print("KERNEL_OK")
</pallas_src>

<mosaic_0001>
module attributes {stable_mosaic.version = 11 : i64} {
  func.func @vae_kernel(%arg0: memref<8x32xf32, #tpu.memory_space<vmem>>, %arg1: memref<2x32xf32, #tpu.memory_space<vmem>>, %arg2: memref<32x128xbf16, #tpu.memory_space<vmem>>, %arg3: memref<32x128xbf16, #tpu.memory_space<vmem>>, %arg4: memref<64x128xbf16, #tpu.memory_space<vmem>>, %arg5: memref<2x128xf32, #tpu.memory_space<vmem>>, %arg6: memref<32x64xbf16, #tpu.memory_space<vmem>>, %arg7: memref<1x64xf32, #tpu.memory_space<vmem>>, %arg8: memref<64x128xbf16, #tpu.memory_space<vmem>>, %arg9: memref<64x128xbf16, #tpu.memory_space<vmem>>, %arg10: memref<3x128xf32, #tpu.memory_space<vmem>>, %arg11: memref<2x32xf32, #tpu.memory_space<vmem>>, %arg12: memref<2x32xf32, #tpu.memory_space<vmem>>, %arg13: memref<8x32xf32, #tpu.memory_space<vmem>>) attributes {dimension_semantics = [], scalar_prefetch = 0 : i64, scratch_operands = 0 : i64, tpu.core_type = #tpu.core_type<tc>} {
    %c0 = arith.constant 0 : index
    %c0_0 = arith.constant 0 : index
    %0 = vector.load %arg2[%c0, %c0_0] : memref<32x128xbf16, #tpu.memory_space<vmem>>, vector<32x128xbf16>
    %c0_1 = arith.constant 0 : index
    %c0_2 = arith.constant 0 : index
    %1 = vector.load %arg3[%c0_1, %c0_2] : memref<32x128xbf16, #tpu.memory_space<vmem>>, vector<32x128xbf16>
    %c0_3 = arith.constant 0 : index
    %c0_4 = arith.constant 0 : index
    %2 = vector.load %arg4[%c0_3, %c0_4] : memref<64x128xbf16, #tpu.memory_space<vmem>>, vector<64x128xbf16>
    %c0_5 = arith.constant 0 : index
    %c0_6 = arith.constant 0 : index
    %3 = vector.load %arg5[%c0_5, %c0_6] : memref<2x128xf32, #tpu.memory_space<vmem>>, vector<1x128xf32>
    %c1 = arith.constant 1 : index
    %c0_7 = arith.constant 0 : index
    %4 = vector.load %arg5[%c1, %c0_7] : memref<2x128xf32, #tpu.memory_space<vmem>>, vector<1x128xf32>
    %c0_8 = arith.constant 0 : index
    %c0_9 = arith.constant 0 : index
    %5 = vector.load %arg8[%c0_8, %c0_9] : memref<64x128xbf16, #tpu.memory_space<vmem>>, vector<64x128xbf16>
    %c0_10 = arith.constant 0 : index
    %c0_11 = arith.constant 0 : index
    %6 = vector.load %arg9[%c0_10, %c0_11] : memref<64x128xbf16, #tpu.memory_space<vmem>>, vector<64x128xbf16>
    %c0_12 = arith.constant 0 : index
    %c0_13 = arith.constant 0 : index
    %7 = vector.load %arg10[%c0_12, %c0_13] : memref<3x128xf32, #tpu.memory_space<vmem>>, vector<1x128xf32>
    %c1_14 = arith.constant 1 : index
    %c0_15 = arith.constant 0 : index
    %8 = vector.load %arg10[%c1_14, %c0_15] : memref<3x128xf32, #tpu.memory_space<vmem>>, vector<1x128xf32>
    %c2 = arith.constant 2 : index
    %c0_16 = arith.constant 0 : index
    %9 = vector.load %arg10[%c2, %c0_16] : memref<3x128xf32, #tpu.memory_space<vmem>>, vector<1x128xf32>
    %c0_17 = arith.constant 0 : index
    %c0_18 = arith.constant 0 : index
    %10 = vector.load %arg6[%c0_17, %c0_18] : memref<32x64xbf16, #tpu.memory_space<vmem>>, vector<32x64xbf16>
    %c0_19 = arith.constant 0 : index
    %c0_20 = arith.constant 0 : index
    %11 = vector.load %arg7[%c0_19, %c0_20] : memref<1x64xf32, #tpu.memory_space<vmem>>, vector<1x64xf32>
    %c0_21 = arith.constant 0 : index
    %c0_22 = arith.constant 0 : index
    %12 = vector.load %arg0[%c0_21, %c0_22] : memref<8x32xf32, #tpu.memory_space<vmem>>, vector<8x32xf32>
    %13 = arith.truncf %12 : vector<8x32xf32> to vector<8x32xbf16>
    %cst = arith.constant dense<0.000000e+00> : vector<8x128xf32>
    %14 = tpu.matmul %13, %0, %cst {dimension_numbers = #tpu.dot_dimension_numbers<[1], [0], [0], [1], [0, 0, 1, 1], [], []>} : vector<8x32xbf16>, vector<32x128xbf16>, vector<8x128xf32> -> vector<8x128xf32>
    %15 = vector.broadcast %3 : vector<1x128xf32> to vector<8x128xf32>
    %16 = arith.addf %14, %15 : vector<8x128xf32>
    %cst_23 = arith.constant 0.000000e+00 : f32
    %17 = vector.broadcast %cst_23 : f32 to vector<1x32xf32>
    %18 = arith.truncf %17 : vector<1x32xf32> to vector<1x32xbf16>
    %cst_24 = arith.constant dense<0.000000e+00> : vector<1x128xf32>
    %19 = tpu.matmul %18, %1, %cst_24 {dimension_numbers = #tpu.dot_dimension_numbers<[1], [0], [0], [1], [0, 0, 1, 1], [], []>} : vector<1x32xbf16>, vector<32x128xbf16>, vector<1x128xf32> -> vector<1x128xf32>
    %20 = vector.extract_strided_slice %16 {offsets = [0, 0], sizes = [1, 128], strides = [1, 1]} : vector<8x128xf32> to vector<1x128xf32>
    %21 = arith.addf %19, %20 : vector<1x128xf32>
    %22 = arith.negf %21 : vector<1x128xf32>
    %23 = math.exp %22 : vector<1x128xf32>
    %cst_25 = arith.constant 1.000000e+00 : f32
    %24 = vector.broadcast %cst_25 : f32 to vector<1x128xf32>
    %25 = arith.addf %24, %23 : vector<1x128xf32>
    %26 = arith.divf %24, %25 : vector<1x128xf32>
    %27 = vector.extract_strided_slice %26 {offsets = [0, 0], sizes = [1, 32], strides = [1, 1]} : vector<1x128xf32> to vector<1x32xf32>
    %28 = vector.extract_strided_slice %26 {offsets = [0, 32], sizes = [1, 32], strides = [1, 1]} : vector<1x128xf32> to vector<1x32xf32>
    %29 = vector.extract_strided_slice %26 {offsets = [0, 64], sizes = [1, 32], strides = [1, 1]} : vector<1x128xf32> to vector<1x32xf32>
    %30 = vector.extract_strided_slice %26 {offsets = [0, 96], sizes = [1, 32], strides = [1, 1]} : vector<1x128xf32> to vector<1x32xf32>
    %31 = arith.mulf %28, %17 : vector<1x32xf32>
    %cst_26 = arith.constant 2.000000e+00 : f32
    %32 = vector.broadcast %cst_26 : f32 to vector<1x32xf32>
    %33 = arith.mulf %32, %29 : vector<1x32xf32>
    %cst_27 = arith.constant 1.000000e+00 : f32
    %34 = vector.broadcast %cst_27 : f32 to vector<1x32xf32>
    %35 = arith.subf %33, %34 : vector<1x32xf32>
    %36 = arith.mulf %27, %35 : vector<1x32xf32>
    %37 = arith.addf %31, %36 : vector<1x32xf32>
    %38 = math.tanh %37 : vector<1x32xf32>
    %39 = arith.mulf %30, %38 : vector<1x32xf32>
    %40 = tpu.concatenate %39, %17 in 1 : vector<1x32xf32>, vector<1x32xf32> -> vector<1x64xf32>
    %41 = arith.truncf %40 : vector<1x64xf32> to vector<1x64xbf16>
    %cst_28 = arith.constant dense<0.000000e+00> : vector<1x128xf32>
    %42 = tpu.matmul %41, %2, %cst_28 {dimension_numbers = #tpu.dot_dimension_numbers<[1], [0], [0], [1], [0, 0, 1, 1], [], []>} : vector<1x64xbf16>, vector<64x128xbf16>, vector<1x128xf32> -> vector<1x128xf32>
    %43 = arith.addf %42, %4 : vector<1x128xf32>
    %44 = arith.negf %43 : vector<1x128xf32>
    %45 = math.exp %44 : vector<1x128xf32>
    %cst_29 = arith.constant 1.000000e+00 : f32
    %46 = vector.broadcast %cst_29 : f32 to vector<1x128xf32>
    %47 = arith.addf %46, %45 : vector<1x128xf32>
    %48 = arith.divf %46, %47 : vector<1x128xf32>
    %49 = vector.extract_strided_slice %48 {offsets = [0, 0], sizes = [1, 32], strides = [1, 1]} : vector<1x128xf32> to vector<1x32xf32>
    %50 = vector.extract_strided_slice %48 {offsets = [0, 32], sizes = [1, 32], strides = [1, 1]} : vector<1x128xf32> to vector<1x32xf32>
    %51 = vector.extract_strided_slice %48 {offsets = [0, 64], sizes = [1, 32], strides = [1, 1]} : vector<1x128xf32> to vector<1x32xf32>
    %52 = vector.extract_strided_slice %48 {offsets = [0, 96], sizes = [1, 32], strides = [1, 1]} : vector<1x128xf32> to vector<1x32xf32>
    %53 = arith.mulf %50, %17 : vector<1x32xf32>
    %cst_30 = arith.constant 2.000000e+00 : f32
    %54 = vector.broadcast %cst_30 : f32 to vector<1x32xf32>
    %55 = arith.mulf %54, %51 : vector<1x32xf32>
    %cst_31 = arith.constant 1.000000e+00 : f32
    %56 = vector.broadcast %cst_31 : f32 to vector<1x32xf32>
    %57 = arith.subf %55, %56 : vector<1x32xf32>
    %58 = arith.mulf %49, %57 : vector<1x32xf32>
    %59 = arith.addf %53, %58 : vector<1x32xf32>
    %60 = math.tanh %59 : vector<1x32xf32>
    %61 = arith.mulf %52, %60 : vector<1x32xf32>
    %62 = arith.truncf %39 : vector<1x32xf32> to vector<1x32xbf16>
    %cst_32 = arith.constant dense<0.000000e+00> : vector<1x128xf32>
    %63 = tpu.matmul %62, %1, %cst_32 {dimension_numbers = #tpu.dot_dimension_numbers<[1], [0], [0], [1], [0, 0, 1, 1], [], []>} : vector<1x32xbf16>, vector<32x128xbf16>, vector<1x128xf32> -> vector<1x128xf32>
    %64 = vector.extract_strided_slice %16 {offsets = [1, 0], sizes = [1, 128], strides = [1, 1]} : vector<8x128xf32> to vector<1x128xf32>
    %65 = arith.addf %63, %64 : vector<1x128xf32>
    %66 = arith.negf %65 : vector<1x128xf32>
    %67 = math.exp %66 : vector<1x128xf32>
    %cst_33 = arith.constant 1.000000e+00 : f32
    %68 = vector.broadcast %cst_33 : f32 to vector<1x128xf32>
    %69 = arith.addf %68, %67 : vector<1x128xf32>
    %70 = arith.divf %68, %69 : vector<1x128xf32>
    %71 = vector.extract_strided_slice %70 {offsets = [0, 0], sizes = [1, 32], strides = [1, 1]} : vector<1x128xf32> to vector<1x32xf32>
    %72 = vector.extract_strided_slice %70 {offsets = [0, 32], sizes = [1, 32], strides = [1, 1]} : vector<1x128xf32> to vector<1x32xf32>
    %73 = vector.extract_strided_slice %70 {offsets = [0, 64], sizes = [1, 32], strides = [1, 1]} : vector<1x128xf32> to vector<1x32xf32>
    %74 = vector.extract_strided_slice %70 {offsets = [0, 96], sizes = [1, 32], strides = [1, 1]} : vector<1x128xf32> to vector<1x32xf32>
    %75 = arith.mulf %72, %37 : vector<1x32xf32>
    %cst_34 = arith.constant 2.000000e+00 : f32
    %76 = vector.broadcast %cst_34 : f32 to vector<1x32xf32>
    %77 = arith.mulf %76, %73 : vector<1x32xf32>
    %cst_35 = arith.constant 1.000000e+00 : f32
    %78 = vector.broadcast %cst_35 : f32 to vector<1x32xf32>
    %79 = arith.subf %77, %78 : vector<1x32xf32>
    %80 = arith.mulf %71, %79 : vector<1x32xf32>
    %81 = arith.addf %75, %80 : vector<1x32xf32>
    %82 = math.tanh %81 : vector<1x32xf32>
    %83 = arith.mulf %74, %82 : vector<1x32xf32>
    %84 = tpu.concatenate %83, %61 in 1 : vector<1x32xf32>, vector<1x32xf32> -> vector<1x64xf32>
    %85 = arith.truncf %84 : vector<1x64xf32> to vector<1x64xbf16>
    %cst_36 = arith.constant dense<0.000000e+00> : vector<1x128xf32>
    %86 = tpu.matmul %85, %2, %cst_36 {dimension_numbers = #tpu.dot_dimension_numbers<[1], [0], [0], [1], [0, 0, 1, 1], [], []>} : vector<1x64xbf16>, vector<64x128xbf16>, vector<1x128xf32> -> vector<1x128xf32>
    %87 = arith.addf %86, %4 : vector<1x128xf32>
    %88 = arith.negf %87 : vector<1x128xf32>
    %89 = math.exp %88 : vector<1x128xf32>
    %cst_37 = arith.constant 1.000000e+00 : f32
    %90 = vector.broadcast %cst_37 : f32 to vector<1x128xf32>
    %91 = arith.addf %90, %89 : vector<1x128xf32>
    %92 = arith.divf %90, %91 : vector<1x128xf32>
    %93 = vector.extract_strided_slice %92 {offsets = [0, 0], sizes = [1, 32], strides = [1, 1]} : vector<1x128xf32> to vector<1x32xf32>
    %94 = vector.extract_strided_slice %92 {offsets = [0, 32], sizes = [1, 32], strides = [1, 1]} : vector<1x128xf32> to vector<1x32xf32>
    %95 = vector.extract_strided_slice %92 {offsets = [0, 64], sizes = [1, 32], strides = [1, 1]} : vector<1x128xf32> to vector<1x32xf32>
    %96 = vector.extract_strided_slice %92 {offsets = [0, 96], sizes = [1, 32], strides = [1, 1]} : vector<1x128xf32> to vector<1x32xf32>
    %97 = arith.mulf %94, %59 : vector<1x32xf32>
    %cst_38 = arith.constant 2.000000e+00 : f32
    %98 = vector.broadcast %cst_38 : f32 to vector<1x32xf32>
    %99 = arith.mulf %98, %95 : vector<1x32xf32>
    %cst_39 = arith.constant 1.000000e+00 : f32
    %100 = vector.broadcast %cst_39 : f32 to vector<1x32xf32>
    %101 = arith.subf %99, %100 : vector<1x32xf32>
    %102 = arith.mulf %93, %101 : vector<1x32xf32>
    %103 = arith.addf %97, %102 : vector<1x32xf32>
    %104 = math.tanh %103 : vector<1x32xf32>
    %105 = arith.mulf %96, %104 : vector<1x32xf32>
    %106 = arith.truncf %83 : vector<1x32xf32> to vector<1x32xbf16>
    %cst_40 = arith.constant dense<0.000000e+00> : vector<1x128xf32>
    %107 = tpu.matmul %106, %1, %cst_40 {dimension_numbers = #tpu.dot_dimension_numbers<[1], [0], [0], [1], [0, 0, 1, 1], [], []>} : vector<1x32xbf16>, vector<32x128xbf16>, vector<1x128xf32> -> vector<1x128xf32>
    %108 = vector.extract_strided_slice %16 {offsets = [2, 0], sizes = [1, 128], strides = [1, 1]} : vector<8x128xf32> to vector<1x128xf32>
    %109 = arith.addf %107, %108 : vector<1x128xf32>
    %110 = arith.negf %109 : vector<1x128xf32>
    %111 = math.exp %110 : vector<1x128xf32>
    %cst_41 = arith.constant 1.000000e+00 : f32
    %112 = vector.broadcast %cst_41 : f32 to vector<1x128xf32>
    %113 = arith.addf %112, %111 : vector<1x128xf32>
    %114 = arith.divf %112, %113 : vector<1x128xf32>
    %115 = vector.extract_strided_slice %114 {offsets = [0, 0], sizes = [1, 32], strides = [1, 1]} : vector<1x128xf32> to vector<1x32xf32>
    %116 = vector.extract_strided_slice %114 {offsets = [0, 32], sizes = [1, 32], strides = [1, 1]} : vector<1x128xf32> to vector<1x32xf32>
    %117 = vector.extract_strided_slice %114 {offsets = [0, 64], sizes = [1, 32], strides = [1, 1]} : vector<1x128xf32> to vector<1x32xf32>
    %118 = vector.extract_strided_slice %114 {offsets = [0, 96], sizes = [1, 32], strides = [1, 1]} : vector<1x128xf32> to vector<1x32xf32>
    %119 = arith.mulf %116, %81 : vector<1x32xf32>
    %cst_42 = arith.constant 2.000000e+00 : f32
    %120 = vector.broadcast %cst_42 : f32 to vector<1x32xf32>
    %121 = arith.mulf %120, %117 : vector<1x32xf32>
    %cst_43 = arith.constant 1.000000e+00 : f32
    %122 = vector.broadcast %cst_43 : f32 to vector<1x32xf32>
    %123 = arith.subf %121, %122 : vector<1x32xf32>
    %124 = arith.mulf %115, %123 : vector<1x32xf32>
    %125 = arith.addf %119, %124 : vector<1x32xf32>
    %126 = math.tanh %125 : vector<1x32xf32>
    %127 = arith.mulf %118, %126 : vector<1x32xf32>
    %128 = tpu.concatenate %127, %105 in 1 : vector<1x32xf32>, vector<1x32xf32> -> vector<1x64xf32>
    %129 = arith.truncf %128 : vector<1x64xf32> to vector<1x64xbf16>
    %cst_44 = arith.constant dense<0.000000e+00> : vector<1x128xf32>
    %130 = tpu.matmul %129, %2, %cst_44 {dimension_numbers = #tpu.dot_dimension_numbers<[1], [0], [0], [1], [0, 0, 1, 1], [], []>} : vector<1x64xbf16>, vector<64x128xbf16>, vector<1x128xf32> -> vector<1x128xf32>
    %131 = arith.addf %130, %4 : vector<1x128xf32>
    %132 = arith.negf %131 : vector<1x128xf32>
    %133 = math.exp %132 : vector<1x128xf32>
    %cst_45 = arith.constant 1.000000e+00 : f32
    %134 = vector.broadcast %cst_45 : f32 to vector<1x128xf32>
    %135 = arith.addf %134, %133 : vector<1x128xf32>
    %136 = arith.divf %134, %135 : vector<1x128xf32>
    %137 = vector.extract_strided_slice %136 {offsets = [0, 0], sizes = [1, 32], strides = [1, 1]} : vector<1x128xf32> to vector<1x32xf32>
    %138 = vector.extract_strided_slice %136 {offsets = [0, 32], sizes = [1, 32], strides = [1, 1]} : vector<1x128xf32> to vector<1x32xf32>
    %139 = vector.extract_strided_slice %136 {offsets = [0, 64], sizes = [1, 32], strides = [1, 1]} : vector<1x128xf32> to vector<1x32xf32>
    %140 = vector.extract_strided_slice %136 {offsets = [0, 96], sizes = [1, 32], strides = [1, 1]} : vector<1x128xf32> to vector<1x32xf32>
    %141 = arith.mulf %138, %103 : vector<1x32xf32>
    %cst_46 = arith.constant 2.000000e+00 : f32
    %142 = vector.broadcast %cst_46 : f32 to vector<1x32xf32>
    %143 = arith.mulf %142, %139 : vector<1x32xf32>
    %cst_47 = arith.constant 1.000000e+00 : f32
    %144 = vector.broadcast %cst_47 : f32 to vector<1x32xf32>
    %145 = arith.subf %143, %144 : vector<1x32xf32>
    %146 = arith.mulf %137, %145 : vector<1x32xf32>
    %147 = arith.addf %141, %146 : vector<1x32xf32>
    %148 = math.tanh %147 : vector<1x32xf32>
    %149 = arith.mulf %140, %148 : vector<1x32xf32>
    %150 = arith.truncf %127 : vector<1x32xf32> to vector<1x32xbf16>
    %cst_48 = arith.constant dense<0.000000e+00> : vector<1x128xf32>
    %151 = tpu.matmul %150, %1, %cst_48 {dimension_numbers = #tpu.dot_dimension_numbers<[1], [0], [0], [1], [0, 0, 1, 1], [], []>} : vector<1x32xbf16>, vector<32x128xbf16>, vector<1x128xf32> -> vector<1x128xf32>
    %152 = vector.extract_strided_slice %16 {offsets = [3, 0], sizes = [1, 128], strides = [1, 1]} : vector<8x128xf32> to vector<1x128xf32>
    %153 = arith.addf %151, %152 : vector<1x128xf32>
    %154 = arith.negf %153 : vector<1x128xf32>
    %155 = math.exp %154 : vector<1x128xf32>
    %cst_49 = arith.constant 1.000000e+00 : f32
    %156 = vector.broadcast %cst_49 : f32 to vector<1x128xf32>
    %157 = arith.addf %156, %155 : vector<1x128xf32>
    %158 = arith.divf %156, %157 : vector<1x128xf32>
    %159 = vector.extract_strided_slice %158 {offsets = [0, 0], sizes = [1, 32], strides = [1, 1]} : vector<1x128xf32> to vector<1x32xf32>
    %160 = vector.extract_strided_slice %158 {offsets = [0, 32], sizes = [1, 32], strides = [1, 1]} : vector<1x128xf32> to vector<1x32xf32>
    %161 = vector.extract_strided_slice %158 {offsets = [0, 64], sizes = [1, 32], strides = [1, 1]} : vector<1x128xf32> to vector<1x32xf32>
    %162 = vector.extract_strided_slice %158 {offsets = [0, 96], sizes = [1, 32], strides = [1, 1]} : vector<1x128xf32> to vector<1x32xf32>
    %163 = arith.mulf %160, %125 : vector<1x32xf32>
    %cst_50 = arith.constant 2.000000e+00 : f32
    %164 = vector.broadcast %cst_50 : f32 to vector<1x32xf32>
    %165 = arith.mulf %164, %161 : vector<1x32xf32>
    %cst_51 = arith.constant 1.000000e+00 : f32
    %166 = vector.broadcast %cst_51 : f32 to vector<1x32xf32>
    %167 = arith.subf %165, %166 : vector<1x32xf32>
    %168 = arith.mulf %159, %167 : vector<1x32xf32>
    %169 = arith.addf %163, %168 : vector<1x32xf32>
    %170 = math.tanh %169 : vector<1x32xf32>
    %171 = arith.mulf %162, %170 : vector<1x32xf32>
    %172 = tpu.concatenate %171, %149 in 1 : vector<1x32xf32>, vector<1x32xf32> -> vector<1x64xf32>
    %173 = arith.truncf %172 : vector<1x64xf32> to vector<1x64xbf16>
    %cst_52 = arith.constant dense<0.000000e+00> : vector<1x128xf32>
    %174 = tpu.matmul %173, %2, %cst_52 {dimension_numbers = #tpu.dot_dimension_numbers<[1], [0], [0], [1], [0, 0, 1, 1], [], []>} : vector<1x64xbf16>, vector<64x128xbf16>, vector<1x128xf32> -> vector<1x128xf32>
    %175 = arith.addf %174, %4 : vector<1x128xf32>
    %176 = arith.negf %175 : vector<1x128xf32>
    %177 = math.exp %176 : vector<1x128xf32>
    %cst_53 = arith.constant 1.000000e+00 : f32
    %178 = vector.broadcast %cst_53 : f32 to vector<1x128xf32>
    %179 = arith.addf %178, %177 : vector<1x128xf32>
    %180 = arith.divf %178, %179 : vector<1x128xf32>
    %181 = vector.extract_strided_slice %180 {offsets = [0, 0], sizes = [1, 32], strides = [1, 1]} : vector<1x128xf32> to vector<1x32xf32>
    %182 = vector.extract_strided_slice %180 {offsets = [0, 32], sizes = [1, 32], strides = [1, 1]} : vector<1x128xf32> to vector<1x32xf32>
    %183 = vector.extract_strided_slice %180 {offsets = [0, 64], sizes = [1, 32], strides = [1, 1]} : vector<1x128xf32> to vector<1x32xf32>
    %184 = vector.extract_strided_slice %180 {offsets = [0, 96], sizes = [1, 32], strides = [1, 1]} : vector<1x128xf32> to vector<1x32xf32>
    %185 = arith.mulf %182, %147 : vector<1x32xf32>
    %cst_54 = arith.constant 2.000000e+00 : f32
    %186 = vector.broadcast %cst_54 : f32 to vector<1x32xf32>
    %187 = arith.mulf %186, %183 : vector<1x32xf32>
    %cst_55 = arith.constant 1.000000e+00 : f32
    %188 = vector.broadcast %cst_55 : f32 to vector<1x32xf32>
    %189 = arith.subf %187, %188 : vector<1x32xf32>
    %190 = arith.mulf %181, %189 : vector<1x32xf32>
    %191 = arith.addf %185, %190 : vector<1x32xf32>
    %192 = math.tanh %191 : vector<1x32xf32>
    %193 = arith.mulf %184, %192 : vector<1x32xf32>
    %194 = arith.truncf %171 : vector<1x32xf32> to vector<1x32xbf16>
    %cst_56 = arith.constant dense<0.000000e+00> : vector<1x128xf32>
    %195 = tpu.matmul %194, %1, %cst_56 {dimension_numbers = #tpu.dot_dimension_numbers<[1], [0], [0], [1], [0, 0, 1, 1], [], []>} : vector<1x32xbf16>, vector<32x128xbf16>, vector<1x128xf32> -> vector<1x128xf32>
    %196 = vector.extract_strided_slice %16 {offsets = [4, 0], sizes = [1, 128], strides = [1, 1]} : vector<8x128xf32> to vector<1x128xf32>
    %197 = arith.addf %195, %196 : vector<1x128xf32>
    %198 = arith.negf %197 : vector<1x128xf32>
    %199 = math.exp %198 : vector<1x128xf32>
    %cst_57 = arith.constant 1.000000e+00 : f32
    %200 = vector.broadcast %cst_57 : f32 to vector<1x128xf32>
    %201 = arith.addf %200, %199 : vector<1x128xf32>
    %202 = arith.divf %200, %201 : vector<1x128xf32>
    %203 = vector.extract_strided_slice %202 {offsets = [0, 0], sizes = [1, 32], strides = [1, 1]} : vector<1x128xf32> to vector<1x32xf32>
    %204 = vector.extract_strided_slice %202 {offsets = [0, 32], sizes = [1, 32], strides = [1, 1]} : vector<1x128xf32> to vector<1x32xf32>
    %205 = vector.extract_strided_slice %202 {offsets = [0, 64], sizes = [1, 32], strides = [1, 1]} : vector<1x128xf32> to vector<1x32xf32>
    %206 = vector.extract_strided_slice %202 {offsets = [0, 96], sizes = [1, 32], strides = [1, 1]} : vector<1x128xf32> to vector<1x32xf32>
    %207 = arith.mulf %204, %169 : vector<1x32xf32>
    %cst_58 = arith.constant 2.000000e+00 : f32
    %208 = vector.broadcast %cst_58 : f32 to vector<1x32xf32>
    %209 = arith.mulf %208, %205 : vector<1x32xf32>
    %cst_59 = arith.constant 1.000000e+00 : f32
    %210 = vector.broadcast %cst_59 : f32 to vector<1x32xf32>
    %211 = arith.subf %209, %210 : vector<1x32xf32>
    %212 = arith.mulf %203, %211 : vector<1x32xf32>
    %213 = arith.addf %207, %212 : vector<1x32xf32>
    %214 = math.tanh %213 : vector<1x32xf32>
    %215 = arith.mulf %206, %214 : vector<1x32xf32>
    %216 = tpu.concatenate %215, %193 in 1 : vector<1x32xf32>, vector<1x32xf32> -> vector<1x64xf32>
    %217 = arith.truncf %216 : vector<1x64xf32> to vector<1x64xbf16>
    %cst_60 = arith.constant dense<0.000000e+00> : vector<1x128xf32>
    %218 = tpu.matmul %217, %2, %cst_60 {dimension_numbers = #tpu.dot_dimension_numbers<[1], [0], [0], [1], [0, 0, 1, 1], [], []>} : vector<1x64xbf16>, vector<64x128xbf16>, vector<1x128xf32> -> vector<1x128xf32>
    %219 = arith.addf %218, %4 : vector<1x128xf32>
    %220 = arith.negf %219 : vector<1x128xf32>
    %221 = math.exp %220 : vector<1x128xf32>
    %cst_61 = arith.constant 1.000000e+00 : f32
    %222 = vector.broadcast %cst_61 : f32 to vector<1x128xf32>
    %223 = arith.addf %222, %221 : vector<1x128xf32>
    %224 = arith.divf %222, %223 : vector<1x128xf32>
    %225 = vector.extract_strided_slice %224 {offsets = [0, 0], sizes = [1, 32], strides = [1, 1]} : vector<1x128xf32> to vector<1x32xf32>
    %226 = vector.extract_strided_slice %224 {offsets = [0, 32], sizes = [1, 32], strides = [1, 1]} : vector<1x128xf32> to vector<1x32xf32>
    %227 = vector.extract_strided_slice %224 {offsets = [0, 64], sizes = [1, 32], strides = [1, 1]} : vector<1x128xf32> to vector<1x32xf32>
    %228 = vector.extract_strided_slice %224 {offsets = [0, 96], sizes = [1, 32], strides = [1, 1]} : vector<1x128xf32> to vector<1x32xf32>
    %229 = arith.mulf %226, %191 : vector<1x32xf32>
    %cst_62 = arith.constant 2.000000e+00 : f32
    %230 = vector.broadcast %cst_62 : f32 to vector<1x32xf32>
    %231 = arith.mulf %230, %227 : vector<1x32xf32>
    %cst_63 = arith.constant 1.000000e+00 : f32
    %232 = vector.broadcast %cst_63 : f32 to vector<1x32xf32>
    %233 = arith.subf %231, %232 : vector<1x32xf32>
    %234 = arith.mulf %225, %233 : vector<1x32xf32>
    %235 = arith.addf %229, %234 : vector<1x32xf32>
    %236 = math.tanh %235 : vector<1x32xf32>
    %237 = arith.mulf %228, %236 : vector<1x32xf32>
    %238 = arith.truncf %215 : vector<1x32xf32> to vector<1x32xbf16>
    %cst_64 = arith.constant dense<0.000000e+00> : vector<1x128xf32>
    %239 = tpu.matmul %238, %1, %cst_64 {dimension_numbers = #tpu.dot_dimension_numbers<[1], [0], [0], [1], [0, 0, 1, 1], [], []>} : vector<1x32xbf16>, vector<32x128xbf16>, vector<1x128xf32> -> vector<1x128xf32>
    %240 = vector.extract_strided_slice %16 {offsets = [5, 0], sizes = [1, 128], strides = [1, 1]} : vector<8x128xf32> to vector<1x128xf32>
    %241 = arith.addf %239, %240 : vector<1x128xf32>
    %242 = arith.negf %241 : vector<1x128xf32>
    %243 = math.exp %242 : vector<1x128xf32>
    %cst_65 = arith.constant 1.000000e+00 : f32
    %244 = vector.broadcast %cst_65 : f32 to vector<1x128xf32>
    %245 = arith.addf %244, %243 : vector<1x128xf32>
    %246 = arith.divf %244, %245 : vector<1x128xf32>
    %247 = vector.extract_strided_slice %246 {offsets = [0, 0], sizes = [1, 32], strides = [1, 1]} : vector<1x128xf32> to vector<1x32xf32>
    %248 = vector.extract_strided_slice %246 {offsets = [0, 32], sizes = [1, 32], strides = [1, 1]} : vector<1x128xf32> to vector<1x32xf32>
    %249 = vector.extract_strided_slice %246 {offsets = [0, 64], sizes = [1, 32], strides = [1, 1]} : vector<1x128xf32> to vector<1x32xf32>
    %250 = vector.extract_strided_slice %246 {offsets = [0, 96], sizes = [1, 32], strides = [1, 1]} : vector<1x128xf32> to vector<1x32xf32>
    %251 = arith.mulf %248, %213 : vector<1x32xf32>
    %cst_66 = arith.constant 2.000000e+00 : f32
    %252 = vector.broadcast %cst_66 : f32 to vector<1x32xf32>
    %253 = arith.mulf %252, %249 : vector<1x32xf32>
    %cst_67 = arith.constant 1.000000e+00 : f32
    %254 = vector.broadcast %cst_67 : f32 to vector<1x32xf32>
    %255 = arith.subf %253, %254 : vector<1x32xf32>
    %256 = arith.mulf %247, %255 : vector<1x32xf32>
    %257 = arith.addf %251, %256 : vector<1x32xf32>
    %258 = math.tanh %257 : vector<1x32xf32>
    %259 = arith.mulf %250, %258 : vector<1x32xf32>
    %260 = tpu.concatenate %259, %237 in 1 : vector<1x32xf32>, vector<1x32xf32> -> vector<1x64xf32>
    %261 = arith.truncf %260 : vector<1x64xf32> to vector<1x64xbf16>
    %cst_68 = arith.constant dense<0.000000e+00> : vector<1x128xf32>
    %262 = tpu.matmul %261, %2, %cst_68 {dimension_numbers = #tpu.dot_dimension_numbers<[1], [0], [0], [1], [0, 0, 1, 1], [], []>} : vector<1x64xbf16>, vector<64x128xbf16>, vector<1x128xf32> -> vector<1x128xf32>
    %263 = arith.addf %262, %4 : vector<1x128xf32>
    %264 = arith.negf %263 : vector<1x128xf32>
    %265 = math.exp %264 : vector<1x128xf32>
    %cst_69 = arith.constant 1.000000e+00 : f32
    %266 = vector.broadcast %cst_69 : f32 to vector<1x128xf32>
    %267 = arith.addf %266, %265 : vector<1x128xf32>
    %268 = arith.divf %266, %267 : vector<1x128xf32>
    %269 = vector.extract_strided_slice %268 {offsets = [0, 0], sizes = [1, 32], strides = [1, 1]} : vector<1x128xf32> to vector<1x32xf32>
    %270 = vector.extract_strided_slice %268 {offsets = [0, 32], sizes = [1, 32], strides = [1, 1]} : vector<1x128xf32> to vector<1x32xf32>
    %271 = vector.extract_strided_slice %268 {offsets = [0, 64], sizes = [1, 32], strides = [1, 1]} : vector<1x128xf32> to vector<1x32xf32>
    %272 = vector.extract_strided_slice %268 {offsets = [0, 96], sizes = [1, 32], strides = [1, 1]} : vector<1x128xf32> to vector<1x32xf32>
    %273 = arith.mulf %270, %235 : vector<1x32xf32>
    %cst_70 = arith.constant 2.000000e+00 : f32
    %274 = vector.broadcast %cst_70 : f32 to vector<1x32xf32>
    %275 = arith.mulf %274, %271 : vector<1x32xf32>
    %cst_71 = arith.constant 1.000000e+00 : f32
    %276 = vector.broadcast %cst_71 : f32 to vector<1x32xf32>
    %277 = arith.subf %275, %276 : vector<1x32xf32>
    %278 = arith.mulf %269, %277 : vector<1x32xf32>
    %279 = arith.addf %273, %278 : vector<1x32xf32>
    %280 = math.tanh %279 : vector<1x32xf32>
    %281 = arith.mulf %272, %280 : vector<1x32xf32>
    %282 = arith.truncf %259 : vector<1x32xf32> to vector<1x32xbf16>
    %cst_72 = arith.constant dense<0.000000e+00> : vector<1x128xf32>
    %283 = tpu.matmul %282, %1, %cst_72 {dimension_numbers = #tpu.dot_dimension_numbers<[1], [0], [0], [1], [0, 0, 1, 1], [], []>} : vector<1x32xbf16>, vector<32x128xbf16>, vector<1x128xf32> -> vector<1x128xf32>
    %284 = vector.extract_strided_slice %16 {offsets = [6, 0], sizes = [1, 128], strides = [1, 1]} : vector<8x128xf32> to vector<1x128xf32>
    %285 = arith.addf %283, %284 : vector<1x128xf32>
    %286 = arith.negf %285 : vector<1x128xf32>
    %287 = math.exp %286 : vector<1x128xf32>
    %cst_73 = arith.constant 1.000000e+00 : f32
    %288 = vector.broadcast %cst_73 : f32 to vector<1x128xf32>
    %289 = arith.addf %288, %287 : vector<1x128xf32>
    %290 = arith.divf %288, %289 : vector<1x128xf32>
    %291 = vector.extract_strided_slice %290 {offsets = [0, 0], sizes = [1, 32], strides = [1, 1]} : vector<1x128xf32> to vector<1x32xf32>
    %292 = vector.extract_strided_slice %290 {offsets = [0, 32], sizes = [1, 32], strides = [1, 1]} : vector<1x128xf32> to vector<1x32xf32>
    %293 = vector.extract_strided_slice %290 {offsets = [0, 64], sizes = [1, 32], strides = [1, 1]} : vector<1x128xf32> to vector<1x32xf32>
    %294 = vector.extract_strided_slice %290 {offsets = [0, 96], sizes = [1, 32], strides = [1, 1]} : vector<1x128xf32> to vector<1x32xf32>
    %295 = arith.mulf %292, %257 : vector<1x32xf32>
    %cst_74 = arith.constant 2.000000e+00 : f32
    %296 = vector.broadcast %cst_74 : f32 to vector<1x32xf32>
    %297 = arith.mulf %296, %293 : vector<1x32xf32>
    %cst_75 = arith.constant 1.000000e+00 : f32
    %298 = vector.broadcast %cst_75 : f32 to vector<1x32xf32>
    %299 = arith.subf %297, %298 : vector<1x32xf32>
    %300 = arith.mulf %291, %299 : vector<1x32xf32>
    %301 = arith.addf %295, %300 : vector<1x32xf32>
    %302 = math.tanh %301 : vector<1x32xf32>
    %303 = arith.mulf %294, %302 : vector<1x32xf32>
    %304 = tpu.concatenate %303, %281 in 1 : vector<1x32xf32>, vector<1x32xf32> -> vector<1x64xf32>
    %305 = arith.truncf %304 : vector<1x64xf32> to vector<1x64xbf16>
    %cst_76 = arith.constant dense<0.000000e+00> : vector<1x128xf32>
    %306 = tpu.matmul %305, %2, %cst_76 {dimension_numbers = #tpu.dot_dimension_numbers<[1], [0], [0], [1], [0, 0, 1, 1], [], []>} : vector<1x64xbf16>, vector<64x128xbf16>, vector<1x128xf32> -> vector<1x128xf32>
    %307 = arith.addf %306, %4 : vector<1x128xf32>
    %308 = arith.negf %307 : vector<1x128xf32>
    %309 = math.exp %308 : vector<1x128xf32>
    %cst_77 = arith.constant 1.000000e+00 : f32
    %310 = vector.broadcast %cst_77 : f32 to vector<1x128xf32>
    %311 = arith.addf %310, %309 : vector<1x128xf32>
    %312 = arith.divf %310, %311 : vector<1x128xf32>
    %313 = vector.extract_strided_slice %312 {offsets = [0, 0], sizes = [1, 32], strides = [1, 1]} : vector<1x128xf32> to vector<1x32xf32>
    %314 = vector.extract_strided_slice %312 {offsets = [0, 32], sizes = [1, 32], strides = [1, 1]} : vector<1x128xf32> to vector<1x32xf32>
    %315 = vector.extract_strided_slice %312 {offsets = [0, 64], sizes = [1, 32], strides = [1, 1]} : vector<1x128xf32> to vector<1x32xf32>
    %316 = vector.extract_strided_slice %312 {offsets = [0, 96], sizes = [1, 32], strides = [1, 1]} : vector<1x128xf32> to vector<1x32xf32>
    %317 = arith.mulf %314, %279 : vector<1x32xf32>
    %cst_78 = arith.constant 2.000000e+00 : f32
    %318 = vector.broadcast %cst_78 : f32 to vector<1x32xf32>
    %319 = arith.mulf %318, %315 : vector<1x32xf32>
    %cst_79 = arith.constant 1.000000e+00 : f32
    %320 = vector.broadcast %cst_79 : f32 to vector<1x32xf32>
    %321 = arith.subf %319, %320 : vector<1x32xf32>
    %322 = arith.mulf %313, %321 : vector<1x32xf32>
    %323 = arith.addf %317, %322 : vector<1x32xf32>
    %324 = math.tanh %323 : vector<1x32xf32>
    %325 = arith.mulf %316, %324 : vector<1x32xf32>
    %326 = arith.truncf %303 : vector<1x32xf32> to vector<1x32xbf16>
    %cst_80 = arith.constant dense<0.000000e+00> : vector<1x128xf32>
    %327 = tpu.matmul %326, %1, %cst_80 {dimension_numbers = #tpu.dot_dimension_numbers<[1], [0], [0], [1], [0, 0, 1, 1], [], []>} : vector<1x32xbf16>, vector<32x128xbf16>, vector<1x128xf32> -> vector<1x128xf32>
    %328 = vector.extract_strided_slice %16 {offsets = [7, 0], sizes = [1, 128], strides = [1, 1]} : vector<8x128xf32> to vector<1x128xf32>
    %329 = arith.addf %327, %328 : vector<1x128xf32>
    %330 = arith.negf %329 : vector<1x128xf32>
    %331 = math.exp %330 : vector<1x128xf32>
    %cst_81 = arith.constant 1.000000e+00 : f32
    %332 = vector.broadcast %cst_81 : f32 to vector<1x128xf32>
    %333 = arith.addf %332, %331 : vector<1x128xf32>
    %334 = arith.divf %332, %333 : vector<1x128xf32>
    %335 = vector.extract_strided_slice %334 {offsets = [0, 0], sizes = [1, 32], strides = [1, 1]} : vector<1x128xf32> to vector<1x32xf32>
    %336 = vector.extract_strided_slice %334 {offsets = [0, 32], sizes = [1, 32], strides = [1, 1]} : vector<1x128xf32> to vector<1x32xf32>
    %337 = vector.extract_strided_slice %334 {offsets = [0, 64], sizes = [1, 32], strides = [1, 1]} : vector<1x128xf32> to vector<1x32xf32>
    %338 = vector.extract_strided_slice %334 {offsets = [0, 96], sizes = [1, 32], strides = [1, 1]} : vector<1x128xf32> to vector<1x32xf32>
    %339 = arith.mulf %336, %301 : vector<1x32xf32>
    %cst_82 = arith.constant 2.000000e+00 : f32
    %340 = vector.broadcast %cst_82 : f32 to vector<1x32xf32>
    %341 = arith.mulf %340, %337 : vector<1x32xf32>
    %cst_83 = arith.constant 1.000000e+00 : f32
    %342 = vector.broadcast %cst_83 : f32 to vector<1x32xf32>
    %343 = arith.subf %341, %342 : vector<1x32xf32>
    %344 = arith.mulf %335, %343 : vector<1x32xf32>
    %345 = arith.addf %339, %344 : vector<1x32xf32>
    %346 = math.tanh %345 : vector<1x32xf32>
    %347 = arith.mulf %338, %346 : vector<1x32xf32>
    %348 = tpu.concatenate %347, %325 in 1 : vector<1x32xf32>, vector<1x32xf32> -> vector<1x64xf32>
    %349 = arith.truncf %348 : vector<1x64xf32> to vector<1x64xbf16>
    %cst_84 = arith.constant dense<0.000000e+00> : vector<1x128xf32>
    %350 = tpu.matmul %349, %2, %cst_84 {dimension_numbers = #tpu.dot_dimension_numbers<[1], [0], [0], [1], [0, 0, 1, 1], [], []>} : vector<1x64xbf16>, vector<64x128xbf16>, vector<1x128xf32> -> vector<1x128xf32>
    %351 = arith.addf %350, %4 : vector<1x128xf32>
    %352 = arith.negf %351 : vector<1x128xf32>
    %353 = math.exp %352 : vector<1x128xf32>
    %cst_85 = arith.constant 1.000000e+00 : f32
    %354 = vector.broadcast %cst_85 : f32 to vector<1x128xf32>
    %355 = arith.addf %354, %353 : vector<1x128xf32>
    %356 = arith.divf %354, %355 : vector<1x128xf32>
    %357 = vector.extract_strided_slice %356 {offsets = [0, 0], sizes = [1, 32], strides = [1, 1]} : vector<1x128xf32> to vector<1x32xf32>
    %358 = vector.extract_strided_slice %356 {offsets = [0, 32], sizes = [1, 32], strides = [1, 1]} : vector<1x128xf32> to vector<1x32xf32>
    %359 = vector.extract_strided_slice %356 {offsets = [0, 64], sizes = [1, 32], strides = [1, 1]} : vector<1x128xf32> to vector<1x32xf32>
    %360 = vector.extract_strided_slice %356 {offsets = [0, 96], sizes = [1, 32], strides = [1, 1]} : vector<1x128xf32> to vector<1x32xf32>
    %361 = arith.mulf %358, %323 : vector<1x32xf32>
    %cst_86 = arith.constant 2.000000e+00 : f32
    %362 = vector.broadcast %cst_86 : f32 to vector<1x32xf32>
    %363 = arith.mulf %362, %359 : vector<1x32xf32>
    %cst_87 = arith.constant 1.000000e+00 : f32
    %364 = vector.broadcast %cst_87 : f32 to vector<1x32xf32>
    %365 = arith.subf %363, %364 : vector<1x32xf32>
    %366 = arith.mulf %357, %365 : vector<1x32xf32>
    %367 = arith.addf %361, %366 : vector<1x32xf32>
    %368 = math.tanh %367 : vector<1x32xf32>
    %369 = arith.mulf %360, %368 : vector<1x32xf32>
    %370 = tpu.concatenate %347, %369 in 0 : vector<1x32xf32>, vector<1x32xf32> -> vector<2x32xf32>
    %371 = arith.truncf %370 : vector<2x32xf32> to vector<2x32xbf16>
    %cst_88 = arith.constant dense<0.000000e+00> : vector<2x64xf32>
    %372 = tpu.matmul %371, %10, %cst_88 {dimension_numbers = #tpu.dot_dimension_numbers<[1], [0], [0], [1], [0, 0, 1, 1], [], []>} : vector<2x32xbf16>, vector<32x64xbf16>, vector<2x64xf32> -> vector<2x64xf32>
    %373 = vector.broadcast %11 : vector<1x64xf32> to vector<2x64xf32>
    %374 = arith.addf %372, %373 : vector<2x64xf32>
    %375 = vector.extract_strided_slice %374 {offsets = [0, 0], sizes = [2, 32], strides = [1, 1]} : vector<2x64xf32> to vector<2x32xf32>
    %376 = vector.extract_strided_slice %374 {offsets = [0, 32], sizes = [2, 32], strides = [1, 1]} : vector<2x64xf32> to vector<2x32xf32>
    %cst_89 = arith.constant 2.000000e+01 : f32
    %377 = vector.broadcast %cst_89 : f32 to vector<2x32xf32>
    %378 = arith.cmpf ogt, %376, %377 : vector<2x32xf32>
    %cst_90 = arith.constant 2.000000e+01 : f32
    %379 = vector.broadcast %cst_90 : f32 to vector<2x32xf32>
    %380 = arith.minimumf %376, %379 : vector<2x32xf32>
    %381 = math.exp %380 : vector<2x32xf32>
    %382 = math.log1p %381 : vector<2x32xf32>
    %383 = arith.select %378, %376, %382 : vector<2x32xi1>, vector<2x32xf32>
    %384 = math.log %383 : vector<2x32xf32>
    %c0_91 = arith.constant 0 : index
    %c0_92 = arith.constant 0 : index
    %385 = vector.load %arg11[%c0_91, %c0_92] : memref<2x32xf32, #tpu.memory_space<vmem>>, vector<2x32xf32>
    tpu.vector_store %arg11[%c0_91, %c0_92], %375 {strides = array<i32>} : memref<2x32xf32, #tpu.memory_space<vmem>>, vector<2x32xf32>,
    %c0_93 = arith.constant 0 : index
    %c0_94 = arith.constant 0 : index
    %386 = vector.load %arg12[%c0_93, %c0_94] : memref<2x32xf32, #tpu.memory_space<vmem>>, vector<2x32xf32>
    tpu.vector_store %arg12[%c0_93, %c0_94], %384 {strides = array<i32>} : memref<2x32xf32, #tpu.memory_space<vmem>>, vector<2x32xf32>,
    %cst_95 = arith.constant 5.000000e-01 : f32
    %387 = vector.broadcast %cst_95 : f32 to vector<2x32xf32>
    %388 = arith.mulf %387, %384 : vector<2x32xf32>
    %389 = math.exp %388 : vector<2x32xf32>
    %c0_96 = arith.constant 0 : index
    %c0_97 = arith.constant 0 : index
    %390 = vector.load %arg1[%c0_96, %c0_97] : memref<2x32xf32, #tpu.memory_space<vmem>>, vector<2x32xf32>
    %391 = arith.mulf %390, %389 : vector<2x32xf32>
    %392 = arith.addf %375, %391 : vector<2x32xf32>
    %393 = vector.extract_strided_slice %392 {offsets = [0, 0], sizes = [1, 32], strides = [1, 1]} : vector<2x32xf32> to vector<1x32xf32>
    %394 = vector.extract_strided_slice %392 {offsets = [1, 0], sizes = [1, 32], strides = [1, 1]} : vector<2x32xf32> to vector<1x32xf32>
    %395 = tpu.concatenate %393, %17 in 1 : vector<1x32xf32>, vector<1x32xf32> -> vector<1x64xf32>
    %396 = arith.truncf %395 : vector<1x64xf32> to vector<1x64xbf16>
    %cst_98 = arith.constant dense<0.000000e+00> : vector<1x128xf32>
    %397 = tpu.matmul %396, %5, %cst_98 {dimension_numbers = #tpu.dot_dimension_numbers<[1], [0], [0], [1], [0, 0, 1, 1], [], []>} : vector<1x64xbf16>, vector<64x128xbf16>, vector<1x128xf32> -> vector<1x128xf32>
    %398 = arith.addf %397, %7 : vector<1x128xf32>
    %399 = arith.negf %398 : vector<1x128xf32>
    %400 = math.exp %399 : vector<1x128xf32>
    %cst_99 = arith.constant 1.000000e+00 : f32
    %401 = vector.broadcast %cst_99 : f32 to vector<1x128xf32>
    %402 = arith.addf %401, %400 : vector<1x128xf32>
    %403 = arith.divf %401, %402 : vector<1x128xf32>
    %404 = vector.extract_strided_slice %403 {offsets = [0, 0], sizes = [1, 32], strides = [1, 1]} : vector<1x128xf32> to vector<1x32xf32>
    %405 = vector.extract_strided_slice %403 {offsets = [0, 32], sizes = [1, 32], strides = [1, 1]} : vector<1x128xf32> to vector<1x32xf32>
    %406 = vector.extract_strided_slice %403 {offsets = [0, 64], sizes = [1, 32], strides = [1, 1]} : vector<1x128xf32> to vector<1x32xf32>
    %407 = vector.extract_strided_slice %403 {offsets = [0, 96], sizes = [1, 32], strides = [1, 1]} : vector<1x128xf32> to vector<1x32xf32>
    %408 = arith.mulf %405, %345 : vector<1x32xf32>
    %cst_100 = arith.constant 2.000000e+00 : f32
    %409 = vector.broadcast %cst_100 : f32 to vector<1x32xf32>
    %410 = arith.mulf %409, %406 : vector<1x32xf32>
    %cst_101 = arith.constant 1.000000e+00 : f32
    %411 = vector.broadcast %cst_101 : f32 to vector<1x32xf32>
    %412 = arith.subf %410, %411 : vector<1x32xf32>
    %413 = arith.mulf %404, %412 : vector<1x32xf32>
    %414 = arith.addf %408, %413 : vector<1x32xf32>
    %415 = math.tanh %414 : vector<1x32xf32>
    %416 = arith.mulf %407, %415 : vector<1x32xf32>
    %417 = tpu.concatenate %416, %394 in 1 : vector<1x32xf32>, vector<1x32xf32> -> vector<1x64xf32>
    %418 = arith.truncf %417 : vector<1x64xf32> to vector<1x64xbf16>
    %cst_102 = arith.constant dense<0.000000e+00> : vector<1x128xf32>
    %419 = tpu.matmul %418, %6, %cst_102 {dimension_numbers = #tpu.dot_dimension_numbers<[1], [0], [0], [1], [0, 0, 1, 1], [], []>} : vector<1x64xbf16>, vector<64x128xbf16>, vector<1x128xf32> -> vector<1x128xf32>
    %420 = arith.addf %419, %9 : vector<1x128xf32>
    %421 = arith.negf %420 : vector<1x128xf32>
    %422 = math.exp %421 : vector<1x128xf32>
    %cst_103 = arith.constant 1.000000e+00 : f32
    %423 = vector.broadcast %cst_103 : f32 to vector<1x128xf32>
    %424 = arith.addf %423, %422 : vector<1x128xf32>
    %425 = arith.divf %423, %424 : vector<1x128xf32>
    %426 = vector.extract_strided_slice %425 {offsets = [0, 0], sizes = [1, 32], strides = [1, 1]} : vector<1x128xf32> to vector<1x32xf32>
    %427 = vector.extract_strided_slice %425 {offsets = [0, 32], sizes = [1, 32], strides = [1, 1]} : vector<1x128xf32> to vector<1x32xf32>
    %428 = vector.extract_strided_slice %425 {offsets = [0, 64], sizes = [1, 32], strides = [1, 1]} : vector<1x128xf32> to vector<1x32xf32>
    %429 = vector.extract_strided_slice %425 {offsets = [0, 96], sizes = [1, 32], strides = [1, 1]} : vector<1x128xf32> to vector<1x32xf32>
    %430 = arith.mulf %427, %367 : vector<1x32xf32>
    %cst_104 = arith.constant 2.000000e+00 : f32
    %431 = vector.broadcast %cst_104 : f32 to vector<1x32xf32>
    %432 = arith.mulf %431, %428 : vector<1x32xf32>
    %cst_105 = arith.constant 1.000000e+00 : f32
    %433 = vector.broadcast %cst_105 : f32 to vector<1x32xf32>
    %434 = arith.subf %432, %433 : vector<1x32xf32>
    %435 = arith.mulf %426, %434 : vector<1x32xf32>
    %436 = arith.addf %430, %435 : vector<1x32xf32>
    %437 = math.tanh %436 : vector<1x32xf32>
    %438 = arith.mulf %429, %437 : vector<1x32xf32>
    %c0_106 = arith.constant 0 : index
    %c0_107 = arith.constant 0 : index
    %439 = vector.load %arg13[%c0_106, %c0_107] : memref<8x32xf32, #tpu.memory_space<vmem>>, vector<1x32xf32>
    tpu.vector_store %arg13[%c0_106, %c0_107], %438 {strides = array<i32>} : memref<8x32xf32, #tpu.memory_space<vmem>>, vector<1x32xf32>,
    %440 = tpu.concatenate %416, %438 in 1 : vector<1x32xf32>, vector<1x32xf32> -> vector<1x64xf32>
    %441 = arith.truncf %440 : vector<1x64xf32> to vector<1x64xbf16>
    %cst_108 = arith.constant dense<0.000000e+00> : vector<1x128xf32>
    %442 = tpu.matmul %441, %5, %cst_108 {dimension_numbers = #tpu.dot_dimension_numbers<[1], [0], [0], [1], [0, 0, 1, 1], [], []>} : vector<1x64xbf16>, vector<64x128xbf16>, vector<1x128xf32> -> vector<1x128xf32>
    %443 = arith.addf %442, %8 : vector<1x128xf32>
    %444 = arith.negf %443 : vector<1x128xf32>
    %445 = math.exp %444 : vector<1x128xf32>
    %cst_109 = arith.constant 1.000000e+00 : f32
    %446 = vector.broadcast %cst_109 : f32 to vector<1x128xf32>
    %447 = arith.addf %446, %445 : vector<1x128xf32>
    %448 = arith.divf %446, %447 : vector<1x128xf32>
    %449 = vector.extract_strided_slice %448 {offsets = [0, 0], sizes = [1, 32], strides = [1, 1]} : vector<1x128xf32> to vector<1x32xf32>
    %450 = vector.extract_strided_slice %448 {offsets = [0, 32], sizes = [1, 32], strides = [1, 1]} : vector<1x128xf32> to vector<1x32xf32>
    %451 = vector.extract_strided_slice %448 {offsets = [0, 64], sizes = [1, 32], strides = [1, 1]} : vector<1x128xf32> to vector<1x32xf32>
    %452 = vector.extract_strided_slice %448 {offsets = [0, 96], sizes = [1, 32], strides = [1, 1]} : vector<1x128xf32> to vector<1x32xf32>
    %453 = arith.mulf %450, %414 : vector<1x32xf32>
    %cst_110 = arith.constant 2.000000e+00 : f32
    %454 = vector.broadcast %cst_110 : f32 to vector<1x32xf32>
    %455 = arith.mulf %454, %451 : vector<1x32xf32>
    %cst_111 = arith.constant 1.000000e+00 : f32
    %456 = vector.broadcast %cst_111 : f32 to vector<1x32xf32>
    %457 = arith.subf %455, %456 : vector<1x32xf32>
    %458 = arith.mulf %449, %457 : vector<1x32xf32>
    %459 = arith.addf %453, %458 : vector<1x32xf32>
    %460 = math.tanh %459 : vector<1x32xf32>
    %461 = arith.mulf %452, %460 : vector<1x32xf32>
    %462 = tpu.concatenate %461, %438 in 1 : vector<1x32xf32>, vector<1x32xf32> -> vector<1x64xf32>
    %463 = arith.truncf %462 : vector<1x64xf32> to vector<1x64xbf16>
    %cst_112 = arith.constant dense<0.000000e+00> : vector<1x128xf32>
    %464 = tpu.matmul %463, %6, %cst_112 {dimension_numbers = #tpu.dot_dimension_numbers<[1], [0], [0], [1], [0, 0, 1, 1], [], []>} : vector<1x64xbf16>, vector<64x128xbf16>, vector<1x128xf32> -> vector<1x128xf32>
    %465 = arith.addf %464, %9 : vector<1x128xf32>
    %466 = arith.negf %465 : vector<1x128xf32>
    %467 = math.exp %466 : vector<1x128xf32>
    %cst_113 = arith.constant 1.000000e+00 : f32
    %468 = vector.broadcast %cst_113 : f32 to vector<1x128xf32>
    %469 = arith.addf %468, %467 : vector<1x128xf32>
    %470 = arith.divf %468, %469 : vector<1x128xf32>
    %471 = vector.extract_strided_slice %470 {offsets = [0, 0], sizes = [1, 32], strides = [1, 1]} : vector<1x128xf32> to vector<1x32xf32>
    %472 = vector.extract_strided_slice %470 {offsets = [0, 32], sizes = [1, 32], strides = [1, 1]} : vector<1x128xf32> to vector<1x32xf32>
    %473 = vector.extract_strided_slice %470 {offsets = [0, 64], sizes = [1, 32], strides = [1, 1]} : vector<1x128xf32> to vector<1x32xf32>
    %474 = vector.extract_strided_slice %470 {offsets = [0, 96], sizes = [1, 32], strides = [1, 1]} : vector<1x128xf32> to vector<1x32xf32>
    %475 = arith.mulf %472, %436 : vector<1x32xf32>
    %cst_114 = arith.constant 2.000000e+00 : f32
    %476 = vector.broadcast %cst_114 : f32 to vector<1x32xf32>
    %477 = arith.mulf %476, %473 : vector<1x32xf32>
    %cst_115 = arith.constant 1.000000e+00 : f32
    %478 = vector.broadcast %cst_115 : f32 to vector<1x32xf32>
    %479 = arith.subf %477, %478 : vector<1x32xf32>
    %480 = arith.mulf %471, %479 : vector<1x32xf32>
    %481 = arith.addf %475, %480 : vector<1x32xf32>
    %482 = math.tanh %481 : vector<1x32xf32>
    %483 = arith.mulf %474, %482 : vector<1x32xf32>
    %c1_116 = arith.constant 1 : index
    %c0_117 = arith.constant 0 : index
    %484 = vector.load %arg13[%c1_116, %c0_117] : memref<8x32xf32, #tpu.memory_space<vmem>>, vector<1x32xf32>
    tpu.vector_store %arg13[%c1_116, %c0_117], %483 {strides = array<i32>} : memref<8x32xf32, #tpu.memory_space<vmem>>, vector<1x32xf32>,
    %485 = tpu.concatenate %461, %483 in 1 : vector<1x32xf32>, vector<1x32xf32> -> vector<1x64xf32>
    %486 = arith.truncf %485 : vector<1x64xf32> to vector<1x64xbf16>
    %cst_118 = arith.constant dense<0.000000e+00> : vector<1x128xf32>
    %487 = tpu.matmul %486, %5, %cst_118 {dimension_numbers = #tpu.dot_dimension_numbers<[1], [0], [0], [1], [0, 0, 1, 1], [], []>} : vector<1x64xbf16>, vector<64x128xbf16>, vector<1x128xf32> -> vector<1x128xf32>
    %488 = arith.addf %487, %8 : vector<1x128xf32>
    %489 = arith.negf %488 : vector<1x128xf32>
    %490 = math.exp %489 : vector<1x128xf32>
    %cst_119 = arith.constant 1.000000e+00 : f32
    %491 = vector.broadcast %cst_119 : f32 to vector<1x128xf32>
    %492 = arith.addf %491, %490 : vector<1x128xf32>
    %493 = arith.divf %491, %492 : vector<1x128xf32>
    %494 = vector.extract_strided_slice %493 {offsets = [0, 0], sizes = [1, 32], strides = [1, 1]} : vector<1x128xf32> to vector<1x32xf32>
    %495 = vector.extract_strided_slice %493 {offsets = [0, 32], sizes = [1, 32], strides = [1, 1]} : vector<1x128xf32> to vector<1x32xf32>
    %496 = vector.extract_strided_slice %493 {offsets = [0, 64], sizes = [1, 32], strides = [1, 1]} : vector<1x128xf32> to vector<1x32xf32>
    %497 = vector.extract_strided_slice %493 {offsets = [0, 96], sizes = [1, 32], strides = [1, 1]} : vector<1x128xf32> to vector<1x32xf32>
    %498 = arith.mulf %495, %459 : vector<1x32xf32>
    %cst_120 = arith.constant 2.000000e+00 : f32
    %499 = vector.broadcast %cst_120 : f32 to vector<1x32xf32>
    %500 = arith.mulf %499, %496 : vector<1x32xf32>
    %cst_121 = arith.constant 1.000000e+00 : f32
    %501 = vector.broadcast %cst_121 : f32 to vector<1x32xf32>
    %502 = arith.subf %500, %501 : vector<1x32xf32>
    %503 = arith.mulf %494, %502 : vector<1x32xf32>
    %504 = arith.addf %498, %503 : vector<1x32xf32>
    %505 = math.tanh %504 : vector<1x32xf32>
    %506 = arith.mulf %497, %505 : vector<1x32xf32>
    %507 = tpu.concatenate %506, %483 in 1 : vector<1x32xf32>, vector<1x32xf32> -> vector<1x64xf32>
    %508 = arith.truncf %507 : vector<1x64xf32> to vector<1x64xbf16>
    %cst_122 = arith.constant dense<0.000000e+00> : vector<1x128xf32>
    %509 = tpu.matmul %508, %6, %cst_122 {dimension_numbers = #tpu.dot_dimension_numbers<[1], [0], [0], [1], [0, 0, 1, 1], [], []>} : vector<1x64xbf16>, vector<64x128xbf16>, vector<1x128xf32> -> vector<1x128xf32>
    %510 = arith.addf %509, %9 : vector<1x128xf32>
    %511 = arith.negf %510 : vector<1x128xf32>
    %512 = math.exp %511 : vector<1x128xf32>
    %cst_123 = arith.constant 1.000000e+00 : f32
    %513 = vector.broadcast %cst_123 : f32 to vector<1x128xf32>
    %514 = arith.addf %513, %512 : vector<1x128xf32>
    %515 = arith.divf %513, %514 : vector<1x128xf32>
    %516 = vector.extract_strided_slice %515 {offsets = [0, 0], sizes = [1, 32], strides = [1, 1]} : vector<1x128xf32> to vector<1x32xf32>
    %517 = vector.extract_strided_slice %515 {offsets = [0, 32], sizes = [1, 32], strides = [1, 1]} : vector<1x128xf32> to vector<1x32xf32>
    %518 = vector.extract_strided_slice %515 {offsets = [0, 64], sizes = [1, 32], strides = [1, 1]} : vector<1x128xf32> to vector<1x32xf32>
    %519 = vector.extract_strided_slice %515 {offsets = [0, 96], sizes = [1, 32], strides = [1, 1]} : vector<1x128xf32> to vector<1x32xf32>
    %520 = arith.mulf %517, %481 : vector<1x32xf32>
    %cst_124 = arith.constant 2.000000e+00 : f32
    %521 = vector.broadcast %cst_124 : f32 to vector<1x32xf32>
    %522 = arith.mulf %521, %518 : vector<1x32xf32>
    %cst_125 = arith.constant 1.000000e+00 : f32
    %523 = vector.broadcast %cst_125 : f32 to vector<1x32xf32>
    %524 = arith.subf %522, %523 : vector<1x32xf32>
    %525 = arith.mulf %516, %524 : vector<1x32xf32>
    %526 = arith.addf %520, %525 : vector<1x32xf32>
    %527 = math.tanh %526 : vector<1x32xf32>
    %528 = arith.mulf %519, %527 : vector<1x32xf32>
    %c2_126 = arith.constant 2 : index
    %c0_127 = arith.constant 0 : index
    %529 = vector.load %arg13[%c2_126, %c0_127] : memref<8x32xf32, #tpu.memory_space<vmem>>, vector<1x32xf32>
    tpu.vector_store %arg13[%c2_126, %c0_127], %528 {strides = array<i32>} : memref<8x32xf32, #tpu.memory_space<vmem>>, vector<1x32xf32>,
    %530 = tpu.concatenate %506, %528 in 1 : vector<1x32xf32>, vector<1x32xf32> -> vector<1x64xf32>
    %531 = arith.truncf %530 : vector<1x64xf32> to vector<1x64xbf16>
    %cst_128 = arith.constant dense<0.000000e+00> : vector<1x128xf32>
    %532 = tpu.matmul %531, %5, %cst_128 {dimension_numbers = #tpu.dot_dimension_numbers<[1], [0], [0], [1], [0, 0, 1, 1], [], []>} : vector<1x64xbf16>, vector<64x128xbf16>, vector<1x128xf32> -> vector<1x128xf32>
    %533 = arith.addf %532, %8 : vector<1x128xf32>
    %534 = arith.negf %533 : vector<1x128xf32>
    %535 = math.exp %534 : vector<1x128xf32>
    %cst_129 = arith.constant 1.000000e+00 : f32
    %536 = vector.broadcast %cst_129 : f32 to vector<1x128xf32>
    %537 = arith.addf %536, %535 : vector<1x128xf32>
    %538 = arith.divf %536, %537 : vector<1x128xf32>
    %539 = vector.extract_strided_slice %538 {offsets = [0, 0], sizes = [1, 32], strides = [1, 1]} : vector<1x128xf32> to vector<1x32xf32>
    %540 = vector.extract_strided_slice %538 {offsets = [0, 32], sizes = [1, 32], strides = [1, 1]} : vector<1x128xf32> to vector<1x32xf32>
    %541 = vector.extract_strided_slice %538 {offsets = [0, 64], sizes = [1, 32], strides = [1, 1]} : vector<1x128xf32> to vector<1x32xf32>
    %542 = vector.extract_strided_slice %538 {offsets = [0, 96], sizes = [1, 32], strides = [1, 1]} : vector<1x128xf32> to vector<1x32xf32>
    %543 = arith.mulf %540, %504 : vector<1x32xf32>
    %cst_130 = arith.constant 2.000000e+00 : f32
    %544 = vector.broadcast %cst_130 : f32 to vector<1x32xf32>
    %545 = arith.mulf %544, %541 : vector<1x32xf32>
    %cst_131 = arith.constant 1.000000e+00 : f32
    %546 = vector.broadcast %cst_131 : f32 to vector<1x32xf32>
    %547 = arith.subf %545, %546 : vector<1x32xf32>
    %548 = arith.mulf %539, %547 : vector<1x32xf32>
    %549 = arith.addf %543, %548 : vector<1x32xf32>
    %550 = math.tanh %549 : vector<1x32xf32>
    %551 = arith.mulf %542, %550 : vector<1x32xf32>
    %552 = tpu.concatenate %551, %528 in 1 : vector<1x32xf32>, vector<1x32xf32> -> vector<1x64xf32>
    %553 = arith.truncf %552 : vector<1x64xf32> to vector<1x64xbf16>
    %cst_132 = arith.constant dense<0.000000e+00> : vector<1x128xf32>
    %554 = tpu.matmul %553, %6, %cst_132 {dimension_numbers = #tpu.dot_dimension_numbers<[1], [0], [0], [1], [0, 0, 1, 1], [], []>} : vector<1x64xbf16>, vector<64x128xbf16>, vector<1x128xf32> -> vector<1x128xf32>
    %555 = arith.addf %554, %9 : vector<1x128xf32>
    %556 = arith.negf %555 : vector<1x128xf32>
    %557 = math.exp %556 : vector<1x128xf32>
    %cst_133 = arith.constant 1.000000e+00 : f32
    %558 = vector.broadcast %cst_133 : f32 to vector<1x128xf32>
    %559 = arith.addf %558, %557 : vector<1x128xf32>
    %560 = arith.divf %558, %559 : vector<1x128xf32>
    %561 = vector.extract_strided_slice %560 {offsets = [0, 0], sizes = [1, 32], strides = [1, 1]} : vector<1x128xf32> to vector<1x32xf32>
    %562 = vector.extract_strided_slice %560 {offsets = [0, 32], sizes = [1, 32], strides = [1, 1]} : vector<1x128xf32> to vector<1x32xf32>
    %563 = vector.extract_strided_slice %560 {offsets = [0, 64], sizes = [1, 32], strides = [1, 1]} : vector<1x128xf32> to vector<1x32xf32>
    %564 = vector.extract_strided_slice %560 {offsets = [0, 96], sizes = [1, 32], strides = [1, 1]} : vector<1x128xf32> to vector<1x32xf32>
    %565 = arith.mulf %562, %526 : vector<1x32xf32>
    %cst_134 = arith.constant 2.000000e+00 : f32
    %566 = vector.broadcast %cst_134 : f32 to vector<1x32xf32>
    %567 = arith.mulf %566, %563 : vector<1x32xf32>
    %cst_135 = arith.constant 1.000000e+00 : f32
    %568 = vector.broadcast %cst_135 : f32 to vector<1x32xf32>
    %569 = arith.subf %567, %568 : vector<1x32xf32>
    %570 = arith.mulf %561, %569 : vector<1x32xf32>
    %571 = arith.addf %565, %570 : vector<1x32xf32>
    %572 = math.tanh %571 : vector<1x32xf32>
    %573 = arith.mulf %564, %572 : vector<1x32xf32>
    %c3 = arith.constant 3 : index
    %c0_136 = arith.constant 0 : index
    %574 = vector.load %arg13[%c3, %c0_136] : memref<8x32xf32, #tpu.memory_space<vmem>>, vector<1x32xf32>
    tpu.vector_store %arg13[%c3, %c0_136], %573 {strides = array<i32>} : memref<8x32xf32, #tpu.memory_space<vmem>>, vector<1x32xf32>,
    %575 = tpu.concatenate %551, %573 in 1 : vector<1x32xf32>, vector<1x32xf32> -> vector<1x64xf32>
    %576 = arith.truncf %575 : vector<1x64xf32> to vector<1x64xbf16>
    %cst_137 = arith.constant dense<0.000000e+00> : vector<1x128xf32>
    %577 = tpu.matmul %576, %5, %cst_137 {dimension_numbers = #tpu.dot_dimension_numbers<[1], [0], [0], [1], [0, 0, 1, 1], [], []>} : vector<1x64xbf16>, vector<64x128xbf16>, vector<1x128xf32> -> vector<1x128xf32>
    %578 = arith.addf %577, %8 : vector<1x128xf32>
    %579 = arith.negf %578 : vector<1x128xf32>
    %580 = math.exp %579 : vector<1x128xf32>
    %cst_138 = arith.constant 1.000000e+00 : f32
    %581 = vector.broadcast %cst_138 : f32 to vector<1x128xf32>
    %582 = arith.addf %581, %580 : vector<1x128xf32>
    %583 = arith.divf %581, %582 : vector<1x128xf32>
    %584 = vector.extract_strided_slice %583 {offsets = [0, 0], sizes = [1, 32], strides = [1, 1]} : vector<1x128xf32> to vector<1x32xf32>
    %585 = vector.extract_strided_slice %583 {offsets = [0, 32], sizes = [1, 32], strides = [1, 1]} : vector<1x128xf32> to vector<1x32xf32>
    %586 = vector.extract_strided_slice %583 {offsets = [0, 64], sizes = [1, 32], strides = [1, 1]} : vector<1x128xf32> to vector<1x32xf32>
    %587 = vector.extract_strided_slice %583 {offsets = [0, 96], sizes = [1, 32], strides = [1, 1]} : vector<1x128xf32> to vector<1x32xf32>
    %588 = arith.mulf %585, %549 : vector<1x32xf32>
    %cst_139 = arith.constant 2.000000e+00 : f32
    %589 = vector.broadcast %cst_139 : f32 to vector<1x32xf32>
    %590 = arith.mulf %589, %586 : vector<1x32xf32>
    %cst_140 = arith.constant 1.000000e+00 : f32
    %591 = vector.broadcast %cst_140 : f32 to vector<1x32xf32>
    %592 = arith.subf %590, %591 : vector<1x32xf32>
    %593 = arith.mulf %584, %592 : vector<1x32xf32>
    %594 = arith.addf %588, %593 : vector<1x32xf32>
    %595 = math.tanh %594 : vector<1x32xf32>
    %596 = arith.mulf %587, %595 : vector<1x32xf32>
    %597 = tpu.concatenate %596, %573 in 1 : vector<1x32xf32>, vector<1x32xf32> -> vector<1x64xf32>
    %598 = arith.truncf %597 : vector<1x64xf32> to vector<1x64xbf16>
    %cst_141 = arith.constant dense<0.000000e+00> : vector<1x128xf32>
    %599 = tpu.matmul %598, %6, %cst_141 {dimension_numbers = #tpu.dot_dimension_numbers<[1], [0], [0], [1], [0, 0, 1, 1], [], []>} : vector<1x64xbf16>, vector<64x128xbf16>, vector<1x128xf32> -> vector<1x128xf32>
    %600 = arith.addf %599, %9 : vector<1x128xf32>
    %601 = arith.negf %600 : vector<1x128xf32>
    %602 = math.exp %601 : vector<1x128xf32>
    %cst_142 = arith.constant 1.000000e+00 : f32
    %603 = vector.broadcast %cst_142 : f32 to vector<1x128xf32>
    %604 = arith.addf %603, %602 : vector<1x128xf32>
    %605 = arith.divf %603, %604 : vector<1x128xf32>
    %606 = vector.extract_strided_slice %605 {offsets = [0, 0], sizes = [1, 32], strides = [1, 1]} : vector<1x128xf32> to vector<1x32xf32>
    %607 = vector.extract_strided_slice %605 {offsets = [0, 32], sizes = [1, 32], strides = [1, 1]} : vector<1x128xf32> to vector<1x32xf32>
    %608 = vector.extract_strided_slice %605 {offsets = [0, 64], sizes = [1, 32], strides = [1, 1]} : vector<1x128xf32> to vector<1x32xf32>
    %609 = vector.extract_strided_slice %605 {offsets = [0, 96], sizes = [1, 32], strides = [1, 1]} : vector<1x128xf32> to vector<1x32xf32>
    %610 = arith.mulf %607, %571 : vector<1x32xf32>
    %cst_143 = arith.constant 2.000000e+00 : f32
    %611 = vector.broadcast %cst_143 : f32 to vector<1x32xf32>
    %612 = arith.mulf %611, %608 : vector<1x32xf32>
    %cst_144 = arith.constant 1.000000e+00 : f32
    %613 = vector.broadcast %cst_144 : f32 to vector<1x32xf32>
    %614 = arith.subf %612, %613 : vector<1x32xf32>
    %615 = arith.mulf %606, %614 : vector<1x32xf32>
    %616 = arith.addf %610, %615 : vector<1x32xf32>
    %617 = math.tanh %616 : vector<1x32xf32>
    %618 = arith.mulf %609, %617 : vector<1x32xf32>
    %c4 = arith.constant 4 : index
    %c0_145 = arith.constant 0 : index
    %619 = vector.load %arg13[%c4, %c0_145] : memref<8x32xf32, #tpu.memory_space<vmem>>, vector<1x32xf32>
    tpu.vector_store %arg13[%c4, %c0_145], %618 {strides = array<i32>} : memref<8x32xf32, #tpu.memory_space<vmem>>, vector<1x32xf32>,
    %620 = tpu.concatenate %596, %618 in 1 : vector<1x32xf32>, vector<1x32xf32> -> vector<1x64xf32>
    %621 = arith.truncf %620 : vector<1x64xf32> to vector<1x64xbf16>
    %cst_146 = arith.constant dense<0.000000e+00> : vector<1x128xf32>
    %622 = tpu.matmul %621, %5, %cst_146 {dimension_numbers = #tpu.dot_dimension_numbers<[1], [0], [0], [1], [0, 0, 1, 1], [], []>} : vector<1x64xbf16>, vector<64x128xbf16>, vector<1x128xf32> -> vector<1x128xf32>
    %623 = arith.addf %622, %8 : vector<1x128xf32>
    %624 = arith.negf %623 : vector<1x128xf32>
    %625 = math.exp %624 : vector<1x128xf32>
    %cst_147 = arith.constant 1.000000e+00 : f32
    %626 = vector.broadcast %cst_147 : f32 to vector<1x128xf32>
    %627 = arith.addf %626, %625 : vector<1x128xf32>
    %628 = arith.divf %626, %627 : vector<1x128xf32>
    %629 = vector.extract_strided_slice %628 {offsets = [0, 0], sizes = [1, 32], strides = [1, 1]} : vector<1x128xf32> to vector<1x32xf32>
    %630 = vector.extract_strided_slice %628 {offsets = [0, 32], sizes = [1, 32], strides = [1, 1]} : vector<1x128xf32> to vector<1x32xf32>
    %631 = vector.extract_strided_slice %628 {offsets = [0, 64], sizes = [1, 32], strides = [1, 1]} : vector<1x128xf32> to vector<1x32xf32>
    %632 = vector.extract_strided_slice %628 {offsets = [0, 96], sizes = [1, 32], strides = [1, 1]} : vector<1x128xf32> to vector<1x32xf32>
    %633 = arith.mulf %630, %594 : vector<1x32xf32>
    %cst_148 = arith.constant 2.000000e+00 : f32
    %634 = vector.broadcast %cst_148 : f32 to vector<1x32xf32>
    %635 = arith.mulf %634, %631 : vector<1x32xf32>
    %cst_149 = arith.constant 1.000000e+00 : f32
    %636 = vector.broadcast %cst_149 : f32 to vector<1x32xf32>
    %637 = arith.subf %635, %636 : vector<1x32xf32>
    %638 = arith.mulf %629, %637 : vector<1x32xf32>
    %639 = arith.addf %633, %638 : vector<1x32xf32>
    %640 = math.tanh %639 : vector<1x32xf32>
    %641 = arith.mulf %632, %640 : vector<1x32xf32>
    %642 = tpu.concatenate %641, %618 in 1 : vector<1x32xf32>, vector<1x32xf32> -> vector<1x64xf32>
    %643 = arith.truncf %642 : vector<1x64xf32> to vector<1x64xbf16>
    %cst_150 = arith.constant dense<0.000000e+00> : vector<1x128xf32>
    %644 = tpu.matmul %643, %6, %cst_150 {dimension_numbers = #tpu.dot_dimension_numbers<[1], [0], [0], [1], [0, 0, 1, 1], [], []>} : vector<1x64xbf16>, vector<64x128xbf16>, vector<1x128xf32> -> vector<1x128xf32>
    %645 = arith.addf %644, %9 : vector<1x128xf32>
    %646 = arith.negf %645 : vector<1x128xf32>
    %647 = math.exp %646 : vector<1x128xf32>
    %cst_151 = arith.constant 1.000000e+00 : f32
    %648 = vector.broadcast %cst_151 : f32 to vector<1x128xf32>
    %649 = arith.addf %648, %647 : vector<1x128xf32>
    %650 = arith.divf %648, %649 : vector<1x128xf32>
    %651 = vector.extract_strided_slice %650 {offsets = [0, 0], sizes = [1, 32], strides = [1, 1]} : vector<1x128xf32> to vector<1x32xf32>
    %652 = vector.extract_strided_slice %650 {offsets = [0, 32], sizes = [1, 32], strides = [1, 1]} : vector<1x128xf32> to vector<1x32xf32>
    %653 = vector.extract_strided_slice %650 {offsets = [0, 64], sizes = [1, 32], strides = [1, 1]} : vector<1x128xf32> to vector<1x32xf32>
    %654 = vector.extract_strided_slice %650 {offsets = [0, 96], sizes = [1, 32], strides = [1, 1]} : vector<1x128xf32> to vector<1x32xf32>
    %655 = arith.mulf %652, %616 : vector<1x32xf32>
    %cst_152 = arith.constant 2.000000e+00 : f32
    %656 = vector.broadcast %cst_152 : f32 to vector<1x32xf32>
    %657 = arith.mulf %656, %653 : vector<1x32xf32>
    %cst_153 = arith.constant 1.000000e+00 : f32
    %658 = vector.broadcast %cst_153 : f32 to vector<1x32xf32>
    %659 = arith.subf %657, %658 : vector<1x32xf32>
    %660 = arith.mulf %651, %659 : vector<1x32xf32>
    %661 = arith.addf %655, %660 : vector<1x32xf32>
    %662 = math.tanh %661 : vector<1x32xf32>
    %663 = arith.mulf %654, %662 : vector<1x32xf32>
    %c5 = arith.constant 5 : index
    %c0_154 = arith.constant 0 : index
    %664 = vector.load %arg13[%c5, %c0_154] : memref<8x32xf32, #tpu.memory_space<vmem>>, vector<1x32xf32>
    tpu.vector_store %arg13[%c5, %c0_154], %663 {strides = array<i32>} : memref<8x32xf32, #tpu.memory_space<vmem>>, vector<1x32xf32>,
    %665 = tpu.concatenate %641, %663 in 1 : vector<1x32xf32>, vector<1x32xf32> -> vector<1x64xf32>
    %666 = arith.truncf %665 : vector<1x64xf32> to vector<1x64xbf16>
    %cst_155 = arith.constant dense<0.000000e+00> : vector<1x128xf32>
    %667 = tpu.matmul %666, %5, %cst_155 {dimension_numbers = #tpu.dot_dimension_numbers<[1], [0], [0], [1], [0, 0, 1, 1], [], []>} : vector<1x64xbf16>, vector<64x128xbf16>, vector<1x128xf32> -> vector<1x128xf32>
    %668 = arith.addf %667, %8 : vector<1x128xf32>
    %669 = arith.negf %668 : vector<1x128xf32>
    %670 = math.exp %669 : vector<1x128xf32>
    %cst_156 = arith.constant 1.000000e+00 : f32
    %671 = vector.broadcast %cst_156 : f32 to vector<1x128xf32>
    %672 = arith.addf %671, %670 : vector<1x128xf32>
    %673 = arith.divf %671, %672 : vector<1x128xf32>
    %674 = vector.extract_strided_slice %673 {offsets = [0, 0], sizes = [1, 32], strides = [1, 1]} : vector<1x128xf32> to vector<1x32xf32>
    %675 = vector.extract_strided_slice %673 {offsets = [0, 32], sizes = [1, 32], strides = [1, 1]} : vector<1x128xf32> to vector<1x32xf32>
    %676 = vector.extract_strided_slice %673 {offsets = [0, 64], sizes = [1, 32], strides = [1, 1]} : vector<1x128xf32> to vector<1x32xf32>
    %677 = vector.extract_strided_slice %673 {offsets = [0, 96], sizes = [1, 32], strides = [1, 1]} : vector<1x128xf32> to vector<1x32xf32>
    %678 = arith.mulf %675, %639 : vector<1x32xf32>
    %cst_157 = arith.constant 2.000000e+00 : f32
    %679 = vector.broadcast %cst_157 : f32 to vector<1x32xf32>
    %680 = arith.mulf %679, %676 : vector<1x32xf32>
    %cst_158 = arith.constant 1.000000e+00 : f32
    %681 = vector.broadcast %cst_158 : f32 to vector<1x32xf32>
    %682 = arith.subf %680, %681 : vector<1x32xf32>
    %683 = arith.mulf %674, %682 : vector<1x32xf32>
    %684 = arith.addf %678, %683 : vector<1x32xf32>
    %685 = math.tanh %684 : vector<1x32xf32>
    %686 = arith.mulf %677, %685 : vector<1x32xf32>
    %687 = tpu.concatenate %686, %663 in 1 : vector<1x32xf32>, vector<1x32xf32> -> vector<1x64xf32>
    %688 = arith.truncf %687 : vector<1x64xf32> to vector<1x64xbf16>
    %cst_159 = arith.constant dense<0.000000e+00> : vector<1x128xf32>
    %689 = tpu.matmul %688, %6, %cst_159 {dimension_numbers = #tpu.dot_dimension_numbers<[1], [0], [0], [1], [0, 0, 1, 1], [], []>} : vector<1x64xbf16>, vector<64x128xbf16>, vector<1x128xf32> -> vector<1x128xf32>
    %690 = arith.addf %689, %9 : vector<1x128xf32>
    %691 = arith.negf %690 : vector<1x128xf32>
    %692 = math.exp %691 : vector<1x128xf32>
    %cst_160 = arith.constant 1.000000e+00 : f32
    %693 = vector.broadcast %cst_160 : f32 to vector<1x128xf32>
    %694 = arith.addf %693, %692 : vector<1x128xf32>
    %695 = arith.divf %693, %694 : vector<1x128xf32>
    %696 = vector.extract_strided_slice %695 {offsets = [0, 0], sizes = [1, 32], strides = [1, 1]} : vector<1x128xf32> to vector<1x32xf32>
    %697 = vector.extract_strided_slice %695 {offsets = [0, 32], sizes = [1, 32], strides = [1, 1]} : vector<1x128xf32> to vector<1x32xf32>
    %698 = vector.extract_strided_slice %695 {offsets = [0, 64], sizes = [1, 32], strides = [1, 1]} : vector<1x128xf32> to vector<1x32xf32>
    %699 = vector.extract_strided_slice %695 {offsets = [0, 96], sizes = [1, 32], strides = [1, 1]} : vector<1x128xf32> to vector<1x32xf32>
    %700 = arith.mulf %697, %661 : vector<1x32xf32>
    %cst_161 = arith.constant 2.000000e+00 : f32
    %701 = vector.broadcast %cst_161 : f32 to vector<1x32xf32>
    %702 = arith.mulf %701, %698 : vector<1x32xf32>
    %cst_162 = arith.constant 1.000000e+00 : f32
    %703 = vector.broadcast %cst_162 : f32 to vector<1x32xf32>
    %704 = arith.subf %702, %703 : vector<1x32xf32>
    %705 = arith.mulf %696, %704 : vector<1x32xf32>
    %706 = arith.addf %700, %705 : vector<1x32xf32>
    %707 = math.tanh %706 : vector<1x32xf32>
    %708 = arith.mulf %699, %707 : vector<1x32xf32>
    %c6 = arith.constant 6 : index
    %c0_163 = arith.constant 0 : index
    %709 = vector.load %arg13[%c6, %c0_163] : memref<8x32xf32, #tpu.memory_space<vmem>>, vector<1x32xf32>
    tpu.vector_store %arg13[%c6, %c0_163], %708 {strides = array<i32>} : memref<8x32xf32, #tpu.memory_space<vmem>>, vector<1x32xf32>,
    %710 = tpu.concatenate %686, %708 in 1 : vector<1x32xf32>, vector<1x32xf32> -> vector<1x64xf32>
    %711 = arith.truncf %710 : vector<1x64xf32> to vector<1x64xbf16>
    %cst_164 = arith.constant dense<0.000000e+00> : vector<1x128xf32>
    %712 = tpu.matmul %711, %5, %cst_164 {dimension_numbers = #tpu.dot_dimension_numbers<[1], [0], [0], [1], [0, 0, 1, 1], [], []>} : vector<1x64xbf16>, vector<64x128xbf16>, vector<1x128xf32> -> vector<1x128xf32>
    %713 = arith.addf %712, %8 : vector<1x128xf32>
    %714 = arith.negf %713 : vector<1x128xf32>
    %715 = math.exp %714 : vector<1x128xf32>
    %cst_165 = arith.constant 1.000000e+00 : f32
    %716 = vector.broadcast %cst_165 : f32 to vector<1x128xf32>
    %717 = arith.addf %716, %715 : vector<1x128xf32>
    %718 = arith.divf %716, %717 : vector<1x128xf32>
    %719 = vector.extract_strided_slice %718 {offsets = [0, 0], sizes = [1, 32], strides = [1, 1]} : vector<1x128xf32> to vector<1x32xf32>
    %720 = vector.extract_strided_slice %718 {offsets = [0, 32], sizes = [1, 32], strides = [1, 1]} : vector<1x128xf32> to vector<1x32xf32>
    %721 = vector.extract_strided_slice %718 {offsets = [0, 64], sizes = [1, 32], strides = [1, 1]} : vector<1x128xf32> to vector<1x32xf32>
    %722 = vector.extract_strided_slice %718 {offsets = [0, 96], sizes = [1, 32], strides = [1, 1]} : vector<1x128xf32> to vector<1x32xf32>
    %723 = arith.mulf %720, %684 : vector<1x32xf32>
    %cst_166 = arith.constant 2.000000e+00 : f32
    %724 = vector.broadcast %cst_166 : f32 to vector<1x32xf32>
    %725 = arith.mulf %724, %721 : vector<1x32xf32>
    %cst_167 = arith.constant 1.000000e+00 : f32
    %726 = vector.broadcast %cst_167 : f32 to vector<1x32xf32>
    %727 = arith.subf %725, %726 : vector<1x32xf32>
    %728 = arith.mulf %719, %727 : vector<1x32xf32>
    %729 = arith.addf %723, %728 : vector<1x32xf32>
    %730 = math.tanh %729 : vector<1x32xf32>
    %731 = arith.mulf %722, %730 : vector<1x32xf32>
    %732 = tpu.concatenate %731, %708 in 1 : vector<1x32xf32>, vector<1x32xf32> -> vector<1x64xf32>
    %733 = arith.truncf %732 : vector<1x64xf32> to vector<1x64xbf16>
    %cst_168 = arith.constant dense<0.000000e+00> : vector<1x128xf32>
    %734 = tpu.matmul %733, %6, %cst_168 {dimension_numbers = #tpu.dot_dimension_numbers<[1], [0], [0], [1], [0, 0, 1, 1], [], []>} : vector<1x64xbf16>, vector<64x128xbf16>, vector<1x128xf32> -> vector<1x128xf32>
    %735 = arith.addf %734, %9 : vector<1x128xf32>
    %736 = arith.negf %735 : vector<1x128xf32>
    %737 = math.exp %736 : vector<1x128xf32>
    %cst_169 = arith.constant 1.000000e+00 : f32
    %738 = vector.broadcast %cst_169 : f32 to vector<1x128xf32>
    %739 = arith.addf %738, %737 : vector<1x128xf32>
    %740 = arith.divf %738, %739 : vector<1x128xf32>
    %741 = vector.extract_strided_slice %740 {offsets = [0, 0], sizes = [1, 32], strides = [1, 1]} : vector<1x128xf32> to vector<1x32xf32>
    %742 = vector.extract_strided_slice %740 {offsets = [0, 32], sizes = [1, 32], strides = [1, 1]} : vector<1x128xf32> to vector<1x32xf32>
    %743 = vector.extract_strided_slice %740 {offsets = [0, 64], sizes = [1, 32], strides = [1, 1]} : vector<1x128xf32> to vector<1x32xf32>
    %744 = vector.extract_strided_slice %740 {offsets = [0, 96], sizes = [1, 32], strides = [1, 1]} : vector<1x128xf32> to vector<1x32xf32>
    %745 = arith.mulf %742, %706 : vector<1x32xf32>
    %cst_170 = arith.constant 2.000000e+00 : f32
    %746 = vector.broadcast %cst_170 : f32 to vector<1x32xf32>
    %747 = arith.mulf %746, %743 : vector<1x32xf32>
    %cst_171 = arith.constant 1.000000e+00 : f32
    %748 = vector.broadcast %cst_171 : f32 to vector<1x32xf32>
    %749 = arith.subf %747, %748 : vector<1x32xf32>
    %750 = arith.mulf %741, %749 : vector<1x32xf32>
    %751 = arith.addf %745, %750 : vector<1x32xf32>
    %752 = math.tanh %751 : vector<1x32xf32>
    %753 = arith.mulf %744, %752 : vector<1x32xf32>
    %c7 = arith.constant 7 : index
    %c0_172 = arith.constant 0 : index
    %754 = vector.load %arg13[%c7, %c0_172] : memref<8x32xf32, #tpu.memory_space<vmem>>, vector<1x32xf32>
    tpu.vector_store %arg13[%c7, %c0_172], %753 {strides = array<i32>} : memref<8x32xf32, #tpu.memory_space<vmem>>, vector<1x32xf32>,
    return
  }
}

</mosaic_0001>

<llo_original>
// kernel: vae_forward.1
$region0: #{vae_forward.1}
  #allocation0 [shape = 'u32[]', space=smem, size = 0x4, offset = 0x4, fixed_abs, tag = 'smem constant byte address 0x4 - core index']
  #allocation1 [shape = 'u32[144,128]{1,0:T(1,128)}', space=vmem, size = 0x12000, scoped, tag = 'internal scratch']
  %s0 = inlined_call_operand.vmem [shape: f32[8,32], index: 0, kind: input, shape index: {}]
  %s1 = inlined_call_operand.vmem [shape: f32[2,32], index: 1, kind: input, shape index: {}]
  %s2 = inlined_call_operand.vmem [shape: bf16[32,128], index: 2, kind: input, shape index: {}]
  %s3 = inlined_call_operand.vmem [shape: bf16[32,128], index: 3, kind: input, shape index: {}]
  %s4 = inlined_call_operand.vmem [shape: bf16[64,128], index: 4, kind: input, shape index: {}]
  %s5 = inlined_call_operand.vmem [shape: f32[2,128], index: 5, kind: input, shape index: {}]
  %s6 = inlined_call_operand.vmem [shape: bf16[32,64], index: 6, kind: input, shape index: {}]
  %s7 = inlined_call_operand.vmem [shape: f32[1,64], index: 7, kind: input, shape index: {}]
  %s8 = inlined_call_operand.vmem [shape: bf16[64,128], index: 8, kind: input, shape index: {}]
  %s9 = inlined_call_operand.vmem [shape: bf16[64,128], index: 9, kind: input, shape index: {}]
  %s10 = inlined_call_operand.vmem [shape: f32[3,128], index: 10, kind: input, shape index: {}]
  %s11 = inlined_call_operand.hbm [shape: f32[2,32], index: 11, kind: output, shape index: {0}]
  %s12 = inlined_call_operand.hbm [shape: f32[2,32], index: 12, kind: output, shape index: {1}]
  %s13 = inlined_call_operand.vmem [shape: f32[8,32], index: 13, kind: output, shape index: {2}]
  %14 = xla_tuple %s11, %s12, %s13
  %s15 = sld [smem:[#allocation0]]
  $region70: #{vae_forward.1} parent=0
    _
  %s17 = ssub.s32 1, %s15
  %s18 = scalar_select 0, %s17, %s15
  $region1: #{vae_forward.1} parent=0
    #allocation2 [shape = 'u8[1024]{0}', space=vmem, size = 0x400, scoped, tag = 'output window, operand 0, single buffered']
    #allocation3 [shape = 's32[1]{0}', space=sflag, size = 0x4, scoped, tag = 'scoped memory for vae_forward.1']
    #allocation4 [shape = 'u8[1024]{0}', space=vmem, size = 0x400, scoped, tag = 'output window, operand 1, single buffered']
    #allocation5 [shape = 's32[1]{0}', space=sflag, size = 0x4, scoped, tag = 'scoped memory for vae_forward.1']
    %19 = vsyncpa [#allocation3], 0
    %20 = vsyncpa [#allocation5], 0
    // Predicated region
    $region2: #{vae_forward.1} parent=1 // pred_check
      _
    $region3: #{vae_forward.1} parent=1 // pred_check_branch
      %22 = sbr.rel (0) target = $region5
    $region4: #{vae_forward.1} parent=1 // pred_region
      _
    $region5: #{vae_forward.1} parent=1 // pred_fallthru
      _
    // Predicated region
    $region6: #{vae_forward.1} parent=1 // pred_check
      _
    $region7: #{vae_forward.1} parent=1 // pred_check_branch
      %24 = sbr.rel (0) target = $region9
    $region8: #{vae_forward.1} parent=1 // pred_region
      _
    $region9: #{vae_forward.1} parent=1 // pred_fallthru
      _
    // Predicated region
    $region10: #{vae_forward.1} parent=1 // pred_check
      _
    $region11: #{vae_forward.1} parent=1 // pred_check_branch
      %26 = sbr.rel (0) target = $region13
    $region12: #{vae_forward.1} parent=1 // pred_region
      _
    $region13: #{vae_forward.1} parent=1 // pred_fallthru
      _
    // Predicated region
    $region14: #{vae_forward.1} parent=1 // pred_check
      _
    $region15: #{vae_forward.1} parent=1 // pred_check_branch
      %28 = sbr.rel (0) target = $region17
    $region16: #{vae_forward.1} parent=1 // pred_region
      _
    $region17: #{vae_forward.1} parent=1 // pred_fallthru
      _
    // Predicated region
    $region18: #{vae_forward.1} parent=1 // pred_check
      _
    $region19: #{vae_forward.1} parent=1 // pred_check_branch
      %30 = sbr.rel (0) target = $region21
    $region20: #{vae_forward.1} parent=1 // pred_region
      _
    $region21: #{vae_forward.1} parent=1 // pred_fallthru
      _
    // Predicated region
    $region22: #{vae_forward.1} parent=1 // pred_check
      _
    $region23: #{vae_forward.1} parent=1 // pred_check_branch
      %32 = sbr.rel (0) target = $region25
    $region24: #{vae_forward.1} parent=1 // pred_region
      _
    $region25: #{vae_forward.1} parent=1 // pred_fallthru
      _
    // Predicated region
    $region26: #{vae_forward.1} parent=1 // pred_check
      _
    $region27: #{vae_forward.1} parent=1 // pred_check_branch
      %34 = sbr.rel (0) target = $region29
    $region28: #{vae_forward.1} parent=1 // pred_region
      _
    $region29: #{vae_forward.1} parent=1 // pred_fallthru
      _
    // Predicated region
    $region30: #{vae_forward.1} parent=1 // pred_check
      _
    $region31: #{vae_forward.1} parent=1 // pred_check_branch
      %36 = sbr.rel (0) target = $region33
    $region32: #{vae_forward.1} parent=1 // pred_region
      _
    $region33: #{vae_forward.1} parent=1 // pred_fallthru
      _
    // Predicated region
    $region34: #{vae_forward.1} parent=1 // pred_check
      _
    $region35: #{vae_forward.1} parent=1 // pred_check_branch
      %38 = sbr.rel (0) target = $region37
    $region36: #{vae_forward.1} parent=1 // pred_region
      _
    $region37: #{vae_forward.1} parent=1 // pred_fallthru
      _
    // Predicated region
    $region38: #{vae_forward.1} parent=1 // pred_check
      _
    $region39: #{vae_forward.1} parent=1 // pred_check_branch
      %40 = sbr.rel (0) target = $region41
    $region40: #{vae_forward.1} parent=1 // pred_region
      _
    $region41: #{vae_forward.1} parent=1 // pred_fallthru
      _
    // Predicated region
    $region42: #{vae_forward.1} parent=1 // pred_check
      _
    $region43: #{vae_forward.1} parent=1 // pred_check_branch
      %42 = sbr.rel (0) target = $region45
    $region44: #{vae_forward.1} parent=1 // pred_region
      _
    $region45: #{vae_forward.1} parent=1 // pred_fallthru
      _
    %v44 = vld [vmem:[%s2] sm:$0xf]
    %v45 = vld [vmem:[%s2 + $0x4] sm:$0xf]
    %v46 = vld [vmem:[%s2 + $0x8] sm:$0xf]
    %v47 = vld [vmem:[%s2 + $0xc] sm:$0xf]
    %v48 = vld [vmem:[%s3] sm:$0xf]
    %v49 = vld [vmem:[%s3 + $0x4] sm:$0xf]
    %v50 = vld [vmem:[%s3 + $0x8] sm:$0xf]
    %v51 = vld [vmem:[%s3 + $0xc] sm:$0xf]
    %v52 = vld [vmem:[%s4] sm:$0xf]
    %v53 = vld [vmem:[%s4 + $0x4] sm:$0xf]
    %v54 = vld [vmem:[%s4 + $0x8] sm:$0xf]
    %v55 = vld [vmem:[%s4 + $0xc] sm:$0xf]
    %v56 = vld [vmem:[%s4 + $0x10] sm:$0xf]
    %v57 = vld [vmem:[%s4 + $0x14] sm:$0xf]
    %v58 = vld [vmem:[%s4 + $0x18] sm:$0xf]
    %v59 = vld [vmem:[%s4 + $0x1c] sm:$0xf]
    %v60 = vld [vmem:[%s5] sm:$0x1]
    %v61 = vld [vmem:[%s5 + $0x1] sm:$0x1]
    %v62 = vld [vmem:[%s8] sm:$0xf]
    %v63 = vld [vmem:[%s8 + $0x4] sm:$0xf]
    %v64 = vld [vmem:[%s8 + $0x8] sm:$0xf]
    %v65 = vld [vmem:[%s8 + $0xc] sm:$0xf]
    %v66 = vld [vmem:[%s8 + $0x10] sm:$0xf]
    %v67 = vld [vmem:[%s8 + $0x14] sm:$0xf]
    %v68 = vld [vmem:[%s8 + $0x18] sm:$0xf]
    %v69 = vld [vmem:[%s8 + $0x1c] sm:$0xf]
    %v70 = vld [vmem:[%s9] sm:$0xf]
    %v71 = vld [vmem:[%s9 + $0x4] sm:$0xf]
    %v72 = vld [vmem:[%s9 + $0x8] sm:$0xf]
    %v73 = vld [vmem:[%s9 + $0xc] sm:$0xf]
    %v74 = vld [vmem:[%s9 + $0x10] sm:$0xf]
    %v75 = vld [vmem:[%s9 + $0x14] sm:$0xf]
    %v76 = vld [vmem:[%s9 + $0x18] sm:$0xf]
    %v77 = vld [vmem:[%s9 + $0x1c] sm:$0xf]
    %v78 = vld [vmem:[%s10] sm:$0x1]
    %v79 = vld [vmem:[%s10 + $0x1] sm:$0x1]
    %v80 = vld [vmem:[%s10 + $0x2] sm:$0x1]
    %v81 = vld [vmem:[%s6] sm:$0xf]
    %v82 = vld [vmem:[%s6 + $0x4] sm:$0xf]
    %v83 = vld [vmem:[%s6 + $0x8] sm:$0xf]
    %v84 = vld [vmem:[%s6 + $0xc] sm:$0xf]
    %v85 = vld [vmem:[%s7] sm:$0x1]
    %v86 = vld [vmem:[%s0] sm:$0xff]
    %v87 = vpack.c.bf16 %v86, %v86
    %v88 = vlaneseq
    %v89 = vshrl.u32 %v88, 7
    %v90 = vsub.s32 0, %v89
    %v91 = vrot.slane %v60, %v90
    %v96 = vunpack.c.l.b16 %v44
    %v97 = vunpack.c.l.b16 %v45
    %v98 = vunpack.c.l.b16 %v46
    %v99 = vunpack.c.l.b16 %v47
    %v100 = vpack.c.b16 %v97, %v96
    %v101 = vpack.c.b16 %v99, %v98
    %vm104 = vcmask 261120
    %v106 = vsel %vm104, %v87, 0
    %108 = vmatprep.subr.bf16.mxu0 0
    %109 = vmatpush1.bf16.msra.mxu0 0
    %110 = vmatprep.subr.bf16.mxu0 0
    %111 = vmatpush1.bf16.msra.mxu0 0
    %112 = vmatprep.subr.bf16.mxu0 0
    %113 = vmatpush1.bf16.msra.mxu0 0
    %114 = vmatprep.subr.bf16.mxu0 0
    %115 = vmatpush1.bf16.msra.mxu0 0
    %116 = vmatprep.subr.bf16.mxu0 0
    %117 = vmatpush1.bf16.msra.mxu0 0
    %118 = vmatprep.subr.bf16.mxu0 0
    %119 = vmatpush1.bf16.msra.mxu0 0
    %120 = vmatprep.subr.bf16.mxu0 0
    %121 = vmatpush1.bf16.msra.mxu0 %v101
    %122 = vmatprep.subr.bf16.mxu0 0
    %123 = vmatpush1.bf16.msra.mxu0 %v100
    %124 = vmatprep.subr.bf16.mxu0 0
    %125 = vmatpush2.bf16.msra.mxu0 0
    %126 = vmatprep.subr.bf16.mxu0 0
    %127 = vmatpush2.bf16.msra.mxu0 0
    %128 = vmatprep.subr.bf16.mxu0 0
    %129 = vmatpush2.bf16.msra.mxu0 0
    %130 = vmatprep.subr.bf16.mxu0 0
    %131 = vmatpush2.bf16.msra.mxu0 0
    %132 = vmatprep.subr.bf16.mxu0 0
    %133 = vmatpush2.bf16.msra.mxu0 0
    %134 = vmatprep.subr.bf16.mxu0 0
    %135 = vmatpush2.bf16.msra.mxu0 0
    %136 = vmatprep.subr.bf16.mxu0 0
    %137 = vmatpush2.bf16.msra.mxu0 0
    %138 = vmatprep.subr.bf16.mxu0 0
    %139 = vmatpush2.bf16.msra.mxu0 0
    %140 = vmatprep.mubr.bf16.mxu0 0
    %141 = vmatmul.mubr.bf16.gmra.mxu0 %v106
    %v142 = vpop.f32.mrf.mxu0
    %v143 = vadd.f32 %v91, %v142
    %v144 = vpop.f32.mrf.mxu0
    %v145 = vpop.f32.mrf.mxu0
    %v146 = vpop.f32.mrf.mxu0
    %147 = vdwg.mxu0
    %v152 = vunpack.c.l.b16 %v48
    %v153 = vunpack.c.l.b16 %v49
    %v154 = vunpack.c.l.b16 %v50
    %v155 = vunpack.c.l.b16 %v51
    %v156 = vpack.c.b16 %v153, %v152
    %v157 = vpack.c.b16 %v155, %v154
    %v161 = vsel %vm104, 0, 0
    %163 = vmatprep.subr.bf16.mxu0 0
    %164 = vmatpush1.bf16.msra.mxu0 0
    %165 = vmatprep.subr.bf16.mxu0 0
    %166 = vmatpush1.bf16.msra.mxu0 0
    %167 = vmatprep.subr.bf16.mxu0 0
    %168 = vmatpush1.bf16.msra.mxu0 0
    %169 = vmatprep.subr.bf16.mxu0 0
    %170 = vmatpush1.bf16.msra.mxu0 0
    %171 = vmatprep.subr.bf16.mxu0 0
    %172 = vmatpush1.bf16.msra.mxu0 0
    %173 = vmatprep.subr.bf16.mxu0 0
    %174 = vmatpush1.bf16.msra.mxu0 0
    %175 = vmatprep.subr.bf16.mxu0 0
    %176 = vmatpush1.bf16.msra.mxu0 %v157
    %177 = vmatprep.subr.bf16.mxu0 0
    %178 = vmatpush1.bf16.msra.mxu0 %v156
    %179 = vmatprep.subr.bf16.mxu0 0
    %180 = vmatpush2.bf16.msra.mxu0 0
    %181 = vmatprep.subr.bf16.mxu0 0
    %182 = vmatpush2.bf16.msra.mxu0 0
    %183 = vmatprep.subr.bf16.mxu0 0
    %184 = vmatpush2.bf16.msra.mxu0 0
    %185 = vmatprep.subr.bf16.mxu0 0
    %186 = vmatpush2.bf16.msra.mxu0 0
    %187 = vmatprep.subr.bf16.mxu0 0
    %188 = vmatpush2.bf16.msra.mxu0 0
    %189 = vmatprep.subr.bf16.mxu0 0
    %190 = vmatpush2.bf16.msra.mxu0 0
    %191 = vmatprep.subr.bf16.mxu0 0
    %192 = vmatpush2.bf16.msra.mxu0 0
    %193 = vmatprep.subr.bf16.mxu0 0
    %194 = vmatpush2.bf16.msra.mxu0 0
    %195 = vmatprep.mubr.bf16.mxu0 0
    %196 = vmatmul.mubr.bf16.gmra.mxu0 %v161
    %v197 = vpop.f32.mrf.mxu0
    %v198 = vadd.f32 %v143, %v197
    %v199 = vpop.f32.mrf.mxu0
    %v200 = vpop.f32.mrf.mxu0
    %v201 = vpop.f32.mrf.mxu0
    %202 = vdwg.mxu0
    %v203 = vxor.u32 %v198, 2147483648
    %v204 = vmul.f32 %v203, 1.442695
    %v205 = vpow.pop %v204
    %v206 = vadd.f32 %v205, 1.0
    %v207 = vrcp.pop %v206
    %v208 = vmul.f32 1.0, %v207
    %v209 = vmul.f32 %v208, 0.0
    %v210 = vmul.f32 %v208, 2.0
    %v211 = vsub.f32 %v210, 1.0
    %213 = vrot.lane.b32.xlu0 %v211, 64
    %v214 = vpop.permute.xlu0 %213
    %v216 = vmul.f32 %v208, %v214
    %218 = vrot.lane.b32.xlu0 %v216, 32
    %v219 = vpop.permute.xlu0 %218
    %v221 = vadd.f32 %v209, %v219
    %v222 = vtanh.pop %v221
    %224 = vrot.lane.b32.xlu0 %v222, 64
    %v225 = vpop.permute.xlu0 %224
    %v227 = vmul.f32 %v208, %v225
    %229 = vrot.lane.b32.xlu0 %v227, 32
    %v230 = vpop.permute.xlu0 %229
    %v232 = vsel %vm104, %v230, 0.0
    %v233 = vpack.c.bf16 %v232, %v232
    %v242 = vunpack.c.l.b16 %v52
    %v243 = vunpack.c.l.b16 %v53
    %v244 = vunpack.c.l.b16 %v54
    %v245 = vunpack.c.l.b16 %v55
    %v246 = vunpack.c.l.b16 %v56
    %v247 = vunpack.c.l.b16 %v57
    %v248 = vunpack.c.l.b16 %v58
    %v249 = vunpack.c.l.b16 %v59
    %v250 = vpack.c.b16 %v243, %v242
    %v251 = vpack.c.b16 %v245, %v244
    %v252 = vpack.c.b16 %v247, %v246
    %v253 = vpack.c.b16 %v249, %v248
    %vm258 = vcmask 523264
    %v260 = vsel %vm258, %v233, 0
    %262 = vmatprep.subr.bf16.mxu0 0
    %263 = vmatpush1.bf16.msra.mxu0 0
    %264 = vmatprep.subr.bf16.mxu0 0
    %265 = vmatpush1.bf16.msra.mxu0 0
    %266 = vmatprep.subr.bf16.mxu0 0
    %267 = vmatpush1.bf16.msra.mxu0 0
    %268 = vmatprep.subr.bf16.mxu0 0
    %269 = vmatpush1.bf16.msra.mxu0 0
    %270 = vmatprep.subr.bf16.mxu0 0
    %271 = vmatpush1.bf16.msra.mxu0 %v253
    %272 = vmatprep.subr.bf16.mxu0 0
    %273 = vmatpush1.bf16.msra.mxu0 %v252
    %274 = vmatprep.subr.bf16.mxu0 0
    %275 = vmatpush1.bf16.msra.mxu0 %v251
    %276 = vmatprep.subr.bf16.mxu0 0
    %277 = vmatpush1.bf16.msra.mxu0 %v250
    %278 = vmatprep.subr.bf16.mxu0 0
    %279 = vmatpush2.bf16.msra.mxu0 0
    %280 = vmatprep.subr.bf16.mxu0 0
    %281 = vmatpush2.bf16.msra.mxu0 0
    %282 = vmatprep.subr.bf16.mxu0 0
    %283 = vmatpush2.bf16.msra.mxu0 0
    %284 = vmatprep.subr.bf16.mxu0 0
    %285 = vmatpush2.bf16.msra.mxu0 0
    %286 = vmatprep.subr.bf16.mxu0 0
    %287 = vmatpush2.bf16.msra.mxu0 0
    %288 = vmatprep.subr.bf16.mxu0 0
    %289 = vmatpush2.bf16.msra.mxu0 0
    %290 = vmatprep.subr.bf16.mxu0 0
    %291 = vmatpush2.bf16.msra.mxu0 0
    %292 = vmatprep.subr.bf16.mxu0 0
    %293 = vmatpush2.bf16.msra.mxu0 0
    %294 = vmatprep.mubr.bf16.mxu0 0
    %295 = vmatmul.mubr.bf16.gmra.mxu0 %v260
    %v296 = vpop.f32.mrf.mxu0
    %v297 = vadd.f32 %v61, %v296
    %v298 = vpop.f32.mrf.mxu0
    %v299 = vpop.f32.mrf.mxu0
    %v300 = vpop.f32.mrf.mxu0
    %301 = vdwg.mxu0
    %v302 = vxor.u32 %v297, 2147483648
    %v303 = vmul.f32 %v302, 1.442695
    %v304 = vpow.pop %v303
    %v305 = vadd.f32 %v304, 1.0
    %v306 = vrcp.pop %v305
    %v307 = vmul.f32 1.0, %v306
    %v308 = vmul.f32 %v307, 0.0
    %v309 = vmul.f32 %v307, 2.0
    %v310 = vsub.f32 %v309, 1.0
    %312 = vrot.lane.b32.xlu0 %v310, 64
    %v313 = vpop.permute.xlu0 %312
    %v315 = vmul.f32 %v307, %v313
    %317 = vrot.lane.b32.xlu0 %v315, 32
    %v318 = vpop.permute.xlu0 %317
    %v320 = vadd.f32 %v308, %v318
    %v321 = vtanh.pop %v320
    %323 = vrot.lane.b32.xlu0 %v321, 64
    %v324 = vpop.permute.xlu0 %323
    %v326 = vmul.f32 %v307, %v324
    %v327 = vpack.c.bf16 %v227, %v227
    %329 = vrot.lane.b32.xlu0 %v327, 32
    %v330 = vpop.permute.xlu0 %329
    %v332 = vrot.slane %v143, 1
    %v335 = vsel %vm104, %v330, 0
    %337 = vmatprep.subr.bf16.mxu0 0
    %338 = vmatpush1.bf16.msra.mxu0 0
    %339 = vmatprep.subr.bf16.mxu0 0
    %340 = vmatpush1.bf16.msra.mxu0 0
    %341 = vmatprep.subr.bf16.mxu0 0
    %342 = vmatpush1.bf16.msra.mxu0 0
    %343 = vmatprep.subr.bf16.mxu0 0
    %344 = vmatpush1.bf16.msra.mxu0 0
    %345 = vmatprep.subr.bf16.mxu0 0
    %346 = vmatpush1.bf16.msra.mxu0 0
    %347 = vmatprep.subr.bf16.mxu0 0
    %348 = vmatpush1.bf16.msra.mxu0 0
    %349 = vmatprep.subr.bf16.mxu0 0
    %350 = vmatpush1.bf16.msra.mxu0 %v157
    %351 = vmatprep.subr.bf16.mxu0 0
    %352 = vmatpush1.bf16.msra.mxu0 %v156
    %353 = vmatprep.subr.bf16.mxu0 0
    %354 = vmatpush2.bf16.msra.mxu0 0
    %355 = vmatprep.subr.bf16.mxu0 0
    %356 = vmatpush2.bf16.msra.mxu0 0
    %357 = vmatprep.subr.bf16.mxu0 0
    %358 = vmatpush2.bf16.msra.mxu0 0
    %359 = vmatprep.subr.bf16.mxu0 0
    %360 = vmatpush2.bf16.msra.mxu0 0
    %361 = vmatprep.subr.bf16.mxu0 0
    %362 = vmatpush2.bf16.msra.mxu0 0
    %363 = vmatprep.subr.bf16.mxu0 0
    %364 = vmatpush2.bf16.msra.mxu0 0
    %365 = vmatprep.subr.bf16.mxu0 0
    %366 = vmatpush2.bf16.msra.mxu0 0
    %367 = vmatprep.subr.bf16.mxu0 0
    %368 = vmatpush2.bf16.msra.mxu0 0
    %369 = vmatprep.mubr.bf16.mxu0 0
    %370 = vmatmul.mubr.bf16.gmra.mxu0 %v335
    %v371 = vpop.f32.mrf.mxu0
    %v372 = vadd.f32 %v332, %v371
    %v373 = vpop.f32.mrf.mxu0
    %v374 = vpop.f32.mrf.mxu0
    %v375 = vpop.f32.mrf.mxu0
    %376 = vdwg.mxu0
    %v377 = vxor.u32 %v372, 2147483648
    %v378 = vmul.f32 %v377, 1.442695
    %v379 = vpow.pop %v378
    %v380 = vadd.f32 %v379, 1.0
    %v381 = vrcp.pop %v380
    %v382 = vmul.f32 1.0, %v381
    %v383 = vmul.f32 %v382, %v221
    %v384 = vmul.f32 %v382, 2.0
    %v385 = vsub.f32 %v384, 1.0
    %387 = vrot.lane.b32.xlu0 %v385, 64
    %v388 = vpop.permute.xlu0 %387
    %v390 = vmul.f32 %v382, %v388
    %392 = vrot.lane.b32.xlu0 %v390, 32
    %v393 = vpop.permute.xlu0 %392
    %v395 = vadd.f32 %v383, %v393
    %v396 = vtanh.pop %v395
    %398 = vrot.lane.b32.xlu0 %v396, 64
    %v399 = vpop.permute.xlu0 %398
    %v401 = vmul.f32 %v382, %v399
    %403 = vrot.lane.b32.xlu0 %v401, 32
    %v404 = vpop.permute.xlu0 %403
    %407 = vrot.lane.b32.xlu0 %v326, 64
    %v408 = vpop.permute.xlu0 %407
    %v410 = vsel %vm104, %v404, %v408
    %v411 = vpack.c.bf16 %v410, %v410
    %v413 = vsel %vm258, %v411, 0
    %415 = vmatprep.subr.bf16.mxu0 0
    %416 = vmatpush1.bf16.msra.mxu0 0
    %417 = vmatprep.subr.bf16.mxu0 0
    %418 = vmatpush1.bf16.msra.mxu0 0
    %419 = vmatprep.subr.bf16.mxu0 0
    %420 = vmatpush1.bf16.msra.mxu0 0
    %421 = vmatprep.subr.bf16.mxu0 0
    %422 = vmatpush1.bf16.msra.mxu0 0
    %423 = vmatprep.subr.bf16.mxu0 0
    %424 = vmatpush1.bf16.msra.mxu0 %v253
    %425 = vmatprep.subr.bf16.mxu0 0
    %426 = vmatpush1.bf16.msra.mxu0 %v252
    %427 = vmatprep.subr.bf16.mxu0 0
    %428 = vmatpush1.bf16.msra.mxu0 %v251
    %429 = vmatprep.subr.bf16.mxu0 0
    %430 = vmatpush1.bf16.msra.mxu0 %v250
    %431 = vmatprep.subr.bf16.mxu0 0
    %432 = vmatpush2.bf16.msra.mxu0 0
    %433 = vmatprep.subr.bf16.mxu0 0
    %434 = vmatpush2.bf16.msra.mxu0 0
    %435 = vmatprep.subr.bf16.mxu0 0
    %436 = vmatpush2.bf16.msra.mxu0 0
    %437 = vmatprep.subr.bf16.mxu0 0
    %438 = vmatpush2.bf16.msra.mxu0 0
    %439 = vmatprep.subr.bf16.mxu0 0
    %440 = vmatpush2.bf16.msra.mxu0 0
    %441 = vmatprep.subr.bf16.mxu0 0
    %442 = vmatpush2.bf16.msra.mxu0 0
    %443 = vmatprep.subr.bf16.mxu0 0
    %444 = vmatpush2.bf16.msra.mxu0 0
    %445 = vmatprep.subr.bf16.mxu0 0
    %446 = vmatpush2.bf16.msra.mxu0 0
    %447 = vmatprep.mubr.bf16.mxu0 0
    %448 = vmatmul.mubr.bf16.gmra.mxu0 %v413
    %v449 = vpop.f32.mrf.mxu0
    %v450 = vadd.f32 %v61, %v449
    %v451 = vpop.f32.mrf.mxu0
    %v452 = vpop.f32.mrf.mxu0
    %v453 = vpop.f32.mrf.mxu0
    %454 = vdwg.mxu0
    %v455 = vxor.u32 %v450, 2147483648
    %v456 = vmul.f32 %v455, 1.442695
    %v457 = vpow.pop %v456
    %v458 = vadd.f32 %v457, 1.0
    %v459 = vrcp.pop %v458
    %v460 = vmul.f32 1.0, %v459
    %v461 = vmul.f32 %v460, %v320
    %v462 = vmul.f32 %v460, 2.0
    %v463 = vsub.f32 %v462, 1.0
    %465 = vrot.lane.b32.xlu0 %v463, 64
    %v466 = vpop.permute.xlu0 %465
    %v468 = vmul.f32 %v460, %v466
    %470 = vrot.lane.b32.xlu0 %v468, 32
    %v471 = vpop.permute.xlu0 %470
    %v473 = vadd.f32 %v461, %v471
    %v474 = vtanh.pop %v473
    %476 = vrot.lane.b32.xlu0 %v474, 64
    %v477 = vpop.permute.xlu0 %476
    %v479 = vmul.f32 %v460, %v477
    %v480 = vpack.c.bf16 %v401, %v401
    %482 = vrot.lane.b32.xlu0 %v480, 32
    %v483 = vpop.permute.xlu0 %482
    %v484 = vrot.slane %v143, 2
    %v487 = vsel %vm104, %v483, 0
    %489 = vmatprep.subr.bf16.mxu0 0
    %490 = vmatpush1.bf16.msra.mxu0 0
    %491 = vmatprep.subr.bf16.mxu0 0
    %492 = vmatpush1.bf16.msra.mxu0 0
    %493 = vmatprep.subr.bf16.mxu0 0
    %494 = vmatpush1.bf16.msra.mxu0 0
    %495 = vmatprep.subr.bf16.mxu0 0
    %496 = vmatpush1.bf16.msra.mxu0 0
    %497 = vmatprep.subr.bf16.mxu0 0
    %498 = vmatpush1.bf16.msra.mxu0 0
    %499 = vmatprep.subr.bf16.mxu0 0
    %500 = vmatpush1.bf16.msra.mxu0 0
    %501 = vmatprep.subr.bf16.mxu0 0
    %502 = vmatpush1.bf16.msra.mxu0 %v157
    %503 = vmatprep.subr.bf16.mxu0 0
    %504 = vmatpush1.bf16.msra.mxu0 %v156
    %505 = vmatprep.subr.bf16.mxu0 0
    %506 = vmatpush2.bf16.msra.mxu0 0
    %507 = vmatprep.subr.bf16.mxu0 0
    %508 = vmatpush2.bf16.msra.mxu0 0
    %509 = vmatprep.subr.bf16.mxu0 0
    %510 = vmatpush2.bf16.msra.mxu0 0
    %511 = vmatprep.subr.bf16.mxu0 0
    %512 = vmatpush2.bf16.msra.mxu0 0
    %513 = vmatprep.subr.bf16.mxu0 0
    %514 = vmatpush2.bf16.msra.mxu0 0
    %515 = vmatprep.subr.bf16.mxu0 0
    %516 = vmatpush2.bf16.msra.mxu0 0
    %517 = vmatprep.subr.bf16.mxu0 0
    %518 = vmatpush2.bf16.msra.mxu0 0
    %519 = vmatprep.subr.bf16.mxu0 0
    %520 = vmatpush2.bf16.msra.mxu0 0
    %521 = vmatprep.mubr.bf16.mxu0 0
    %522 = vmatmul.mubr.bf16.gmra.mxu0 %v487
    %v523 = vpop.f32.mrf.mxu0
    %v524 = vadd.f32 %v484, %v523
    %v525 = vpop.f32.mrf.mxu0
    %v526 = vpop.f32.mrf.mxu0
    %v527 = vpop.f32.mrf.mxu0
    %528 = vdwg.mxu0
    %v529 = vxor.u32 %v524, 2147483648
    %v530 = vmul.f32 %v529, 1.442695
    %v531 = vpow.pop %v530
    %v532 = vadd.f32 %v531, 1.0
    %v533 = vrcp.pop %v532
    %v534 = vmul.f32 1.0, %v533
    %v535 = vmul.f32 %v534, %v395
    %v536 = vmul.f32 %v534, 2.0
    %v537 = vsub.f32 %v536, 1.0
    %539 = vrot.lane.b32.xlu0 %v537, 64
    %v540 = vpop.permute.xlu0 %539
    %v542 = vmul.f32 %v534, %v540
    %544 = vrot.lane.b32.xlu0 %v542, 32
    %v545 = vpop.permute.xlu0 %544
    %v547 = vadd.f32 %v535, %v545
    %v548 = vtanh.pop %v547
    %550 = vrot.lane.b32.xlu0 %v548, 64
    %v551 = vpop.permute.xlu0 %550
    %v553 = vmul.f32 %v534, %v551
    %555 = vrot.lane.b32.xlu0 %v553, 32
    %v556 = vpop.permute.xlu0 %555
    %559 = vrot.lane.b32.xlu0 %v479, 64
    %v560 = vpop.permute.xlu0 %559
    %v562 = vsel %vm104, %v556, %v560
    %v563 = vpack.c.bf16 %v562, %v562
    %v565 = vsel %vm258, %v563, 0
    %567 = vmatprep.subr.bf16.mxu0 0
    %568 = vmatpush1.bf16.msra.mxu0 0
    %569 = vmatprep.subr.bf16.mxu0 0
    %570 = vmatpush1.bf16.msra.mxu0 0
    %571 = vmatprep.subr.bf16.mxu0 0
    %572 = vmatpush1.bf16.msra.mxu0 0
    %573 = vmatprep.subr.bf16.mxu0 0
    %574 = vmatpush1.bf16.msra.mxu0 0
    %575 = vmatprep.subr.bf16.mxu0 0
    %576 = vmatpush1.bf16.msra.mxu0 %v253
    %577 = vmatprep.subr.bf16.mxu0 0
    %578 = vmatpush1.bf16.msra.mxu0 %v252
    %579 = vmatprep.subr.bf16.mxu0 0
    %580 = vmatpush1.bf16.msra.mxu0 %v251
    %581 = vmatprep.subr.bf16.mxu0 0
    %582 = vmatpush1.bf16.msra.mxu0 %v250
    %583 = vmatprep.subr.bf16.mxu0 0
    %584 = vmatpush2.bf16.msra.mxu0 0
    %585 = vmatprep.subr.bf16.mxu0 0
    %586 = vmatpush2.bf16.msra.mxu0 0
    %587 = vmatprep.subr.bf16.mxu0 0
    %588 = vmatpush2.bf16.msra.mxu0 0
    %589 = vmatprep.subr.bf16.mxu0 0
    %590 = vmatpush2.bf16.msra.mxu0 0
    %591 = vmatprep.subr.bf16.mxu0 0
    %592 = vmatpush2.bf16.msra.mxu0 0
    %593 = vmatprep.subr.bf16.mxu0 0
    %594 = vmatpush2.bf16.msra.mxu0 0
    %595 = vmatprep.subr.bf16.mxu0 0
    %596 = vmatpush2.bf16.msra.mxu0 0
    %597 = vmatprep.subr.bf16.mxu0 0
    %598 = vmatpush2.bf16.msra.mxu0 0
    %599 = vmatprep.mubr.bf16.mxu0 0
    %600 = vmatmul.mubr.bf16.gmra.mxu0 %v565
    %v601 = vpop.f32.mrf.mxu0
    %v602 = vadd.f32 %v61, %v601
    %v603 = vpop.f32.mrf.mxu0
    %v604 = vpop.f32.mrf.mxu0
    %v605 = vpop.f32.mrf.mxu0
    %606 = vdwg.mxu0
    %v607 = vxor.u32 %v602, 2147483648
    %v608 = vmul.f32 %v607, 1.442695
    %v609 = vpow.pop %v608
    %v610 = vadd.f32 %v609, 1.0
    %v611 = vrcp.pop %v610
    %v612 = vmul.f32 1.0, %v611
    %v613 = vmul.f32 %v612, %v473
    %v614 = vmul.f32 %v612, 2.0
    %v615 = vsub.f32 %v614, 1.0
    %617 = vrot.lane.b32.xlu0 %v615, 64
    %v618 = vpop.permute.xlu0 %617
    %v620 = vmul.f32 %v612, %v618
    %622 = vrot.lane.b32.xlu0 %v620, 32
    %v623 = vpop.permute.xlu0 %622
    %v625 = vadd.f32 %v613, %v623
    %v626 = vtanh.pop %v625
    %628 = vrot.lane.b32.xlu0 %v626, 64
    %v629 = vpop.permute.xlu0 %628
    %v631 = vmul.f32 %v612, %v629
    %v632 = vpack.c.bf16 %v553, %v553
    %634 = vrot.lane.b32.xlu0 %v632, 32
    %v635 = vpop.permute.xlu0 %634
    %v636 = vrot.slane %v143, 3
    %v639 = vsel %vm104, %v635, 0
    %641 = vmatprep.subr.bf16.mxu0 0
    %642 = vmatpush1.bf16.msra.mxu0 0
    %643 = vmatprep.subr.bf16.mxu0 0
    %644 = vmatpush1.bf16.msra.mxu0 0
    %645 = vmatprep.subr.bf16.mxu0 0
    %646 = vmatpush1.bf16.msra.mxu0 0
    %647 = vmatprep.subr.bf16.mxu0 0
    %648 = vmatpush1.bf16.msra.mxu0 0
    %649 = vmatprep.subr.bf16.mxu0 0
    %650 = vmatpush1.bf16.msra.mxu0 0
    %651 = vmatprep.subr.bf16.mxu0 0
    %652 = vmatpush1.bf16.msra.mxu0 0
    %653 = vmatprep.subr.bf16.mxu0 0
    %654 = vmatpush1.bf16.msra.mxu0 %v157
    %655 = vmatprep.subr.bf16.mxu0 0
    %656 = vmatpush1.bf16.msra.mxu0 %v156
    %657 = vmatprep.subr.bf16.mxu0 0
    %658 = vmatpush2.bf16.msra.mxu0 0
    %659 = vmatprep.subr.bf16.mxu0 0
    %660 = vmatpush2.bf16.msra.mxu0 0
    %661 = vmatprep.subr.bf16.mxu0 0
    %662 = vmatpush2.bf16.msra.mxu0 0
    %663 = vmatprep.subr.bf16.mxu0 0
    %664 = vmatpush2.bf16.msra.mxu0 0
    %665 = vmatprep.subr.bf16.mxu0 0
    %666 = vmatpush2.bf16.msra.mxu0 0
    %667 = vmatprep.subr.bf16.mxu0 0
    %668 = vmatpush2.bf16.msra.mxu0 0
    %669 = vmatprep.subr.bf16.mxu0 0
    %670 = vmatpush2.bf16.msra.mxu0 0
    %671 = vmatprep.subr.bf16.mxu0 0
    %672 = vmatpush2.bf16.msra.mxu0 0
    %673 = vmatprep.mubr.bf16.mxu0 0
    %674 = vmatmul.mubr.bf16.gmra.mxu0 %v639
    %v675 = vpop.f32.mrf.mxu0
    %v676 = vadd.f32 %v636, %v675
    %v677 = vpop.f32.mrf.mxu0
    %v678 = vpop.f32.mrf.mxu0
    %v679 = vpop.f32.mrf.mxu0
    %680 = vdwg.mxu0
    %v681 = vxor.u32 %v676, 2147483648
    %v682 = vmul.f32 %v681, 1.442695
    %v683 = vpow.pop %v682
    %v684 = vadd.f32 %v683, 1.0
    %v685 = vrcp.pop %v684
    %v686 = vmul.f32 1.0, %v685
    %v687 = vmul.f32 %v686, %v547
    %v688 = vmul.f32 %v686, 2.0
    %v689 = vsub.f32 %v688, 1.0
    %691 = vrot.lane.b32.xlu0 %v689, 64
    %v692 = vpop.permute.xlu0 %691
    %v694 = vmul.f32 %v686, %v692
    %696 = vrot.lane.b32.xlu0 %v694, 32
    %v697 = vpop.permute.xlu0 %696
    %v699 = vadd.f32 %v687, %v697
    %v700 = vtanh.pop %v699
    %702 = vrot.lane.b32.xlu0 %v700, 64
    %v703 = vpop.permute.xlu0 %702
    %v705 = vmul.f32 %v686, %v703
    %707 = vrot.lane.b32.xlu0 %v705, 32
    %v708 = vpop.permute.xlu0 %707
    %711 = vrot.lane.b32.xlu0 %v631, 64
    %v712 = vpop.permute.xlu0 %711
    %v714 = vsel %vm104, %v708, %v712
    %v715 = vpack.c.bf16 %v714, %v714
    %v717 = vsel %vm258, %v715, 0
    %719 = vmatprep.subr.bf16.mxu0 0
    %720 = vmatpush1.bf16.msra.mxu0 0
    %721 = vmatprep.subr.bf16.mxu0 0
    %722 = vmatpush1.bf16.msra.mxu0 0
    %723 = vmatprep.subr.bf16.mxu0 0
    %724 = vmatpush1.bf16.msra.mxu0 0
    %725 = vmatprep.subr.bf16.mxu0 0
    %726 = vmatpush1.bf16.msra.mxu0 0
    %727 = vmatprep.subr.bf16.mxu0 0
    %728 = vmatpush1.bf16.msra.mxu0 %v253
    %729 = vmatprep.subr.bf16.mxu0 0
    %730 = vmatpush1.bf16.msra.mxu0 %v252
    %731 = vmatprep.subr.bf16.mxu0 0
    %732 = vmatpush1.bf16.msra.mxu0 %v251
    %733 = vmatprep.subr.bf16.mxu0 0
    %734 = vmatpush1.bf16.msra.mxu0 %v250
    %735 = vmatprep.subr.bf16.mxu0 0
    %736 = vmatpush2.bf16.msra.mxu0 0
    %737 = vmatprep.subr.bf16.mxu0 0
    %738 = vmatpush2.bf16.msra.mxu0 0
    %739 = vmatprep.subr.bf16.mxu0 0
    %740 = vmatpush2.bf16.msra.mxu0 0
    %741 = vmatprep.subr.bf16.mxu0 0
    %742 = vmatpush2.bf16.msra.mxu0 0
    %743 = vmatprep.subr.bf16.mxu0 0
    %744 = vmatpush2.bf16.msra.mxu0 0
    %745 = vmatprep.subr.bf16.mxu0 0
    %746 = vmatpush2.bf16.msra.mxu0 0
    %747 = vmatprep.subr.bf16.mxu0 0
    %748 = vmatpush2.bf16.msra.mxu0 0
    %749 = vmatprep.subr.bf16.mxu0 0
    %750 = vmatpush2.bf16.msra.mxu0 0
    %751 = vmatprep.mubr.bf16.mxu0 0
    %752 = vmatmul.mubr.bf16.gmra.mxu0 %v717
    %v753 = vpop.f32.mrf.mxu0
    %v754 = vadd.f32 %v61, %v753
    %v755 = vpop.f32.mrf.mxu0
    %v756 = vpop.f32.mrf.mxu0
    %v757 = vpop.f32.mrf.mxu0
    %758 = vdwg.mxu0
    %v759 = vxor.u32 %v754, 2147483648
    %v760 = vmul.f32 %v759, 1.442695
    %v761 = vpow.pop %v760
    %v762 = vadd.f32 %v761, 1.0
    %v763 = vrcp.pop %v762
    %v764 = vmul.f32 1.0, %v763
    %v765 = vmul.f32 %v764, %v625
    %v766 = vmul.f32 %v764, 2.0
    %v767 = vsub.f32 %v766, 1.0
    %769 = vrot.lane.b32.xlu0 %v767, 64
    %v770 = vpop.permute.xlu0 %769
    %v772 = vmul.f32 %v764, %v770
    %774 = vrot.lane.b32.xlu0 %v772, 32
    %v775 = vpop.permute.xlu0 %774
    %v777 = vadd.f32 %v765, %v775
    %v778 = vtanh.pop %v777
    %780 = vrot.lane.b32.xlu0 %v778, 64
    %v781 = vpop.permute.xlu0 %780
    %v783 = vmul.f32 %v764, %v781
    %v784 = vpack.c.bf16 %v705, %v705
    %786 = vrot.lane.b32.xlu0 %v784, 32
    %v787 = vpop.permute.xlu0 %786
    %v788 = vrot.slane %v143, 4
    %v791 = vsel %vm104, %v787, 0
    %793 = vmatprep.subr.bf16.mxu0 0
    %794 = vmatpush1.bf16.msra.mxu0 0
    %795 = vmatprep.subr.bf16.mxu0 0
    %796 = vmatpush1.bf16.msra.mxu0 0
    %797 = vmatprep.subr.bf16.mxu0 0
    %798 = vmatpush1.bf16.msra.mxu0 0
    %799 = vmatprep.subr.bf16.mxu0 0
    %800 = vmatpush1.bf16.msra.mxu0 0
    %801 = vmatprep.subr.bf16.mxu0 0
    %802 = vmatpush1.bf16.msra.mxu0 0
    %803 = vmatprep.subr.bf16.mxu0 0
    %804 = vmatpush1.bf16.msra.mxu0 0
    %805 = vmatprep.subr.bf16.mxu0 0
    %806 = vmatpush1.bf16.msra.mxu0 %v157
    %807 = vmatprep.subr.bf16.mxu0 0
    %808 = vmatpush1.bf16.msra.mxu0 %v156
    %809 = vmatprep.subr.bf16.mxu0 0
    %810 = vmatpush2.bf16.msra.mxu0 0
    %811 = vmatprep.subr.bf16.mxu0 0
    %812 = vmatpush2.bf16.msra.mxu0 0
    %813 = vmatprep.subr.bf16.mxu0 0
    %814 = vmatpush2.bf16.msra.mxu0 0
    %815 = vmatprep.subr.bf16.mxu0 0
    %816 = vmatpush2.bf16.msra.mxu0 0
    %817 = vmatprep.subr.bf16.mxu0 0
    %818 = vmatpush2.bf16.msra.mxu0 0
    %819 = vmatprep.subr.bf16.mxu0 0
    %820 = vmatpush2.bf16.msra.mxu0 0
    %821 = vmatprep.subr.bf16.mxu0 0
    %822 = vmatpush2.bf16.msra.mxu0 0
    %823 = vmatprep.subr.bf16.mxu0 0
    %824 = vmatpush2.bf16.msra.mxu0 0
    %825 = vmatprep.mubr.bf16.mxu0 0
    %826 = vmatmul.mubr.bf16.gmra.mxu0 %v791
    %v827 = vpop.f32.mrf.mxu0
    %v828 = vadd.f32 %v788, %v827
    %v829 = vpop.f32.mrf.mxu0
    %v830 = vpop.f32.mrf.mxu0
    %v831 = vpop.f32.mrf.mxu0
    %832 = vdwg.mxu0
    %v833 = vxor.u32 %v828, 2147483648
    %v834 = vmul.f32 %v833, 1.442695
    %v835 = vpow.pop %v834
    %v836 = vadd.f32 %v835, 1.0
    %v837 = vrcp.pop %v836
    %v838 = vmul.f32 1.0, %v837
    %v839 = vmul.f32 %v838, %v699
    %v840 = vmul.f32 %v838, 2.0
    %v841 = vsub.f32 %v840, 1.0
    %843 = vrot.lane.b32.xlu0 %v841, 64
    %v844 = vpop.permute.xlu0 %843
    %v846 = vmul.f32 %v838, %v844
    %848 = vrot.lane.b32.xlu0 %v846, 32
    %v849 = vpop.permute.xlu0 %848
    %v851 = vadd.f32 %v839, %v849
    %v852 = vtanh.pop %v851
    %854 = vrot.lane.b32.xlu0 %v852, 64
    %v855 = vpop.permute.xlu0 %854
    %v857 = vmul.f32 %v838, %v855
    %859 = vrot.lane.b32.xlu0 %v857, 32
    %v860 = vpop.permute.xlu0 %859
    %863 = vrot.lane.b32.xlu0 %v783, 64
    %v864 = vpop.permute.xlu0 %863
    %v866 = vsel %vm104, %v860, %v864
    %v867 = vpack.c.bf16 %v866, %v866
    %v869 = vsel %vm258, %v867, 0
    %871 = vmatprep.subr.bf16.mxu0 0
    %872 = vmatpush1.bf16.msra.mxu0 0
    %873 = vmatprep.subr.bf16.mxu0 0
    %874 = vmatpush1.bf16.msra.mxu0 0
    %875 = vmatprep.subr.bf16.mxu0 0
    %876 = vmatpush1.bf16.msra.mxu0 0
    %877 = vmatprep.subr.bf16.mxu0 0
    %878 = vmatpush1.bf16.msra.mxu0 0
    %879 = vmatprep.subr.bf16.mxu0 0
    %880 = vmatpush1.bf16.msra.mxu0 %v253
    %881 = vmatprep.subr.bf16.mxu0 0
    %882 = vmatpush1.bf16.msra.mxu0 %v252
    %883 = vmatprep.subr.bf16.mxu0 0
    %884 = vmatpush1.bf16.msra.mxu0 %v251
    %885 = vmatprep.subr.bf16.mxu0 0
    %886 = vmatpush1.bf16.msra.mxu0 %v250
    %887 = vmatprep.subr.bf16.mxu0 0
    %888 = vmatpush2.bf16.msra.mxu0 0
    %889 = vmatprep.subr.bf16.mxu0 0
    %890 = vmatpush2.bf16.msra.mxu0 0
    %891 = vmatprep.subr.bf16.mxu0 0
    %892 = vmatpush2.bf16.msra.mxu0 0
    %893 = vmatprep.subr.bf16.mxu0 0
    %894 = vmatpush2.bf16.msra.mxu0 0
    %895 = vmatprep.subr.bf16.mxu0 0
    %896 = vmatpush2.bf16.msra.mxu0 0
    %897 = vmatprep.subr.bf16.mxu0 0
    %898 = vmatpush2.bf16.msra.mxu0 0
    %899 = vmatprep.subr.bf16.mxu0 0
    %900 = vmatpush2.bf16.msra.mxu0 0
    %901 = vmatprep.subr.bf16.mxu0 0
    %902 = vmatpush2.bf16.msra.mxu0 0
    %903 = vmatprep.mubr.bf16.mxu0 0
    %904 = vmatmul.mubr.bf16.gmra.mxu0 %v869
    %v905 = vpop.f32.mrf.mxu0
    %v906 = vadd.f32 %v61, %v905
    %v907 = vpop.f32.mrf.mxu0
    %v908 = vpop.f32.mrf.mxu0
    %v909 = vpop.f32.mrf.mxu0
    %910 = vdwg.mxu0
    %v911 = vxor.u32 %v906, 2147483648
    %v912 = vmul.f32 %v911, 1.442695
    %v913 = vpow.pop %v912
    %v914 = vadd.f32 %v913, 1.0
    %v915 = vrcp.pop %v914
    %v916 = vmul.f32 1.0, %v915
    %v917 = vmul.f32 %v916, %v777
    %v918 = vmul.f32 %v916, 2.0
    %v919 = vsub.f32 %v918, 1.0
    %921 = vrot.lane.b32.xlu0 %v919, 64
    %v922 = vpop.permute.xlu0 %921
    %v924 = vmul.f32 %v916, %v922
    %926 = vrot.lane.b32.xlu0 %v924, 32
    %v927 = vpop.permute.xlu0 %926
    %v929 = vadd.f32 %v917, %v927
    %v930 = vtanh.pop %v929
    %932 = vrot.lane.b32.xlu0 %v930, 64
    %v933 = vpop.permute.xlu0 %932
    %v935 = vmul.f32 %v916, %v933
    %v936 = vpack.c.bf16 %v857, %v857
    %938 = vrot.lane.b32.xlu0 %v936, 32
    %v939 = vpop.permute.xlu0 %938
    %v940 = vrot.slane %v143, 5
    %v943 = vsel %vm104, %v939, 0
    %945 = vmatprep.subr.bf16.mxu0 0
    %946 = vmatpush1.bf16.msra.mxu0 0
    %947 = vmatprep.subr.bf16.mxu0 0
    %948 = vmatpush1.bf16.msra.mxu0 0
    %949 = vmatprep.subr.bf16.mxu0 0
    %950 = vmatpush1.bf16.msra.mxu0 0
    %951 = vmatprep.subr.bf16.mxu0 0
    %952 = vmatpush1.bf16.msra.mxu0 0
    %953 = vmatprep.subr.bf16.mxu0 0
    %954 = vmatpush1.bf16.msra.mxu0 0
    %955 = vmatprep.subr.bf16.mxu0 0
    %956 = vmatpush1.bf16.msra.mxu0 0
    %957 = vmatprep.subr.bf16.mxu0 0
    %958 = vmatpush1.bf16.msra.mxu0 %v157
    %959 = vmatprep.subr.bf16.mxu0 0
    %960 = vmatpush1.bf16.msra.mxu0 %v156
    %961 = vmatprep.subr.bf16.mxu0 0
    %962 = vmatpush2.bf16.msra.mxu0 0
    %963 = vmatprep.subr.bf16.mxu0 0
    %964 = vmatpush2.bf16.msra.mxu0 0
    %965 = vmatprep.subr.bf16.mxu0 0
    %966 = vmatpush2.bf16.msra.mxu0 0
    %967 = vmatprep.subr.bf16.mxu0 0
    %968 = vmatpush2.bf16.msra.mxu0 0
    %969 = vmatprep.subr.bf16.mxu0 0
    %970 = vmatpush2.bf16.msra.mxu0 0
    %971 = vmatprep.subr.bf16.mxu0 0
    %972 = vmatpush2.bf16.msra.mxu0 0
    %973 = vmatprep.subr.bf16.mxu0 0
    %974 = vmatpush2.bf16.msra.mxu0 0
    %975 = vmatprep.subr.bf16.mxu0 0
    %976 = vmatpush2.bf16.msra.mxu0 0
    %977 = vmatprep.mubr.bf16.mxu0 0
    %978 = vmatmul.mubr.bf16.gmra.mxu0 %v943
    %v979 = vpop.f32.mrf.mxu0
    %v980 = vadd.f32 %v940, %v979
    %v981 = vpop.f32.mrf.mxu0
    %v982 = vpop.f32.mrf.mxu0
    %v983 = vpop.f32.mrf.mxu0
    %984 = vdwg.mxu0
    %v985 = vxor.u32 %v980, 2147483648
    %v986 = vmul.f32 %v985, 1.442695
    %v987 = vpow.pop %v986
    %v988 = vadd.f32 %v987, 1.0
    %v989 = vrcp.pop %v988
    %v990 = vmul.f32 1.0, %v989
    %v991 = vmul.f32 %v990, %v851
    %v992 = vmul.f32 %v990, 2.0
    %v993 = vsub.f32 %v992, 1.0
    %995 = vrot.lane.b32.xlu0 %v993, 64
    %v996 = vpop.permute.xlu0 %995
    %v998 = vmul.f32 %v990, %v996
    %1000 = vrot.lane.b32.xlu0 %v998, 32
    %v1001 = vpop.permute.xlu0 %1000
    %v1003 = vadd.f32 %v991, %v1001
    %v1004 = vtanh.pop %v1003
    %1006 = vrot.lane.b32.xlu0 %v1004, 64
    %v1007 = vpop.permute.xlu0 %1006
    %v1009 = vmul.f32 %v990, %v1007
    %1011 = vrot.lane.b32.xlu0 %v1009, 32
    %v1012 = vpop.permute.xlu0 %1011
    %1015 = vrot.lane.b32.xlu0 %v935, 64
    %v1016 = vpop.permute.xlu0 %1015
    %v1018 = vsel %vm104, %v1012, %v1016
    %v1019 = vpack.c.bf16 %v1018, %v1018
    %v1021 = vsel %vm258, %v1019, 0
    %1023 = vmatprep.subr.bf16.mxu0 0
    %1024 = vmatpush1.bf16.msra.mxu0 0
    %1025 = vmatprep.subr.bf16.mxu0 0
    %1026 = vmatpush1.bf16.msra.mxu0 0
    %1027 = vmatprep.subr.bf16.mxu0 0
    %1028 = vmatpush1.bf16.msra.mxu0 0
    %1029 = vmatprep.subr.bf16.mxu0 0
    %1030 = vmatpush1.bf16.msra.mxu0 0
    %1031 = vmatprep.subr.bf16.mxu0 0
    %1032 = vmatpush1.bf16.msra.mxu0 %v253
    %1033 = vmatprep.subr.bf16.mxu0 0
    %1034 = vmatpush1.bf16.msra.mxu0 %v252
    %1035 = vmatprep.subr.bf16.mxu0 0
    %1036 = vmatpush1.bf16.msra.mxu0 %v251
    %1037 = vmatprep.subr.bf16.mxu0 0
    %1038 = vmatpush1.bf16.msra.mxu0 %v250
    %1039 = vmatprep.subr.bf16.mxu0 0
    %1040 = vmatpush2.bf16.msra.mxu0 0
    %1041 = vmatprep.subr.bf16.mxu0 0
    %1042 = vmatpush2.bf16.msra.mxu0 0
    %1043 = vmatprep.subr.bf16.mxu0 0
    %1044 = vmatpush2.bf16.msra.mxu0 0
    %1045 = vmatprep.subr.bf16.mxu0 0
    %1046 = vmatpush2.bf16.msra.mxu0 0
    %1047 = vmatprep.subr.bf16.mxu0 0
    %1048 = vmatpush2.bf16.msra.mxu0 0
    %1049 = vmatprep.subr.bf16.mxu0 0
    %1050 = vmatpush2.bf16.msra.mxu0 0
    %1051 = vmatprep.subr.bf16.mxu0 0
    %1052 = vmatpush2.bf16.msra.mxu0 0
    %1053 = vmatprep.subr.bf16.mxu0 0
    %1054 = vmatpush2.bf16.msra.mxu0 0
    %1055 = vmatprep.mubr.bf16.mxu0 0
    %1056 = vmatmul.mubr.bf16.gmra.mxu0 %v1021
    %v1057 = vpop.f32.mrf.mxu0
    %v1058 = vadd.f32 %v61, %v1057
    %v1059 = vpop.f32.mrf.mxu0
    %v1060 = vpop.f32.mrf.mxu0
    %v1061 = vpop.f32.mrf.mxu0
    %1062 = vdwg.mxu0
    %v1063 = vxor.u32 %v1058, 2147483648
    %v1064 = vmul.f32 %v1063, 1.442695
    %v1065 = vpow.pop %v1064
    %v1066 = vadd.f32 %v1065, 1.0
    %v1067 = vrcp.pop %v1066
    %v1068 = vmul.f32 1.0, %v1067
    %v1069 = vmul.f32 %v1068, %v929
    %v1070 = vmul.f32 %v1068, 2.0
    %v1071 = vsub.f32 %v1070, 1.0
    %1073 = vrot.lane.b32.xlu0 %v1071, 64
    %v1074 = vpop.permute.xlu0 %1073
    %v1076 = vmul.f32 %v1068, %v1074
    %1078 = vrot.lane.b32.xlu0 %v1076, 32
    %v1079 = vpop.permute.xlu0 %1078
    %v1081 = vadd.f32 %v1069, %v1079
    %v1082 = vtanh.pop %v1081
    %1084 = vrot.lane.b32.xlu0 %v1082, 64
    %v1085 = vpop.permute.xlu0 %1084
    %v1087 = vmul.f32 %v1068, %v1085
    %v1088 = vpack.c.bf16 %v1009, %v1009
    %1090 = vrot.lane.b32.xlu0 %v1088, 32
    %v1091 = vpop.permute.xlu0 %1090
    %v1092 = vrot.slane %v143, 6
    %v1095 = vsel %vm104, %v1091, 0
    %1097 = vmatprep.subr.bf16.mxu0 0
    %1098 = vmatpush1.bf16.msra.mxu0 0
    %1099 = vmatprep.subr.bf16.mxu0 0
    %1100 = vmatpush1.bf16.msra.mxu0 0
    %1101 = vmatprep.subr.bf16.mxu0 0
    %1102 = vmatpush1.bf16.msra.mxu0 0
    %1103 = vmatprep.subr.bf16.mxu0 0
    %1104 = vmatpush1.bf16.msra.mxu0 0
    %1105 = vmatprep.subr.bf16.mxu0 0
    %1106 = vmatpush1.bf16.msra.mxu0 0
    %1107 = vmatprep.subr.bf16.mxu0 0
    %1108 = vmatpush1.bf16.msra.mxu0 0
    %1109 = vmatprep.subr.bf16.mxu0 0
    %1110 = vmatpush1.bf16.msra.mxu0 %v157
    %1111 = vmatprep.subr.bf16.mxu0 0
    %1112 = vmatpush1.bf16.msra.mxu0 %v156
    %1113 = vmatprep.subr.bf16.mxu0 0
    %1114 = vmatpush2.bf16.msra.mxu0 0
    %1115 = vmatprep.subr.bf16.mxu0 0
    %1116 = vmatpush2.bf16.msra.mxu0 0
    %1117 = vmatprep.subr.bf16.mxu0 0
    %1118 = vmatpush2.bf16.msra.mxu0 0
    %1119 = vmatprep.subr.bf16.mxu0 0
    %1120 = vmatpush2.bf16.msra.mxu0 0
    %1121 = vmatprep.subr.bf16.mxu0 0
    %1122 = vmatpush2.bf16.msra.mxu0 0
    %1123 = vmatprep.subr.bf16.mxu0 0
    %1124 = vmatpush2.bf16.msra.mxu0 0
    %1125 = vmatprep.subr.bf16.mxu0 0
    %1126 = vmatpush2.bf16.msra.mxu0 0
    %1127 = vmatprep.subr.bf16.mxu0 0
    %1128 = vmatpush2.bf16.msra.mxu0 0
    %1129 = vmatprep.mubr.bf16.mxu0 0
    %1130 = vmatmul.mubr.bf16.gmra.mxu0 %v1095
    %v1131 = vpop.f32.mrf.mxu0
    %v1132 = vadd.f32 %v1092, %v1131
    %v1133 = vpop.f32.mrf.mxu0
    %v1134 = vpop.f32.mrf.mxu0
    %v1135 = vpop.f32.mrf.mxu0
    %1136 = vdwg.mxu0
    %v1137 = vxor.u32 %v1132, 2147483648
    %v1138 = vmul.f32 %v1137, 1.442695
    %v1139 = vpow.pop %v1138
    %v1140 = vadd.f32 %v1139, 1.0
    %v1141 = vrcp.pop %v1140
    %v1142 = vmul.f32 1.0, %v1141
    %v1143 = vmul.f32 %v1142, %v1003
    %v1144 = vmul.f32 %v1142, 2.0
    %v1145 = vsub.f32 %v1144, 1.0
    %1147 = vrot.lane.b32.xlu0 %v1145, 64
    %v1148 = vpop.permute.xlu0 %1147
    %v1150 = vmul.f32 %v1142, %v1148
    %1152 = vrot.lane.b32.xlu0 %v1150, 32
    %v1153 = vpop.permute.xlu0 %1152
    %v1155 = vadd.f32 %v1143, %v1153
    %v1156 = vtanh.pop %v1155
    %1158 = vrot.lane.b32.xlu0 %v1156, 64
    %v1159 = vpop.permute.xlu0 %1158
    %v1161 = vmul.f32 %v1142, %v1159
    %1163 = vrot.lane.b32.xlu0 %v1161, 32
    %v1164 = vpop.permute.xlu0 %1163
    %1167 = vrot.lane.b32.xlu0 %v1087, 64
    %v1168 = vpop.permute.xlu0 %1167
    %v1170 = vsel %vm104, %v1164, %v1168
    %v1171 = vpack.c.bf16 %v1170, %v1170
    %v1173 = vsel %vm258, %v1171, 0
    %1175 = vmatprep.subr.bf16.mxu0 0
    %1176 = vmatpush1.bf16.msra.mxu0 0
    %1177 = vmatprep.subr.bf16.mxu0 0
    %1178 = vmatpush1.bf16.msra.mxu0 0
    %1179 = vmatprep.subr.bf16.mxu0 0
    %1180 = vmatpush1.bf16.msra.mxu0 0
    %1181 = vmatprep.subr.bf16.mxu0 0
    %1182 = vmatpush1.bf16.msra.mxu0 0
    %1183 = vmatprep.subr.bf16.mxu0 0
    %1184 = vmatpush1.bf16.msra.mxu0 %v253
    %1185 = vmatprep.subr.bf16.mxu0 0
    %1186 = vmatpush1.bf16.msra.mxu0 %v252
    %1187 = vmatprep.subr.bf16.mxu0 0
    %1188 = vmatpush1.bf16.msra.mxu0 %v251
    %1189 = vmatprep.subr.bf16.mxu0 0
    %1190 = vmatpush1.bf16.msra.mxu0 %v250
    %1191 = vmatprep.subr.bf16.mxu0 0
    %1192 = vmatpush2.bf16.msra.mxu0 0
    %1193 = vmatprep.subr.bf16.mxu0 0
    %1194 = vmatpush2.bf16.msra.mxu0 0
    %1195 = vmatprep.subr.bf16.mxu0 0
    %1196 = vmatpush2.bf16.msra.mxu0 0
    %1197 = vmatprep.subr.bf16.mxu0 0
    %1198 = vmatpush2.bf16.msra.mxu0 0
    %1199 = vmatprep.subr.bf16.mxu0 0
    %1200 = vmatpush2.bf16.msra.mxu0 0
    %1201 = vmatprep.subr.bf16.mxu0 0
    %1202 = vmatpush2.bf16.msra.mxu0 0
    %1203 = vmatprep.subr.bf16.mxu0 0
    %1204 = vmatpush2.bf16.msra.mxu0 0
    %1205 = vmatprep.subr.bf16.mxu0 0
    %1206 = vmatpush2.bf16.msra.mxu0 0
    %1207 = vmatprep.mubr.bf16.mxu0 0
    %1208 = vmatmul.mubr.bf16.gmra.mxu0 %v1173
    %v1209 = vpop.f32.mrf.mxu0
    %v1210 = vadd.f32 %v61, %v1209
    %v1211 = vpop.f32.mrf.mxu0
    %v1212 = vpop.f32.mrf.mxu0
    %v1213 = vpop.f32.mrf.mxu0
    %1214 = vdwg.mxu0
    %v1215 = vxor.u32 %v1210, 2147483648
    %v1216 = vmul.f32 %v1215, 1.442695
    %v1217 = vpow.pop %v1216
    %v1218 = vadd.f32 %v1217, 1.0
    %v1219 = vrcp.pop %v1218
    %v1220 = vmul.f32 1.0, %v1219
    %v1221 = vmul.f32 %v1220, %v1081
    %v1222 = vmul.f32 %v1220, 2.0
    %v1223 = vsub.f32 %v1222, 1.0
    %1225 = vrot.lane.b32.xlu0 %v1223, 64
    %v1226 = vpop.permute.xlu0 %1225
    %v1228 = vmul.f32 %v1220, %v1226
    %1230 = vrot.lane.b32.xlu0 %v1228, 32
    %v1231 = vpop.permute.xlu0 %1230
    %v1233 = vadd.f32 %v1221, %v1231
    %v1234 = vtanh.pop %v1233
    %1236 = vrot.lane.b32.xlu0 %v1234, 64
    %v1237 = vpop.permute.xlu0 %1236
    %v1239 = vmul.f32 %v1220, %v1237
    %v1240 = vpack.c.bf16 %v1161, %v1161
    %1242 = vrot.lane.b32.xlu0 %v1240, 32
    %v1243 = vpop.permute.xlu0 %1242
    %v1244 = vrot.slane %v143, 7
    %v1247 = vsel %vm104, %v1243, 0
    %1249 = vmatprep.subr.bf16.mxu0 0
    %1250 = vmatpush1.bf16.msra.mxu0 0
    %1251 = vmatprep.subr.bf16.mxu0 0
    %1252 = vmatpush1.bf16.msra.mxu0 0
    %1253 = vmatprep.subr.bf16.mxu0 0
    %1254 = vmatpush1.bf16.msra.mxu0 0
    %1255 = vmatprep.subr.bf16.mxu0 0
    %1256 = vmatpush1.bf16.msra.mxu0 0
    %1257 = vmatprep.subr.bf16.mxu0 0
    %1258 = vmatpush1.bf16.msra.mxu0 0
    %1259 = vmatprep.subr.bf16.mxu0 0
    %1260 = vmatpush1.bf16.msra.mxu0 0
    %1261 = vmatprep.subr.bf16.mxu0 0
    %1262 = vmatpush1.bf16.msra.mxu0 %v157
    %1263 = vmatprep.subr.bf16.mxu0 0
    %1264 = vmatpush1.bf16.msra.mxu0 %v156
    %1265 = vmatprep.subr.bf16.mxu0 0
    %1266 = vmatpush2.bf16.msra.mxu0 0
    %1267 = vmatprep.subr.bf16.mxu0 0
    %1268 = vmatpush2.bf16.msra.mxu0 0
    %1269 = vmatprep.subr.bf16.mxu0 0
    %1270 = vmatpush2.bf16.msra.mxu0 0
    %1271 = vmatprep.subr.bf16.mxu0 0
    %1272 = vmatpush2.bf16.msra.mxu0 0
    %1273 = vmatprep.subr.bf16.mxu0 0
    %1274 = vmatpush2.bf16.msra.mxu0 0
    %1275 = vmatprep.subr.bf16.mxu0 0
    %1276 = vmatpush2.bf16.msra.mxu0 0
    %1277 = vmatprep.subr.bf16.mxu0 0
    %1278 = vmatpush2.bf16.msra.mxu0 0
    %1279 = vmatprep.subr.bf16.mxu0 0
    %1280 = vmatpush2.bf16.msra.mxu0 0
    %1281 = vmatprep.mubr.bf16.mxu0 0
    %1282 = vmatmul.mubr.bf16.gmra.mxu0 %v1247
    %v1283 = vpop.f32.mrf.mxu0
    %v1284 = vadd.f32 %v1244, %v1283
    %v1285 = vpop.f32.mrf.mxu0
    %v1286 = vpop.f32.mrf.mxu0
    %v1287 = vpop.f32.mrf.mxu0
    %1288 = vdwg.mxu0
    %v1289 = vxor.u32 %v1284, 2147483648
    %v1290 = vmul.f32 %v1289, 1.442695
    %v1291 = vpow.pop %v1290
    %v1292 = vadd.f32 %v1291, 1.0
    %v1293 = vrcp.pop %v1292
    %v1294 = vmul.f32 1.0, %v1293
    %v1295 = vmul.f32 %v1294, %v1155
    %v1296 = vmul.f32 %v1294, 2.0
    %v1297 = vsub.f32 %v1296, 1.0
    %1299 = vrot.lane.b32.xlu0 %v1297, 64
    %v1300 = vpop.permute.xlu0 %1299
    %v1302 = vmul.f32 %v1294, %v1300
    %1304 = vrot.lane.b32.xlu0 %v1302, 32
    %v1305 = vpop.permute.xlu0 %1304
    %v1307 = vadd.f32 %v1295, %v1305
    %v1308 = vtanh.pop %v1307
    %1310 = vrot.lane.b32.xlu0 %v1308, 64
    %v1311 = vpop.permute.xlu0 %1310
    %v1313 = vmul.f32 %v1294, %v1311
    %1315 = vrot.lane.b32.xlu0 %v1313, 32
    %v1316 = vpop.permute.xlu0 %1315
    %1319 = vrot.lane.b32.xlu0 %v1239, 64
    %v1320 = vpop.permute.xlu0 %1319
    %v1322 = vsel %vm104, %v1316, %v1320
    %v1323 = vpack.c.bf16 %v1322, %v1322
    %v1325 = vsel %vm258, %v1323, 0
    %1327 = vmatprep.subr.bf16.mxu0 0
    %1328 = vmatpush1.bf16.msra.mxu0 0
    %1329 = vmatprep.subr.bf16.mxu0 0
    %1330 = vmatpush1.bf16.msra.mxu0 0
    %1331 = vmatprep.subr.bf16.mxu0 0
    %1332 = vmatpush1.bf16.msra.mxu0 0
    %1333 = vmatprep.subr.bf16.mxu0 0
    %1334 = vmatpush1.bf16.msra.mxu0 0
    %1335 = vmatprep.subr.bf16.mxu0 0
    %1336 = vmatpush1.bf16.msra.mxu0 %v253
    %1337 = vmatprep.subr.bf16.mxu0 0
    %1338 = vmatpush1.bf16.msra.mxu0 %v252
    %1339 = vmatprep.subr.bf16.mxu0 0
    %1340 = vmatpush1.bf16.msra.mxu0 %v251
    %1341 = vmatprep.subr.bf16.mxu0 0
    %1342 = vmatpush1.bf16.msra.mxu0 %v250
    %1343 = vmatprep.subr.bf16.mxu0 0
    %1344 = vmatpush2.bf16.msra.mxu0 0
    %1345 = vmatprep.subr.bf16.mxu0 0
    %1346 = vmatpush2.bf16.msra.mxu0 0
    %1347 = vmatprep.subr.bf16.mxu0 0
    %1348 = vmatpush2.bf16.msra.mxu0 0
    %1349 = vmatprep.subr.bf16.mxu0 0
    %1350 = vmatpush2.bf16.msra.mxu0 0
    %1351 = vmatprep.subr.bf16.mxu0 0
    %1352 = vmatpush2.bf16.msra.mxu0 0
    %1353 = vmatprep.subr.bf16.mxu0 0
    %1354 = vmatpush2.bf16.msra.mxu0 0
    %1355 = vmatprep.subr.bf16.mxu0 0
    %1356 = vmatpush2.bf16.msra.mxu0 0
    %1357 = vmatprep.subr.bf16.mxu0 0
    %1358 = vmatpush2.bf16.msra.mxu0 0
    %1359 = vmatprep.mubr.bf16.mxu0 0
    %1360 = vmatmul.mubr.bf16.gmra.mxu0 %v1325
    %v1361 = vpop.f32.mrf.mxu0
    %v1362 = vadd.f32 %v61, %v1361
    %v1363 = vpop.f32.mrf.mxu0
    %v1364 = vpop.f32.mrf.mxu0
    %v1365 = vpop.f32.mrf.mxu0
    %1366 = vdwg.mxu0
    %v1367 = vxor.u32 %v1362, 2147483648
    %v1368 = vmul.f32 %v1367, 1.442695
    %v1369 = vpow.pop %v1368
    %v1370 = vadd.f32 %v1369, 1.0
    %v1371 = vrcp.pop %v1370
    %v1372 = vmul.f32 1.0, %v1371
    %v1373 = vmul.f32 %v1372, %v1233
    %v1374 = vmul.f32 %v1372, 2.0
    %v1375 = vsub.f32 %v1374, 1.0
    %1377 = vrot.lane.b32.xlu0 %v1375, 64
    %v1378 = vpop.permute.xlu0 %1377
    %v1380 = vmul.f32 %v1372, %v1378
    %1382 = vrot.lane.b32.xlu0 %v1380, 32
    %v1383 = vpop.permute.xlu0 %1382
    %v1385 = vadd.f32 %v1373, %v1383
    %v1386 = vtanh.pop %v1385
    %1388 = vrot.lane.b32.xlu0 %v1386, 64
    %v1389 = vpop.permute.xlu0 %1388
    %v1391 = vmul.f32 %v1372, %v1389
    %v1393 = vrot.slane %v1391, 7
    %vm1395 = vcmask 1040384
    %v1396 = vsel %vm1395, %v1313, %v1393
    %v1397 = vpack.c.bf16 %v1396, %v1396
    %v1399 = vlaneseq
    %v1400 = vshrl.u32 %v1399, 7
    %v1401 = vsub.s32 0, %v1400
    %v1402 = vrot.slane %v85, %v1401
    %1405 = vrot.lane.b32.xlu0 %v1397, 32
    %v1406 = vpop.permute.xlu0 %1405
    %v1411 = vunpack.c.l.b16 %v81
    %v1412 = vunpack.c.l.b16 %v82
    %v1413 = vunpack.c.l.b16 %v83
    %v1414 = vunpack.c.l.b16 %v84
    %v1415 = vpack.c.b16 %v1412, %v1411
    %v1416 = vpack.c.b16 %v1414, %v1413
    %v1420 = vsel %vm104, %v1406, 0
    %1422 = vmatprep.subr.bf16.mxu0 0
    %1423 = vmatpush1.bf16.msra.mxu0 0
    %1424 = vmatprep.subr.bf16.mxu0 0
    %1425 = vmatpush1.bf16.msra.mxu0 0
    %1426 = vmatprep.subr.bf16.mxu0 0
    %1427 = vmatpush1.bf16.msra.mxu0 0
    %1428 = vmatprep.subr.bf16.mxu0 0
    %1429 = vmatpush1.bf16.msra.mxu0 0
    %1430 = vmatprep.subr.bf16.mxu0 0
    %1431 = vmatpush1.bf16.msra.mxu0 0
    %1432 = vmatprep.subr.bf16.mxu0 0
    %1433 = vmatpush1.bf16.msra.mxu0 0
    %1434 = vmatprep.subr.bf16.mxu0 0
    %1435 = vmatpush1.bf16.msra.mxu0 %v1416
    %1436 = vmatprep.subr.bf16.mxu0 0
    %1437 = vmatpush1.bf16.msra.mxu0 %v1415
    %1438 = vmatprep.subr.bf16.mxu0 0
    %1439 = vmatpush2.bf16.msra.mxu0 0
    %1440 = vmatprep.subr.bf16.mxu0 0
    %1441 = vmatpush2.bf16.msra.mxu0 0
    %1442 = vmatprep.subr.bf16.mxu0 0
    %1443 = vmatpush2.bf16.msra.mxu0 0
    %1444 = vmatprep.subr.bf16.mxu0 0
    %1445 = vmatpush2.bf16.msra.mxu0 0
    %1446 = vmatprep.subr.bf16.mxu0 0
    %1447 = vmatpush2.bf16.msra.mxu0 0
    %1448 = vmatprep.subr.bf16.mxu0 0
    %1449 = vmatpush2.bf16.msra.mxu0 0
    %1450 = vmatprep.subr.bf16.mxu0 0
    %1451 = vmatpush2.bf16.msra.mxu0 0
    %1452 = vmatprep.subr.bf16.mxu0 0
    %1453 = vmatpush2.bf16.msra.mxu0 0
    %1454 = vmatprep.mubr.bf16.mxu0 0
    %1455 = vmatmul.mubr.bf16.gmra.mxu0 %v1420
    %v1456 = vpop.f32.mrf.mxu0
    %v1457 = vadd.f32 %v1402, %v1456
    %v1458 = vpop.f32.mrf.mxu0
    %v1459 = vpop.f32.mrf.mxu0
    %v1460 = vpop.f32.mrf.mxu0
    %1461 = vdwg.mxu0
    %vm1462 = vcmp.gt.f32.partialorder %v1457, 20.0
    %v1463 = vmin.f32 %v1457, 20.0
    %v1464 = vmul.f32 %v1463, 1.442695
    %v1465 = vpow.pop %v1464
    %v1466 = vadd.f32 %v1465, 1.0
    %v1467 = vlog2.pop %v1466
    %v1468 = vmul.f32 %v1467, 0.6931472
    %v1469 = vmul.f32 -0.5, %v1465
    %v1470 = vadd.f32 %v1469, 1.0
    %v1471 = vmul.f32 %v1470, %v1465
    %v1472 = vand.u32 2147483647, %v1465
    %vm1473 = vcmp.lt.f32.partialorder %v1472, 0.0004427343
    %v1474 = vsel %vm1473, %v1471, %v1468
    %v1475 = vsel %vm1462, %v1457, %v1474
    %v1476 = vlog2.pop %v1475
    %v1477 = vmul.f32 %v1476, 0.6931472
    %vm1478 = vcmask 254976
    %1479 = vst.msk [vmem:[#allocation2] sm:$0x3] %vm1478, %v1457
    %1481 = vrot.lane.b32.xlu0 %v1477, 96
    %v1482 = vpop.permute.xlu0 %1481
    %1484 = vst.msk [vmem:[#allocation4] sm:$0x3] %vm1478, %v1482
    %v1485 = vmul.f32 %v1477, 0.5
    %v1486 = vmul.f32 %v1485, 1.442695
    %v1487 = vpow.pop %v1486
    %v1488 = vld [vmem:[%s1] sm:$0x3]
    %1490 = vrot.lane.b32.xlu0 %v1487, 96
    %v1491 = vpop.permute.xlu0 %1490
    %v1493 = vmul.f32 %v1488, %v1491
    %v1494 = vadd.f32 %v1457, %v1493
    %v1495 = vsel %vm104, %v1494, 0.0
    %v1496 = vpack.c.bf16 %v1495, %v1495
    %v1505 = vunpack.c.l.b16 %v62
    %v1506 = vunpack.c.l.b16 %v63
    %v1507 = vunpack.c.l.b16 %v64
    %v1508 = vunpack.c.l.b16 %v65
    %v1509 = vunpack.c.l.b16 %v66
    %v1510 = vunpack.c.l.b16 %v67
    %v1511 = vunpack.c.l.b16 %v68
    %v1512 = vunpack.c.l.b16 %v69
    %v1513 = vpack.c.b16 %v1506, %v1505
    %v1514 = vpack.c.b16 %v1508, %v1507
    %v1515 = vpack.c.b16 %v1510, %v1509
    %v1516 = vpack.c.b16 %v1512, %v1511
    %v1522 = vsel %vm258, %v1496, 0
    %1524 = vmatprep.subr.bf16.mxu0 0
    %1525 = vmatpush1.bf16.msra.mxu0 0
    %1526 = vmatprep.subr.bf16.mxu0 0
    %1527 = vmatpush1.bf16.msra.mxu0 0
    %1528 = vmatprep.subr.bf16.mxu0 0
    %1529 = vmatpush1.bf16.msra.mxu0 0
    %1530 = vmatprep.subr.bf16.mxu0 0
    %1531 = vmatpush1.bf16.msra.mxu0 0
    %1532 = vmatprep.subr.bf16.mxu0 0
    %1533 = vmatpush1.bf16.msra.mxu0 %v1516
    %1534 = vmatprep.subr.bf16.mxu0 0
    %1535 = vmatpush1.bf16.msra.mxu0 %v1515
    %1536 = vmatprep.subr.bf16.mxu0 0
    %1537 = vmatpush1.bf16.msra.mxu0 %v1514
    %1538 = vmatprep.subr.bf16.mxu0 0
    %1539 = vmatpush1.bf16.msra.mxu0 %v1513
    %1540 = vmatprep.subr.bf16.mxu0 0
    %1541 = vmatpush2.bf16.msra.mxu0 0
    %1542 = vmatprep.subr.bf16.mxu0 0
    %1543 = vmatpush2.bf16.msra.mxu0 0
    %1544 = vmatprep.subr.bf16.mxu0 0
    %1545 = vmatpush2.bf16.msra.mxu0 0
    %1546 = vmatprep.subr.bf16.mxu0 0
    %1547 = vmatpush2.bf16.msra.mxu0 0
    %1548 = vmatprep.subr.bf16.mxu0 0
    %1549 = vmatpush2.bf16.msra.mxu0 0
    %1550 = vmatprep.subr.bf16.mxu0 0
    %1551 = vmatpush2.bf16.msra.mxu0 0
    %1552 = vmatprep.subr.bf16.mxu0 0
    %1553 = vmatpush2.bf16.msra.mxu0 0
    %1554 = vmatprep.subr.bf16.mxu0 0
    %1555 = vmatpush2.bf16.msra.mxu0 0
    %1556 = vmatprep.mubr.bf16.mxu0 0
    %1557 = vmatmul.mubr.bf16.gmra.mxu0 %v1522
    %v1558 = vpop.f32.mrf.mxu0
    %v1559 = vadd.f32 %v78, %v1558
    %v1560 = vpop.f32.mrf.mxu0
    %v1561 = vpop.f32.mrf.mxu0
    %v1562 = vpop.f32.mrf.mxu0
    %1563 = vdwg.mxu0
    %v1564 = vxor.u32 %v1559, 2147483648
    %v1565 = vmul.f32 %v1564, 1.442695
    %v1566 = vpow.pop %v1565
    %v1567 = vadd.f32 %v1566, 1.0
    %v1568 = vrcp.pop %v1567
    %v1569 = vmul.f32 1.0, %v1568
    %v1570 = vmul.f32 %v1569, %v1307
    %v1571 = vmul.f32 %v1569, 2.0
    %v1572 = vsub.f32 %v1571, 1.0
    %1574 = vrot.lane.b32.xlu0 %v1572, 64
    %v1575 = vpop.permute.xlu0 %1574
    %v1577 = vmul.f32 %v1569, %v1575
    %1579 = vrot.lane.b32.xlu0 %v1577, 32
    %v1580 = vpop.permute.xlu0 %1579
    %v1582 = vadd.f32 %v1570, %v1580
    %v1583 = vtanh.pop %v1582
    %1585 = vrot.lane.b32.xlu0 %v1583, 64
    %v1586 = vpop.permute.xlu0 %1585
    %v1588 = vmul.f32 %v1569, %v1586
    %1590 = vrot.lane.b32.xlu0 %v1588, 32
    %v1591 = vpop.permute.xlu0 %1590
    %v1594 = vrot.slane %v1494, 1
    %1595 = vrot.lane.b32.xlu0 %v1594, 32
    %v1596 = vpop.permute.xlu0 %1595
    %v1598 = vsel %vm104, %v1591, %v1596
    %v1599 = vpack.c.bf16 %v1598, %v1598
    %v1608 = vunpack.c.l.b16 %v70
    %v1609 = vunpack.c.l.b16 %v71
    %v1610 = vunpack.c.l.b16 %v72
    %v1611 = vunpack.c.l.b16 %v73
    %v1612 = vunpack.c.l.b16 %v74
    %v1613 = vunpack.c.l.b16 %v75
    %v1614 = vunpack.c.l.b16 %v76
    %v1615 = vunpack.c.l.b16 %v77
    %v1616 = vpack.c.b16 %v1609, %v1608
    %v1617 = vpack.c.b16 %v1611, %v1610
    %v1618 = vpack.c.b16 %v1613, %v1612
    %v1619 = vpack.c.b16 %v1615, %v1614
    %v1625 = vsel %vm258, %v1599, 0
    %1627 = vmatprep.subr.bf16.mxu0 0
    %1628 = vmatpush1.bf16.msra.mxu0 0
    %1629 = vmatprep.subr.bf16.mxu0 0
    %1630 = vmatpush1.bf16.msra.mxu0 0
    %1631 = vmatprep.subr.bf16.mxu0 0
    %1632 = vmatpush1.bf16.msra.mxu0 0
    %1633 = vmatprep.subr.bf16.mxu0 0
    %1634 = vmatpush1.bf16.msra.mxu0 0
    %1635 = vmatprep.subr.bf16.mxu0 0
    %1636 = vmatpush1.bf16.msra.mxu0 %v1619
    %1637 = vmatprep.subr.bf16.mxu0 0
    %1638 = vmatpush1.bf16.msra.mxu0 %v1618
    %1639 = vmatprep.subr.bf16.mxu0 0
    %1640 = vmatpush1.bf16.msra.mxu0 %v1617
    %1641 = vmatprep.subr.bf16.mxu0 0
    %1642 = vmatpush1.bf16.msra.mxu0 %v1616
    %1643 = vmatprep.subr.bf16.mxu0 0
    %1644 = vmatpush2.bf16.msra.mxu0 0
    %1645 = vmatprep.subr.bf16.mxu0 0
    %1646 = vmatpush2.bf16.msra.mxu0 0
    %1647 = vmatprep.subr.bf16.mxu0 0
    %1648 = vmatpush2.bf16.msra.mxu0 0
    %1649 = vmatprep.subr.bf16.mxu0 0
    %1650 = vmatpush2.bf16.msra.mxu0 0
    %1651 = vmatprep.subr.bf16.mxu0 0
    %1652 = vmatpush2.bf16.msra.mxu0 0
    %1653 = vmatprep.subr.bf16.mxu0 0
    %1654 = vmatpush2.bf16.msra.mxu0 0
    %1655 = vmatprep.subr.bf16.mxu0 0
    %1656 = vmatpush2.bf16.msra.mxu0 0
    %1657 = vmatprep.subr.bf16.mxu0 0
    %1658 = vmatpush2.bf16.msra.mxu0 0
    %1659 = vmatprep.mubr.bf16.mxu0 0
    %1660 = vmatmul.mubr.bf16.gmra.mxu0 %v1625
    %v1661 = vpop.f32.mrf.mxu0
    %v1662 = vadd.f32 %v80, %v1661
    %v1663 = vpop.f32.mrf.mxu0
    %v1664 = vpop.f32.mrf.mxu0
    %v1665 = vpop.f32.mrf.mxu0
    %1666 = vdwg.mxu0
    %v1667 = vxor.u32 %v1662, 2147483648
    %v1668 = vmul.f32 %v1667, 1.442695
    %v1669 = vpow.pop %v1668
    %v1670 = vadd.f32 %v1669, 1.0
    %v1671 = vrcp.pop %v1670
    %v1672 = vmul.f32 1.0, %v1671
    %v1673 = vmul.f32 %v1672, %v1385
    %v1674 = vmul.f32 %v1672, 2.0
    %v1675 = vsub.f32 %v1674, 1.0
    %1677 = vrot.lane.b32.xlu0 %v1675, 64
    %v1678 = vpop.permute.xlu0 %1677
    %v1680 = vmul.f32 %v1672, %v1678
    %1682 = vrot.lane.b32.xlu0 %v1680, 32
    %v1683 = vpop.permute.xlu0 %1682
    %v1685 = vadd.f32 %v1673, %v1683
    %v1686 = vtanh.pop %v1685
    %1688 = vrot.lane.b32.xlu0 %v1686, 64
    %v1689 = vpop.permute.xlu0 %1688
    %v1691 = vmul.f32 %v1672, %v1689
    %1693 = vrot.lane.b32.xlu0 %v1691, 32
    %v1694 = vpop.permute.xlu0 %1693
    %vm1696 = vcmask 253952
    %1697 = vst.msk [vmem:[%s13] sm:$0x1] %vm1696, %v1694
    %1698 = vrot.lane.b32.xlu0 %v1691, 64
    %v1699 = vpop.permute.xlu0 %1698
    %v1701 = vsel %vm104, %v1591, %v1699
    %v1702 = vpack.c.bf16 %v1701, %v1701
    %v1704 = vsel %vm258, %v1702, 0
    %1706 = vmatprep.subr.bf16.mxu0 0
    %1707 = vmatpush1.bf16.msra.mxu0 0
    %1708 = vmatprep.subr.bf16.mxu0 0
    %1709 = vmatpush1.bf16.msra.mxu0 0
    %1710 = vmatprep.subr.bf16.mxu0 0
    %1711 = vmatpush1.bf16.msra.mxu0 0
    %1712 = vmatprep.subr.bf16.mxu0 0
    %1713 = vmatpush1.bf16.msra.mxu0 0
    %1714 = vmatprep.subr.bf16.mxu0 0
    %1715 = vmatpush1.bf16.msra.mxu0 %v1516
    %1716 = vmatprep.subr.bf16.mxu0 0
    %1717 = vmatpush1.bf16.msra.mxu0 %v1515
    %1718 = vmatprep.subr.bf16.mxu0 0
    %1719 = vmatpush1.bf16.msra.mxu0 %v1514
    %1720 = vmatprep.subr.bf16.mxu0 0
    %1721 = vmatpush1.bf16.msra.mxu0 %v1513
    %1722 = vmatprep.subr.bf16.mxu0 0
    %1723 = vmatpush2.bf16.msra.mxu0 0
    %1724 = vmatprep.subr.bf16.mxu0 0
    %1725 = vmatpush2.bf16.msra.mxu0 0
    %1726 = vmatprep.subr.bf16.mxu0 0
    %1727 = vmatpush2.bf16.msra.mxu0 0
    %1728 = vmatprep.subr.bf16.mxu0 0
    %1729 = vmatpush2.bf16.msra.mxu0 0
    %1730 = vmatprep.subr.bf16.mxu0 0
    %1731 = vmatpush2.bf16.msra.mxu0 0
    %1732 = vmatprep.subr.bf16.mxu0 0
    %1733 = vmatpush2.bf16.msra.mxu0 0
    %1734 = vmatprep.subr.bf16.mxu0 0
    %1735 = vmatpush2.bf16.msra.mxu0 0
    %1736 = vmatprep.subr.bf16.mxu0 0
    %1737 = vmatpush2.bf16.msra.mxu0 0
    %1738 = vmatprep.mubr.bf16.mxu0 0
    %1739 = vmatmul.mubr.bf16.gmra.mxu0 %v1704
    %v1740 = vpop.f32.mrf.mxu0
    %v1741 = vadd.f32 %v79, %v1740
    %v1742 = vpop.f32.mrf.mxu0
    %v1743 = vpop.f32.mrf.mxu0
    %v1744 = vpop.f32.mrf.mxu0
    %1745 = vdwg.mxu0
    %v1746 = vxor.u32 %v1741, 2147483648
    %v1747 = vmul.f32 %v1746, 1.442695
    %v1748 = vpow.pop %v1747
    %v1749 = vadd.f32 %v1748, 1.0
    %v1750 = vrcp.pop %v1749
    %v1751 = vmul.f32 1.0, %v1750
    %v1752 = vmul.f32 %v1751, %v1582
    %v1753 = vmul.f32 %v1751, 2.0
    %v1754 = vsub.f32 %v1753, 1.0
    %1756 = vrot.lane.b32.xlu0 %v1754, 64
    %v1757 = vpop.permute.xlu0 %1756
    %v1759 = vmul.f32 %v1751, %v1757
    %1761 = vrot.lane.b32.xlu0 %v1759, 32
    %v1762 = vpop.permute.xlu0 %1761
    %v1764 = vadd.f32 %v1752, %v1762
    %v1765 = vtanh.pop %v1764
    %1767 = vrot.lane.b32.xlu0 %v1765, 64
    %v1768 = vpop.permute.xlu0 %1767
    %v1770 = vmul.f32 %v1751, %v1768
    %1772 = vrot.lane.b32.xlu0 %v1770, 32
    %v1773 = vpop.permute.xlu0 %1772
    %v1775 = vsel %vm104, %v1773, %v1699
    %v1776 = vpack.c.bf16 %v1775, %v1775
    %v1778 = vsel %vm258, %v1776, 0
    %1780 = vmatprep.subr.bf16.mxu0 0
    %1781 = vmatpush1.bf16.msra.mxu0 0
    %1782 = vmatprep.subr.bf16.mxu0 0
    %1783 = vmatpush1.bf16.msra.mxu0 0
    %1784 = vmatprep.subr.bf16.mxu0 0
    %1785 = vmatpush1.bf16.msra.mxu0 0
    %1786 = vmatprep.subr.bf16.mxu0 0
    %1787 = vmatpush1.bf16.msra.mxu0 0
    %1788 = vmatprep.subr.bf16.mxu0 0
    %1789 = vmatpush1.bf16.msra.mxu0 %v1619
    %1790 = vmatprep.subr.bf16.mxu0 0
    %1791 = vmatpush1.bf16.msra.mxu0 %v1618
    %1792 = vmatprep.subr.bf16.mxu0 0
    %1793 = vmatpush1.bf16.msra.mxu0 %v1617
    %1794 = vmatprep.subr.bf16.mxu0 0
    %1795 = vmatpush1.bf16.msra.mxu0 %v1616
    %1796 = vmatprep.subr.bf16.mxu0 0
    %1797 = vmatpush2.bf16.msra.mxu0 0
    %1798 = vmatprep.subr.bf16.mxu0 0
    %1799 = vmatpush2.bf16.msra.mxu0 0
    %1800 = vmatprep.subr.bf16.mxu0 0
    %1801 = vmatpush2.bf16.msra.mxu0 0
    %1802 = vmatprep.subr.bf16.mxu0 0
    %1803 = vmatpush2.bf16.msra.mxu0 0
    %1804 = vmatprep.subr.bf16.mxu0 0
    %1805 = vmatpush2.bf16.msra.mxu0 0
    %1806 = vmatprep.subr.bf16.mxu0 0
    %1807 = vmatpush2.bf16.msra.mxu0 0
    %1808 = vmatprep.subr.bf16.mxu0 0
    %1809 = vmatpush2.bf16.msra.mxu0 0
    %1810 = vmatprep.subr.bf16.mxu0 0
    %1811 = vmatpush2.bf16.msra.mxu0 0
    %1812 = vmatprep.mubr.bf16.mxu0 0
    %1813 = vmatmul.mubr.bf16.gmra.mxu0 %v1778
    %v1814 = vpop.f32.mrf.mxu0
    %v1815 = vadd.f32 %v80, %v1814
    %v1816 = vpop.f32.mrf.mxu0
    %v1817 = vpop.f32.mrf.mxu0
    %v1818 = vpop.f32.mrf.mxu0
    %1819 = vdwg.mxu0
    %v1820 = vxor.u32 %v1815, 2147483648
    %v1821 = vmul.f32 %v1820, 1.442695
    %v1822 = vpow.pop %v1821
    %v1823 = vadd.f32 %v1822, 1.0
    %v1824 = vrcp.pop %v1823
    %v1825 = vmul.f32 1.0, %v1824
    %v1826 = vmul.f32 %v1825, %v1685
    %v1827 = vmul.f32 %v1825, 2.0
    %v1828 = vsub.f32 %v1827, 1.0
    %1830 = vrot.lane.b32.xlu0 %v1828, 64
    %v1831 = vpop.permute.xlu0 %1830
    %v1833 = vmul.f32 %v1825, %v1831
    %1835 = vrot.lane.b32.xlu0 %v1833, 32
    %v1836 = vpop.permute.xlu0 %1835
    %v1838 = vadd.f32 %v1826, %v1836
    %v1839 = vtanh.pop %v1838
    %1841 = vrot.lane.b32.xlu0 %v1839, 64
    %v1842 = vpop.permute.xlu0 %1841
    %v1844 = vmul.f32 %v1825, %v1842
    %1846 = vrot.lane.b32.xlu0 %v1844, 32
    %v1847 = vpop.permute.xlu0 %1846
    %1849 = vst.msk [vmem:[%s13 + $0x1] sm:$0x1] %vm1696, %v1847
    %1850 = vrot.lane.b32.xlu0 %v1844, 64
    %v1851 = vpop.permute.xlu0 %1850
    %v1853 = vsel %vm104, %v1773, %v1851
    %v1854 = vpack.c.bf16 %v1853, %v1853
    %v1856 = vsel %vm258, %v1854, 0
    %1858 = vmatprep.subr.bf16.mxu0 0
    %1859 = vmatpush1.bf16.msra.mxu0 0
    %1860 = vmatprep.subr.bf16.mxu0 0
    %1861 = vmatpush1.bf16.msra.mxu0 0
    %1862 = vmatprep.subr.bf16.mxu0 0
    %1863 = vmatpush1.bf16.msra.mxu0 0
    %1864 = vmatprep.subr.bf16.mxu0 0
    %1865 = vmatpush1.bf16.msra.mxu0 0
    %1866 = vmatprep.subr.bf16.mxu0 0
    %1867 = vmatpush1.bf16.msra.mxu0 %v1516
    %1868 = vmatprep.subr.bf16.mxu0 0
    %1869 = vmatpush1.bf16.msra.mxu0 %v1515
    %1870 = vmatprep.subr.bf16.mxu0 0
    %1871 = vmatpush1.bf16.msra.mxu0 %v1514
    %1872 = vmatprep.subr.bf16.mxu0 0
    %1873 = vmatpush1.bf16.msra.mxu0 %v1513
    %1874 = vmatprep.subr.bf16.mxu0 0
    %1875 = vmatpush2.bf16.msra.mxu0 0
    %1876 = vmatprep.subr.bf16.mxu0 0
    %1877 = vmatpush2.bf16.msra.mxu0 0
    %1878 = vmatprep.subr.bf16.mxu0 0
    %1879 = vmatpush2.bf16.msra.mxu0 0
    %1880 = vmatprep.subr.bf16.mxu0 0
    %1881 = vmatpush2.bf16.msra.mxu0 0
    %1882 = vmatprep.subr.bf16.mxu0 0
    %1883 = vmatpush2.bf16.msra.mxu0 0
    %1884 = vmatprep.subr.bf16.mxu0 0
    %1885 = vmatpush2.bf16.msra.mxu0 0
    %1886 = vmatprep.subr.bf16.mxu0 0
    %1887 = vmatpush2.bf16.msra.mxu0 0
    %1888 = vmatprep.subr.bf16.mxu0 0
    %1889 = vmatpush2.bf16.msra.mxu0 0
    %1890 = vmatprep.mubr.bf16.mxu0 0
    %1891 = vmatmul.mubr.bf16.gmra.mxu0 %v1856
    %v1892 = vpop.f32.mrf.mxu0
    %v1893 = vadd.f32 %v79, %v1892
    %v1894 = vpop.f32.mrf.mxu0
    %v1895 = vpop.f32.mrf.mxu0
    %v1896 = vpop.f32.mrf.mxu0
    %1897 = vdwg.mxu0
    %v1898 = vxor.u32 %v1893, 2147483648
    %v1899 = vmul.f32 %v1898, 1.442695
    %v1900 = vpow.pop %v1899
    %v1901 = vadd.f32 %v1900, 1.0
    %v1902 = vrcp.pop %v1901
    %v1903 = vmul.f32 1.0, %v1902
    %v1904 = vmul.f32 %v1903, %v1764
    %v1905 = vmul.f32 %v1903, 2.0
    %v1906 = vsub.f32 %v1905, 1.0
    %1908 = vrot.lane.b32.xlu0 %v1906, 64
    %v1909 = vpop.permute.xlu0 %1908
    %v1911 = vmul.f32 %v1903, %v1909
    %1913 = vrot.lane.b32.xlu0 %v1911, 32
    %v1914 = vpop.permute.xlu0 %1913
    %v1916 = vadd.f32 %v1904, %v1914
    %v1917 = vtanh.pop %v1916
    %1919 = vrot.lane.b32.xlu0 %v1917, 64
    %v1920 = vpop.permute.xlu0 %1919
    %v1922 = vmul.f32 %v1903, %v1920
    %1924 = vrot.lane.b32.xlu0 %v1922, 32
    %v1925 = vpop.permute.xlu0 %1924
    %v1927 = vsel %vm104, %v1925, %v1851
    %v1928 = vpack.c.bf16 %v1927, %v1927
    %v1930 = vsel %vm258, %v1928, 0
    %1932 = vmatprep.subr.bf16.mxu0 0
    %1933 = vmatpush1.bf16.msra.mxu0 0
    %1934 = vmatprep.subr.bf16.mxu0 0
    %1935 = vmatpush1.bf16.msra.mxu0 0
    %1936 = vmatprep.subr.bf16.mxu0 0
    %1937 = vmatpush1.bf16.msra.mxu0 0
    %1938 = vmatprep.subr.bf16.mxu0 0
    %1939 = vmatpush1.bf16.msra.mxu0 0
    %1940 = vmatprep.subr.bf16.mxu0 0
    %1941 = vmatpush1.bf16.msra.mxu0 %v1619
    %1942 = vmatprep.subr.bf16.mxu0 0
    %1943 = vmatpush1.bf16.msra.mxu0 %v1618
    %1944 = vmatprep.subr.bf16.mxu0 0
    %1945 = vmatpush1.bf16.msra.mxu0 %v1617
    %1946 = vmatprep.subr.bf16.mxu0 0
    %1947 = vmatpush1.bf16.msra.mxu0 %v1616
    %1948 = vmatprep.subr.bf16.mxu0 0
    %1949 = vmatpush2.bf16.msra.mxu0 0
    %1950 = vmatprep.subr.bf16.mxu0 0
    %1951 = vmatpush2.bf16.msra.mxu0 0
    %1952 = vmatprep.subr.bf16.mxu0 0
    %1953 = vmatpush2.bf16.msra.mxu0 0
    %1954 = vmatprep.subr.bf16.mxu0 0
    %1955 = vmatpush2.bf16.msra.mxu0 0
    %1956 = vmatprep.subr.bf16.mxu0 0
    %1957 = vmatpush2.bf16.msra.mxu0 0
    %1958 = vmatprep.subr.bf16.mxu0 0
    %1959 = vmatpush2.bf16.msra.mxu0 0
    %1960 = vmatprep.subr.bf16.mxu0 0
    %1961 = vmatpush2.bf16.msra.mxu0 0
    %1962 = vmatprep.subr.bf16.mxu0 0
    %1963 = vmatpush2.bf16.msra.mxu0 0
    %1964 = vmatprep.mubr.bf16.mxu0 0
    %1965 = vmatmul.mubr.bf16.gmra.mxu0 %v1930
    %v1966 = vpop.f32.mrf.mxu0
    %v1967 = vadd.f32 %v80, %v1966
    %v1968 = vpop.f32.mrf.mxu0
    %v1969 = vpop.f32.mrf.mxu0
    %v1970 = vpop.f32.mrf.mxu0
    %1971 = vdwg.mxu0
    %v1972 = vxor.u32 %v1967, 2147483648
    %v1973 = vmul.f32 %v1972, 1.442695
    %v1974 = vpow.pop %v1973
    %v1975 = vadd.f32 %v1974, 1.0
    %v1976 = vrcp.pop %v1975
    %v1977 = vmul.f32 1.0, %v1976
    %v1978 = vmul.f32 %v1977, %v1838
    %v1979 = vmul.f32 %v1977, 2.0
    %v1980 = vsub.f32 %v1979, 1.0
    %1982 = vrot.lane.b32.xlu0 %v1980, 64
    %v1983 = vpop.permute.xlu0 %1982
    %v1985 = vmul.f32 %v1977, %v1983
    %1987 = vrot.lane.b32.xlu0 %v1985, 32
    %v1988 = vpop.permute.xlu0 %1987
    %v1990 = vadd.f32 %v1978, %v1988
    %v1991 = vtanh.pop %v1990
    %1993 = vrot.lane.b32.xlu0 %v1991, 64
    %v1994 = vpop.permute.xlu0 %1993
    %v1996 = vmul.f32 %v1977, %v1994
    %1998 = vrot.lane.b32.xlu0 %v1996, 32
    %v1999 = vpop.permute.xlu0 %1998
    %2001 = vst.msk [vmem:[%s13 + $0x2] sm:$0x1] %vm1696, %v1999
    %2002 = vrot.lane.b32.xlu0 %v1996, 64
    %v2003 = vpop.permute.xlu0 %2002
    %v2005 = vsel %vm104, %v1925, %v2003
    %v2006 = vpack.c.bf16 %v2005, %v2005
    %v2008 = vsel %vm258, %v2006, 0
    %2010 = vmatprep.subr.bf16.mxu0 0
    %2011 = vmatpush1.bf16.msra.mxu0 0
    %2012 = vmatprep.subr.bf16.mxu0 0
    %2013 = vmatpush1.bf16.msra.mxu0 0
    %2014 = vmatprep.subr.bf16.mxu0 0
    %2015 = vmatpush1.bf16.msra.mxu0 0
    %2016 = vmatprep.subr.bf16.mxu0 0
    %2017 = vmatpush1.bf16.msra.mxu0 0
    %2018 = vmatprep.subr.bf16.mxu0 0
    %2019 = vmatpush1.bf16.msra.mxu0 %v1516
    %2020 = vmatprep.subr.bf16.mxu0 0
    %2021 = vmatpush1.bf16.msra.mxu0 %v1515
    %2022 = vmatprep.subr.bf16.mxu0 0
    %2023 = vmatpush1.bf16.msra.mxu0 %v1514
    %2024 = vmatprep.subr.bf16.mxu0 0
    %2025 = vmatpush1.bf16.msra.mxu0 %v1513
    %2026 = vmatprep.subr.bf16.mxu0 0
    %2027 = vmatpush2.bf16.msra.mxu0 0
    %2028 = vmatprep.subr.bf16.mxu0 0
    %2029 = vmatpush2.bf16.msra.mxu0 0
    %2030 = vmatprep.subr.bf16.mxu0 0
    %2031 = vmatpush2.bf16.msra.mxu0 0
    %2032 = vmatprep.subr.bf16.mxu0 0
    %2033 = vmatpush2.bf16.msra.mxu0 0
    %2034 = vmatprep.subr.bf16.mxu0 0
    %2035 = vmatpush2.bf16.msra.mxu0 0
    %2036 = vmatprep.subr.bf16.mxu0 0
    %2037 = vmatpush2.bf16.msra.mxu0 0
    %2038 = vmatprep.subr.bf16.mxu0 0
    %2039 = vmatpush2.bf16.msra.mxu0 0
    %2040 = vmatprep.subr.bf16.mxu0 0
    %2041 = vmatpush2.bf16.msra.mxu0 0
    %2042 = vmatprep.mubr.bf16.mxu0 0
    %2043 = vmatmul.mubr.bf16.gmra.mxu0 %v2008
    %v2044 = vpop.f32.mrf.mxu0
    %v2045 = vadd.f32 %v79, %v2044
    %v2046 = vpop.f32.mrf.mxu0
    %v2047 = vpop.f32.mrf.mxu0
    %v2048 = vpop.f32.mrf.mxu0
    %2049 = vdwg.mxu0
    %v2050 = vxor.u32 %v2045, 2147483648
    %v2051 = vmul.f32 %v2050, 1.442695
    %v2052 = vpow.pop %v2051
    %v2053 = vadd.f32 %v2052, 1.0
    %v2054 = vrcp.pop %v2053
    %v2055 = vmul.f32 1.0, %v2054
    %v2056 = vmul.f32 %v2055, %v1916
    %v2057 = vmul.f32 %v2055, 2.0
    %v2058 = vsub.f32 %v2057, 1.0
    %2060 = vrot.lane.b32.xlu0 %v2058, 64
    %v2061 = vpop.permute.xlu0 %2060
    %v2063 = vmul.f32 %v2055, %v2061
    %2065 = vrot.lane.b32.xlu0 %v2063, 32
    %v2066 = vpop.permute.xlu0 %2065
    %v2068 = vadd.f32 %v2056, %v2066
    %v2069 = vtanh.pop %v2068
    %2071 = vrot.lane.b32.xlu0 %v2069, 64
    %v2072 = vpop.permute.xlu0 %2071
    %v2074 = vmul.f32 %v2055, %v2072
    %2076 = vrot.lane.b32.xlu0 %v2074, 32
    %v2077 = vpop.permute.xlu0 %2076
    %v2079 = vsel %vm104, %v2077, %v2003
    %v2080 = vpack.c.bf16 %v2079, %v2079
    %v2082 = vsel %vm258, %v2080, 0
    %2084 = vmatprep.subr.bf16.mxu0 0
    %2085 = vmatpush1.bf16.msra.mxu0 0
    %2086 = vmatprep.subr.bf16.mxu0 0
    %2087 = vmatpush1.bf16.msra.mxu0 0
    %2088 = vmatprep.subr.bf16.mxu0 0
    %2089 = vmatpush1.bf16.msra.mxu0 0
    %2090 = vmatprep.subr.bf16.mxu0 0
    %2091 = vmatpush1.bf16.msra.mxu0 0
    %2092 = vmatprep.subr.bf16.mxu0 0
    %2093 = vmatpush1.bf16.msra.mxu0 %v1619
    %2094 = vmatprep.subr.bf16.mxu0 0
    %2095 = vmatpush1.bf16.msra.mxu0 %v1618
    %2096 = vmatprep.subr.bf16.mxu0 0
    %2097 = vmatpush1.bf16.msra.mxu0 %v1617
    %2098 = vmatprep.subr.bf16.mxu0 0
    %2099 = vmatpush1.bf16.msra.mxu0 %v1616
    %2100 = vmatprep.subr.bf16.mxu0 0
    %2101 = vmatpush2.bf16.msra.mxu0 0
    %2102 = vmatprep.subr.bf16.mxu0 0
    %2103 = vmatpush2.bf16.msra.mxu0 0
    %2104 = vmatprep.subr.bf16.mxu0 0
    %2105 = vmatpush2.bf16.msra.mxu0 0
    %2106 = vmatprep.subr.bf16.mxu0 0
    %2107 = vmatpush2.bf16.msra.mxu0 0
    %2108 = vmatprep.subr.bf16.mxu0 0
    %2109 = vmatpush2.bf16.msra.mxu0 0
    %2110 = vmatprep.subr.bf16.mxu0 0
    %2111 = vmatpush2.bf16.msra.mxu0 0
    %2112 = vmatprep.subr.bf16.mxu0 0
    %2113 = vmatpush2.bf16.msra.mxu0 0
    %2114 = vmatprep.subr.bf16.mxu0 0
    %2115 = vmatpush2.bf16.msra.mxu0 0
    %2116 = vmatprep.mubr.bf16.mxu0 0
    %2117 = vmatmul.mubr.bf16.gmra.mxu0 %v2082
    %v2118 = vpop.f32.mrf.mxu0
    %v2119 = vadd.f32 %v80, %v2118
    %v2120 = vpop.f32.mrf.mxu0
    %v2121 = vpop.f32.mrf.mxu0
    %v2122 = vpop.f32.mrf.mxu0
    %2123 = vdwg.mxu0
    %v2124 = vxor.u32 %v2119, 2147483648
    %v2125 = vmul.f32 %v2124, 1.442695
    %v2126 = vpow.pop %v2125
    %v2127 = vadd.f32 %v2126, 1.0
    %v2128 = vrcp.pop %v2127
    %v2129 = vmul.f32 1.0, %v2128
    %v2130 = vmul.f32 %v2129, %v1990
    %v2131 = vmul.f32 %v2129, 2.0
    %v2132 = vsub.f32 %v2131, 1.0
    %2134 = vrot.lane.b32.xlu0 %v2132, 64
    %v2135 = vpop.permute.xlu0 %2134
    %v2137 = vmul.f32 %v2129, %v2135
    %2139 = vrot.lane.b32.xlu0 %v2137, 32
    %v2140 = vpop.permute.xlu0 %2139
    %v2142 = vadd.f32 %v2130, %v2140
    %v2143 = vtanh.pop %v2142
    %2145 = vrot.lane.b32.xlu0 %v2143, 64
    %v2146 = vpop.permute.xlu0 %2145
    %v2148 = vmul.f32 %v2129, %v2146
    %2150 = vrot.lane.b32.xlu0 %v2148, 32
    %v2151 = vpop.permute.xlu0 %2150
    %2153 = vst.msk [vmem:[%s13 + $0x3] sm:$0x1] %vm1696, %v2151
    %2154 = vrot.lane.b32.xlu0 %v2148, 64
    %v2155 = vpop.permute.xlu0 %2154
    %v2157 = vsel %vm104, %v2077, %v2155
    %v2158 = vpack.c.bf16 %v2157, %v2157
    %v2160 = vsel %vm258, %v2158, 0
    %2162 = vmatprep.subr.bf16.mxu0 0
    %2163 = vmatpush1.bf16.msra.mxu0 0
    %2164 = vmatprep.subr.bf16.mxu0 0
    %2165 = vmatpush1.bf16.msra.mxu0 0
    %2166 = vmatprep.subr.bf16.mxu0 0
    %2167 = vmatpush1.bf16.msra.mxu0 0
    %2168 = vmatprep.subr.bf16.mxu0 0
    %2169 = vmatpush1.bf16.msra.mxu0 0
    %2170 = vmatprep.subr.bf16.mxu0 0
    %2171 = vmatpush1.bf16.msra.mxu0 %v1516
    %2172 = vmatprep.subr.bf16.mxu0 0
    %2173 = vmatpush1.bf16.msra.mxu0 %v1515
    %2174 = vmatprep.subr.bf16.mxu0 0
    %2175 = vmatpush1.bf16.msra.mxu0 %v1514
    %2176 = vmatprep.subr.bf16.mxu0 0
    %2177 = vmatpush1.bf16.msra.mxu0 %v1513
    %2178 = vmatprep.subr.bf16.mxu0 0
    %2179 = vmatpush2.bf16.msra.mxu0 0
    %2180 = vmatprep.subr.bf16.mxu0 0
    %2181 = vmatpush2.bf16.msra.mxu0 0
    %2182 = vmatprep.subr.bf16.mxu0 0
    %2183 = vmatpush2.bf16.msra.mxu0 0
    %2184 = vmatprep.subr.bf16.mxu0 0
    %2185 = vmatpush2.bf16.msra.mxu0 0
    %2186 = vmatprep.subr.bf16.mxu0 0
    %2187 = vmatpush2.bf16.msra.mxu0 0
    %2188 = vmatprep.subr.bf16.mxu0 0
    %2189 = vmatpush2.bf16.msra.mxu0 0
    %2190 = vmatprep.subr.bf16.mxu0 0
    %2191 = vmatpush2.bf16.msra.mxu0 0
    %2192 = vmatprep.subr.bf16.mxu0 0
    %2193 = vmatpush2.bf16.msra.mxu0 0
    %2194 = vmatprep.mubr.bf16.mxu0 0
    %2195 = vmatmul.mubr.bf16.gmra.mxu0 %v2160
    %v2196 = vpop.f32.mrf.mxu0
    %v2197 = vadd.f32 %v79, %v2196
    %v2198 = vpop.f32.mrf.mxu0
    %v2199 = vpop.f32.mrf.mxu0
    %v2200 = vpop.f32.mrf.mxu0
    %2201 = vdwg.mxu0
    %v2202 = vxor.u32 %v2197, 2147483648
    %v2203 = vmul.f32 %v2202, 1.442695
    %v2204 = vpow.pop %v2203
    %v2205 = vadd.f32 %v2204, 1.0
    %v2206 = vrcp.pop %v2205
    %v2207 = vmul.f32 1.0, %v2206
    %v2208 = vmul.f32 %v2207, %v2068
    %v2209 = vmul.f32 %v2207, 2.0
    %v2210 = vsub.f32 %v2209, 1.0
    %2212 = vrot.lane.b32.xlu0 %v2210, 64
    %v2213 = vpop.permute.xlu0 %2212
    %v2215 = vmul.f32 %v2207, %v2213
    %2217 = vrot.lane.b32.xlu0 %v2215, 32
    %v2218 = vpop.permute.xlu0 %2217
    %v2220 = vadd.f32 %v2208, %v2218
    %v2221 = vtanh.pop %v2220
    %2223 = vrot.lane.b32.xlu0 %v2221, 64
    %v2224 = vpop.permute.xlu0 %2223
    %v2226 = vmul.f32 %v2207, %v2224
    %2228 = vrot.lane.b32.xlu0 %v2226, 32
    %v2229 = vpop.permute.xlu0 %2228
    %v2231 = vsel %vm104, %v2229, %v2155
    %v2232 = vpack.c.bf16 %v2231, %v2231
    %v2234 = vsel %vm258, %v2232, 0
    %2236 = vmatprep.subr.bf16.mxu0 0
    %2237 = vmatpush1.bf16.msra.mxu0 0
    %2238 = vmatprep.subr.bf16.mxu0 0
    %2239 = vmatpush1.bf16.msra.mxu0 0
    %2240 = vmatprep.subr.bf16.mxu0 0
    %2241 = vmatpush1.bf16.msra.mxu0 0
    %2242 = vmatprep.subr.bf16.mxu0 0
    %2243 = vmatpush1.bf16.msra.mxu0 0
    %2244 = vmatprep.subr.bf16.mxu0 0
    %2245 = vmatpush1.bf16.msra.mxu0 %v1619
    %2246 = vmatprep.subr.bf16.mxu0 0
    %2247 = vmatpush1.bf16.msra.mxu0 %v1618
    %2248 = vmatprep.subr.bf16.mxu0 0
    %2249 = vmatpush1.bf16.msra.mxu0 %v1617
    %2250 = vmatprep.subr.bf16.mxu0 0
    %2251 = vmatpush1.bf16.msra.mxu0 %v1616
    %2252 = vmatprep.subr.bf16.mxu0 0
    %2253 = vmatpush2.bf16.msra.mxu0 0
    %2254 = vmatprep.subr.bf16.mxu0 0
    %2255 = vmatpush2.bf16.msra.mxu0 0
    %2256 = vmatprep.subr.bf16.mxu0 0
    %2257 = vmatpush2.bf16.msra.mxu0 0
    %2258 = vmatprep.subr.bf16.mxu0 0
    %2259 = vmatpush2.bf16.msra.mxu0 0
    %2260 = vmatprep.subr.bf16.mxu0 0
    %2261 = vmatpush2.bf16.msra.mxu0 0
    %2262 = vmatprep.subr.bf16.mxu0 0
    %2263 = vmatpush2.bf16.msra.mxu0 0
    %2264 = vmatprep.subr.bf16.mxu0 0
    %2265 = vmatpush2.bf16.msra.mxu0 0
    %2266 = vmatprep.subr.bf16.mxu0 0
    %2267 = vmatpush2.bf16.msra.mxu0 0
    %2268 = vmatprep.mubr.bf16.mxu0 0
    %2269 = vmatmul.mubr.bf16.gmra.mxu0 %v2234
    %v2270 = vpop.f32.mrf.mxu0
    %v2271 = vadd.f32 %v80, %v2270
    %v2272 = vpop.f32.mrf.mxu0
    %v2273 = vpop.f32.mrf.mxu0
    %v2274 = vpop.f32.mrf.mxu0
    %2275 = vdwg.mxu0
    %v2276 = vxor.u32 %v2271, 2147483648
    %v2277 = vmul.f32 %v2276, 1.442695
    %v2278 = vpow.pop %v2277
    %v2279 = vadd.f32 %v2278, 1.0
    %v2280 = vrcp.pop %v2279
    %v2281 = vmul.f32 1.0, %v2280
    %v2282 = vmul.f32 %v2281, %v2142
    %v2283 = vmul.f32 %v2281, 2.0
    %v2284 = vsub.f32 %v2283, 1.0
    %2286 = vrot.lane.b32.xlu0 %v2284, 64
    %v2287 = vpop.permute.xlu0 %2286
    %v2289 = vmul.f32 %v2281, %v2287
    %2291 = vrot.lane.b32.xlu0 %v2289, 32
    %v2292 = vpop.permute.xlu0 %2291
    %v2294 = vadd.f32 %v2282, %v2292
    %v2295 = vtanh.pop %v2294
    %2297 = vrot.lane.b32.xlu0 %v2295, 64
    %v2298 = vpop.permute.xlu0 %2297
    %v2300 = vmul.f32 %v2281, %v2298
    %2302 = vrot.lane.b32.xlu0 %v2300, 32
    %v2303 = vpop.permute.xlu0 %2302
    %2305 = vst.msk [vmem:[%s13 + $0x4] sm:$0x1] %vm1696, %v2303
    %2306 = vrot.lane.b32.xlu0 %v2300, 64
    %v2307 = vpop.permute.xlu0 %2306
    %v2309 = vsel %vm104, %v2229, %v2307
    %v2310 = vpack.c.bf16 %v2309, %v2309
    %v2312 = vsel %vm258, %v2310, 0
    %2314 = vmatprep.subr.bf16.mxu0 0
    %2315 = vmatpush1.bf16.msra.mxu0 0
    %2316 = vmatprep.subr.bf16.mxu0 0
    %2317 = vmatpush1.bf16.msra.mxu0 0
    %2318 = vmatprep.subr.bf16.mxu0 0
    %2319 = vmatpush1.bf16.msra.mxu0 0
    %2320 = vmatprep.subr.bf16.mxu0 0
    %2321 = vmatpush1.bf16.msra.mxu0 0
    %2322 = vmatprep.subr.bf16.mxu0 0
    %2323 = vmatpush1.bf16.msra.mxu0 %v1516
    %2324 = vmatprep.subr.bf16.mxu0 0
    %2325 = vmatpush1.bf16.msra.mxu0 %v1515
    %2326 = vmatprep.subr.bf16.mxu0 0
    %2327 = vmatpush1.bf16.msra.mxu0 %v1514
    %2328 = vmatprep.subr.bf16.mxu0 0
    %2329 = vmatpush1.bf16.msra.mxu0 %v1513
    %2330 = vmatprep.subr.bf16.mxu0 0
    %2331 = vmatpush2.bf16.msra.mxu0 0
    %2332 = vmatprep.subr.bf16.mxu0 0
    %2333 = vmatpush2.bf16.msra.mxu0 0
    %2334 = vmatprep.subr.bf16.mxu0 0
    %2335 = vmatpush2.bf16.msra.mxu0 0
    %2336 = vmatprep.subr.bf16.mxu0 0
    %2337 = vmatpush2.bf16.msra.mxu0 0
    %2338 = vmatprep.subr.bf16.mxu0 0
    %2339 = vmatpush2.bf16.msra.mxu0 0
    %2340 = vmatprep.subr.bf16.mxu0 0
    %2341 = vmatpush2.bf16.msra.mxu0 0
    %2342 = vmatprep.subr.bf16.mxu0 0
    %2343 = vmatpush2.bf16.msra.mxu0 0
    %2344 = vmatprep.subr.bf16.mxu0 0
    %2345 = vmatpush2.bf16.msra.mxu0 0
    %2346 = vmatprep.mubr.bf16.mxu0 0
    %2347 = vmatmul.mubr.bf16.gmra.mxu0 %v2312
    %v2348 = vpop.f32.mrf.mxu0
    %v2349 = vadd.f32 %v79, %v2348
    %v2350 = vpop.f32.mrf.mxu0
    %v2351 = vpop.f32.mrf.mxu0
    %v2352 = vpop.f32.mrf.mxu0
    %2353 = vdwg.mxu0
    %v2354 = vxor.u32 %v2349, 2147483648
    %v2355 = vmul.f32 %v2354, 1.442695
    %v2356 = vpow.pop %v2355
    %v2357 = vadd.f32 %v2356, 1.0
    %v2358 = vrcp.pop %v2357
    %v2359 = vmul.f32 1.0, %v2358
    %v2360 = vmul.f32 %v2359, %v2220
    %v2361 = vmul.f32 %v2359, 2.0
    %v2362 = vsub.f32 %v2361, 1.0
    %2364 = vrot.lane.b32.xlu0 %v2362, 64
    %v2365 = vpop.permute.xlu0 %2364
    %v2367 = vmul.f32 %v2359, %v2365
    %2369 = vrot.lane.b32.xlu0 %v2367, 32
    %v2370 = vpop.permute.xlu0 %2369
    %v2372 = vadd.f32 %v2360, %v2370
    %v2373 = vtanh.pop %v2372
    %2375 = vrot.lane.b32.xlu0 %v2373, 64
    %v2376 = vpop.permute.xlu0 %2375
    %v2378 = vmul.f32 %v2359, %v2376
    %2380 = vrot.lane.b32.xlu0 %v2378, 32
    %v2381 = vpop.permute.xlu0 %2380
    %v2383 = vsel %vm104, %v2381, %v2307
    %v2384 = vpack.c.bf16 %v2383, %v2383
    %v2386 = vsel %vm258, %v2384, 0
    %2388 = vmatprep.subr.bf16.mxu0 0
    %2389 = vmatpush1.bf16.msra.mxu0 0
    %2390 = vmatprep.subr.bf16.mxu0 0
    %2391 = vmatpush1.bf16.msra.mxu0 0
    %2392 = vmatprep.subr.bf16.mxu0 0
    %2393 = vmatpush1.bf16.msra.mxu0 0
    %2394 = vmatprep.subr.bf16.mxu0 0
    %2395 = vmatpush1.bf16.msra.mxu0 0
    %2396 = vmatprep.subr.bf16.mxu0 0
    %2397 = vmatpush1.bf16.msra.mxu0 %v1619
    %2398 = vmatprep.subr.bf16.mxu0 0
    %2399 = vmatpush1.bf16.msra.mxu0 %v1618
    %2400 = vmatprep.subr.bf16.mxu0 0
    %2401 = vmatpush1.bf16.msra.mxu0 %v1617
    %2402 = vmatprep.subr.bf16.mxu0 0
    %2403 = vmatpush1.bf16.msra.mxu0 %v1616
    %2404 = vmatprep.subr.bf16.mxu0 0
    %2405 = vmatpush2.bf16.msra.mxu0 0
    %2406 = vmatprep.subr.bf16.mxu0 0
    %2407 = vmatpush2.bf16.msra.mxu0 0
    %2408 = vmatprep.subr.bf16.mxu0 0
    %2409 = vmatpush2.bf16.msra.mxu0 0
    %2410 = vmatprep.subr.bf16.mxu0 0
    %2411 = vmatpush2.bf16.msra.mxu0 0
    %2412 = vmatprep.subr.bf16.mxu0 0
    %2413 = vmatpush2.bf16.msra.mxu0 0
    %2414 = vmatprep.subr.bf16.mxu0 0
    %2415 = vmatpush2.bf16.msra.mxu0 0
    %2416 = vmatprep.subr.bf16.mxu0 0
    %2417 = vmatpush2.bf16.msra.mxu0 0
    %2418 = vmatprep.subr.bf16.mxu0 0
    %2419 = vmatpush2.bf16.msra.mxu0 0
    %2420 = vmatprep.mubr.bf16.mxu0 0
    %2421 = vmatmul.mubr.bf16.gmra.mxu0 %v2386
    %v2422 = vpop.f32.mrf.mxu0
    %v2423 = vadd.f32 %v80, %v2422
    %v2424 = vpop.f32.mrf.mxu0
    %v2425 = vpop.f32.mrf.mxu0
    %v2426 = vpop.f32.mrf.mxu0
    %2427 = vdwg.mxu0
    %v2428 = vxor.u32 %v2423, 2147483648
    %v2429 = vmul.f32 %v2428, 1.442695
    %v2430 = vpow.pop %v2429
    %v2431 = vadd.f32 %v2430, 1.0
    %v2432 = vrcp.pop %v2431
    %v2433 = vmul.f32 1.0, %v2432
    %v2434 = vmul.f32 %v2433, %v2294
    %v2435 = vmul.f32 %v2433, 2.0
    %v2436 = vsub.f32 %v2435, 1.0
    %2438 = vrot.lane.b32.xlu0 %v2436, 64
    %v2439 = vpop.permute.xlu0 %2438
    %v2441 = vmul.f32 %v2433, %v2439
    %2443 = vrot.lane.b32.xlu0 %v2441, 32
    %v2444 = vpop.permute.xlu0 %2443
    %v2446 = vadd.f32 %v2434, %v2444
    %v2447 = vtanh.pop %v2446
    %2449 = vrot.lane.b32.xlu0 %v2447, 64
    %v2450 = vpop.permute.xlu0 %2449
    %v2452 = vmul.f32 %v2433, %v2450
    %2454 = vrot.lane.b32.xlu0 %v2452, 32
    %v2455 = vpop.permute.xlu0 %2454
    %2457 = vst.msk [vmem:[%s13 + $0x5] sm:$0x1] %vm1696, %v2455
    %2458 = vrot.lane.b32.xlu0 %v2452, 64
    %v2459 = vpop.permute.xlu0 %2458
    %v2461 = vsel %vm104, %v2381, %v2459
    %v2462 = vpack.c.bf16 %v2461, %v2461
    %v2464 = vsel %vm258, %v2462, 0
    %2466 = vmatprep.subr.bf16.mxu0 0
    %2467 = vmatpush1.bf16.msra.mxu0 0
    %2468 = vmatprep.subr.bf16.mxu0 0
    %2469 = vmatpush1.bf16.msra.mxu0 0
    %2470 = vmatprep.subr.bf16.mxu0 0
    %2471 = vmatpush1.bf16.msra.mxu0 0
    %2472 = vmatprep.subr.bf16.mxu0 0
    %2473 = vmatpush1.bf16.msra.mxu0 0
    %2474 = vmatprep.subr.bf16.mxu0 0
    %2475 = vmatpush1.bf16.msra.mxu0 %v1516
    %2476 = vmatprep.subr.bf16.mxu0 0
    %2477 = vmatpush1.bf16.msra.mxu0 %v1515
    %2478 = vmatprep.subr.bf16.mxu0 0
    %2479 = vmatpush1.bf16.msra.mxu0 %v1514
    %2480 = vmatprep.subr.bf16.mxu0 0
    %2481 = vmatpush1.bf16.msra.mxu0 %v1513
    %2482 = vmatprep.subr.bf16.mxu0 0
    %2483 = vmatpush2.bf16.msra.mxu0 0
    %2484 = vmatprep.subr.bf16.mxu0 0
    %2485 = vmatpush2.bf16.msra.mxu0 0
    %2486 = vmatprep.subr.bf16.mxu0 0
    %2487 = vmatpush2.bf16.msra.mxu0 0
    %2488 = vmatprep.subr.bf16.mxu0 0
    %2489 = vmatpush2.bf16.msra.mxu0 0
    %2490 = vmatprep.subr.bf16.mxu0 0
    %2491 = vmatpush2.bf16.msra.mxu0 0
    %2492 = vmatprep.subr.bf16.mxu0 0
    %2493 = vmatpush2.bf16.msra.mxu0 0
    %2494 = vmatprep.subr.bf16.mxu0 0
    %2495 = vmatpush2.bf16.msra.mxu0 0
    %2496 = vmatprep.subr.bf16.mxu0 0
    %2497 = vmatpush2.bf16.msra.mxu0 0
    %2498 = vmatprep.mubr.bf16.mxu0 0
    %2499 = vmatmul.mubr.bf16.gmra.mxu0 %v2464
    %v2500 = vpop.f32.mrf.mxu0
    %v2501 = vadd.f32 %v79, %v2500
    %v2502 = vpop.f32.mrf.mxu0
    %v2503 = vpop.f32.mrf.mxu0
    %v2504 = vpop.f32.mrf.mxu0
    %2505 = vdwg.mxu0
    %v2506 = vxor.u32 %v2501, 2147483648
    %v2507 = vmul.f32 %v2506, 1.442695
    %v2508 = vpow.pop %v2507
    %v2509 = vadd.f32 %v2508, 1.0
    %v2510 = vrcp.pop %v2509
    %v2511 = vmul.f32 1.0, %v2510
    %v2512 = vmul.f32 %v2511, %v2372
    %v2513 = vmul.f32 %v2511, 2.0
    %v2514 = vsub.f32 %v2513, 1.0
    %2516 = vrot.lane.b32.xlu0 %v2514, 64
    %v2517 = vpop.permute.xlu0 %2516
    %v2519 = vmul.f32 %v2511, %v2517
    %2521 = vrot.lane.b32.xlu0 %v2519, 32
    %v2522 = vpop.permute.xlu0 %2521
    %v2524 = vadd.f32 %v2512, %v2522
    %v2525 = vtanh.pop %v2524
    %2527 = vrot.lane.b32.xlu0 %v2525, 64
    %v2528 = vpop.permute.xlu0 %2527
    %v2530 = vmul.f32 %v2511, %v2528
    %2532 = vrot.lane.b32.xlu0 %v2530, 32
    %v2533 = vpop.permute.xlu0 %2532
    %v2535 = vsel %vm104, %v2533, %v2459
    %v2536 = vpack.c.bf16 %v2535, %v2535
    %v2538 = vsel %vm258, %v2536, 0
    %2540 = vmatprep.subr.bf16.mxu0 0
    %2541 = vmatpush1.bf16.msra.mxu0 0
    %2542 = vmatprep.subr.bf16.mxu0 0
    %2543 = vmatpush1.bf16.msra.mxu0 0
    %2544 = vmatprep.subr.bf16.mxu0 0
    %2545 = vmatpush1.bf16.msra.mxu0 0
    %2546 = vmatprep.subr.bf16.mxu0 0
    %2547 = vmatpush1.bf16.msra.mxu0 0
    %2548 = vmatprep.subr.bf16.mxu0 0
    %2549 = vmatpush1.bf16.msra.mxu0 %v1619
    %2550 = vmatprep.subr.bf16.mxu0 0
    %2551 = vmatpush1.bf16.msra.mxu0 %v1618
    %2552 = vmatprep.subr.bf16.mxu0 0
    %2553 = vmatpush1.bf16.msra.mxu0 %v1617
    %2554 = vmatprep.subr.bf16.mxu0 0
    %2555 = vmatpush1.bf16.msra.mxu0 %v1616
    %2556 = vmatprep.subr.bf16.mxu0 0
    %2557 = vmatpush2.bf16.msra.mxu0 0
    %2558 = vmatprep.subr.bf16.mxu0 0
    %2559 = vmatpush2.bf16.msra.mxu0 0
    %2560 = vmatprep.subr.bf16.mxu0 0
    %2561 = vmatpush2.bf16.msra.mxu0 0
    %2562 = vmatprep.subr.bf16.mxu0 0
    %2563 = vmatpush2.bf16.msra.mxu0 0
    %2564 = vmatprep.subr.bf16.mxu0 0
    %2565 = vmatpush2.bf16.msra.mxu0 0
    %2566 = vmatprep.subr.bf16.mxu0 0
    %2567 = vmatpush2.bf16.msra.mxu0 0
    %2568 = vmatprep.subr.bf16.mxu0 0
    %2569 = vmatpush2.bf16.msra.mxu0 0
    %2570 = vmatprep.subr.bf16.mxu0 0
    %2571 = vmatpush2.bf16.msra.mxu0 0
    %2572 = vmatprep.mubr.bf16.mxu0 0
    %2573 = vmatmul.mubr.bf16.gmra.mxu0 %v2538
    %v2574 = vpop.f32.mrf.mxu0
    %v2575 = vadd.f32 %v80, %v2574
    %v2576 = vpop.f32.mrf.mxu0
    %v2577 = vpop.f32.mrf.mxu0
    %v2578 = vpop.f32.mrf.mxu0
    %2579 = vdwg.mxu0
    %v2580 = vxor.u32 %v2575, 2147483648
    %v2581 = vmul.f32 %v2580, 1.442695
    %v2582 = vpow.pop %v2581
    %v2583 = vadd.f32 %v2582, 1.0
    %v2584 = vrcp.pop %v2583
    %v2585 = vmul.f32 1.0, %v2584
    %v2586 = vmul.f32 %v2585, %v2446
    %v2587 = vmul.f32 %v2585, 2.0
    %v2588 = vsub.f32 %v2587, 1.0
    %2590 = vrot.lane.b32.xlu0 %v2588, 64
    %v2591 = vpop.permute.xlu0 %2590
    %v2593 = vmul.f32 %v2585, %v2591
    %2595 = vrot.lane.b32.xlu0 %v2593, 32
    %v2596 = vpop.permute.xlu0 %2595
    %v2598 = vadd.f32 %v2586, %v2596
    %v2599 = vtanh.pop %v2598
    %2601 = vrot.lane.b32.xlu0 %v2599, 64
    %v2602 = vpop.permute.xlu0 %2601
    %v2604 = vmul.f32 %v2585, %v2602
    %2606 = vrot.lane.b32.xlu0 %v2604, 32
    %v2607 = vpop.permute.xlu0 %2606
    %2609 = vst.msk [vmem:[%s13 + $0x6] sm:$0x1] %vm1696, %v2607
    %2610 = vrot.lane.b32.xlu0 %v2604, 64
    %v2611 = vpop.permute.xlu0 %2610
    %v2613 = vsel %vm104, %v2533, %v2611
    %v2614 = vpack.c.bf16 %v2613, %v2613
    %v2616 = vsel %vm258, %v2614, 0
    %2618 = vmatprep.subr.bf16.mxu0 0
    %2619 = vmatpush1.bf16.msra.mxu0 0
    %2620 = vmatprep.subr.bf16.mxu0 0
    %2621 = vmatpush1.bf16.msra.mxu0 0
    %2622 = vmatprep.subr.bf16.mxu0 0
    %2623 = vmatpush1.bf16.msra.mxu0 0
    %2624 = vmatprep.subr.bf16.mxu0 0
    %2625 = vmatpush1.bf16.msra.mxu0 0
    %2626 = vmatprep.subr.bf16.mxu0 0
    %2627 = vmatpush1.bf16.msra.mxu0 %v1516
    %2628 = vmatprep.subr.bf16.mxu0 0
    %2629 = vmatpush1.bf16.msra.mxu0 %v1515
    %2630 = vmatprep.subr.bf16.mxu0 0
    %2631 = vmatpush1.bf16.msra.mxu0 %v1514
    %2632 = vmatprep.subr.bf16.mxu0 0
    %2633 = vmatpush1.bf16.msra.mxu0 %v1513
    %2634 = vmatprep.subr.bf16.mxu0 0
    %2635 = vmatpush2.bf16.msra.mxu0 0
    %2636 = vmatprep.subr.bf16.mxu0 0
    %2637 = vmatpush2.bf16.msra.mxu0 0
    %2638 = vmatprep.subr.bf16.mxu0 0
    %2639 = vmatpush2.bf16.msra.mxu0 0
    %2640 = vmatprep.subr.bf16.mxu0 0
    %2641 = vmatpush2.bf16.msra.mxu0 0
    %2642 = vmatprep.subr.bf16.mxu0 0
    %2643 = vmatpush2.bf16.msra.mxu0 0
    %2644 = vmatprep.subr.bf16.mxu0 0
    %2645 = vmatpush2.bf16.msra.mxu0 0
    %2646 = vmatprep.subr.bf16.mxu0 0
    %2647 = vmatpush2.bf16.msra.mxu0 0
    %2648 = vmatprep.subr.bf16.mxu0 0
    %2649 = vmatpush2.bf16.msra.mxu0 0
    %2650 = vmatprep.mubr.bf16.mxu0 0
    %2651 = vmatmul.mubr.bf16.gmra.mxu0 %v2616
    %v2652 = vpop.f32.mrf.mxu0
    %v2653 = vadd.f32 %v79, %v2652
    %v2654 = vpop.f32.mrf.mxu0
    %v2655 = vpop.f32.mrf.mxu0
    %v2656 = vpop.f32.mrf.mxu0
    %2657 = vdwg.mxu0
    %v2658 = vxor.u32 %v2653, 2147483648
    %v2659 = vmul.f32 %v2658, 1.442695
    %v2660 = vpow.pop %v2659
    %v2661 = vadd.f32 %v2660, 1.0
    %v2662 = vrcp.pop %v2661
    %v2663 = vmul.f32 1.0, %v2662
    %v2664 = vmul.f32 %v2663, %v2524
    %v2665 = vmul.f32 %v2663, 2.0
    %v2666 = vsub.f32 %v2665, 1.0
    %2668 = vrot.lane.b32.xlu0 %v2666, 64
    %v2669 = vpop.permute.xlu0 %2668
    %v2671 = vmul.f32 %v2663, %v2669
    %2673 = vrot.lane.b32.xlu0 %v2671, 32
    %v2674 = vpop.permute.xlu0 %2673
    %v2676 = vadd.f32 %v2664, %v2674
    %v2677 = vtanh.pop %v2676
    %2679 = vrot.lane.b32.xlu0 %v2677, 64
    %v2680 = vpop.permute.xlu0 %2679
    %v2682 = vmul.f32 %v2663, %v2680
    %2684 = vrot.lane.b32.xlu0 %v2682, 32
    %v2685 = vpop.permute.xlu0 %2684
    %v2687 = vsel %vm104, %v2685, %v2611
    %v2688 = vpack.c.bf16 %v2687, %v2687
    %v2690 = vsel %vm258, %v2688, 0
    %2692 = vmatprep.subr.bf16.mxu0 0
    %2693 = vmatpush1.bf16.msra.mxu0 0
    %2694 = vmatprep.subr.bf16.mxu0 0
    %2695 = vmatpush1.bf16.msra.mxu0 0
    %2696 = vmatprep.subr.bf16.mxu0 0
    %2697 = vmatpush1.bf16.msra.mxu0 0
    %2698 = vmatprep.subr.bf16.mxu0 0
    %2699 = vmatpush1.bf16.msra.mxu0 0
    %2700 = vmatprep.subr.bf16.mxu0 0
    %2701 = vmatpush1.bf16.msra.mxu0 %v1619
    %2702 = vmatprep.subr.bf16.mxu0 0
    %2703 = vmatpush1.bf16.msra.mxu0 %v1618
    %2704 = vmatprep.subr.bf16.mxu0 0
    %2705 = vmatpush1.bf16.msra.mxu0 %v1617
    %2706 = vmatprep.subr.bf16.mxu0 0
    %2707 = vmatpush1.bf16.msra.mxu0 %v1616
    %2708 = vmatprep.subr.bf16.mxu0 0
    %2709 = vmatpush2.bf16.msra.mxu0 0
    %2710 = vmatprep.subr.bf16.mxu0 0
    %2711 = vmatpush2.bf16.msra.mxu0 0
    %2712 = vmatprep.subr.bf16.mxu0 0
    %2713 = vmatpush2.bf16.msra.mxu0 0
    %2714 = vmatprep.subr.bf16.mxu0 0
    %2715 = vmatpush2.bf16.msra.mxu0 0
    %2716 = vmatprep.subr.bf16.mxu0 0
    %2717 = vmatpush2.bf16.msra.mxu0 0
    %2718 = vmatprep.subr.bf16.mxu0 0
    %2719 = vmatpush2.bf16.msra.mxu0 0
    %2720 = vmatprep.subr.bf16.mxu0 0
    %2721 = vmatpush2.bf16.msra.mxu0 0
    %2722 = vmatprep.subr.bf16.mxu0 0
    %2723 = vmatpush2.bf16.msra.mxu0 0
    %2724 = vmatprep.mubr.bf16.mxu0 0
    %2725 = vmatmul.mubr.bf16.gmra.mxu0 %v2690
    %v2726 = vpop.f32.mrf.mxu0
    %v2727 = vadd.f32 %v80, %v2726
    %v2728 = vpop.f32.mrf.mxu0
    %v2729 = vpop.f32.mrf.mxu0
    %v2730 = vpop.f32.mrf.mxu0
    %2731 = vdwg.mxu0
    %v2732 = vxor.u32 %v2727, 2147483648
    %v2733 = vmul.f32 %v2732, 1.442695
    %v2734 = vpow.pop %v2733
    %v2735 = vadd.f32 %v2734, 1.0
    %v2736 = vrcp.pop %v2735
    %v2737 = vmul.f32 1.0, %v2736
    %v2738 = vmul.f32 %v2737, %v2598
    %v2739 = vmul.f32 %v2737, 2.0
    %v2740 = vsub.f32 %v2739, 1.0
    %2742 = vrot.lane.b32.xlu0 %v2740, 64
    %v2743 = vpop.permute.xlu0 %2742
    %v2745 = vmul.f32 %v2737, %v2743
    %2747 = vrot.lane.b32.xlu0 %v2745, 32
    %v2748 = vpop.permute.xlu0 %2747
    %v2750 = vadd.f32 %v2738, %v2748
    %v2751 = vtanh.pop %v2750
    %2753 = vrot.lane.b32.xlu0 %v2751, 64
    %v2754 = vpop.permute.xlu0 %2753
    %v2756 = vmul.f32 %v2737, %v2754
    %2758 = vrot.lane.b32.xlu0 %v2756, 32
    %v2759 = vpop.permute.xlu0 %2758
    %2761 = vst.msk [vmem:[%s13 + $0x7] sm:$0x1] %vm1696, %v2759
    // Predicated region
    $region46: #{vae_forward.1} parent=1 // pred_check
      _
    $region47: #{vae_forward.1} parent=1 // pred_check_branch
      %2763 = sbr.rel (0) target = $region49
    $region48: #{vae_forward.1} parent=1 // pred_region
      %s2765 = ssub.s32 32, 32
      %2766 = vsyncadd [#allocation3], %s2765
      %s2768 = sshll.u32 [#allocation2], 4
      %s2769 = int_to_ptr.vmem [resolvable:$true] %s2768
      %2771 = dma.vmem_to_hbm [thread:$0]  %s2769, 32, %s11, [#allocation3]
    $region49: #{vae_forward.1} parent=1 // pred_fallthru
      _
    // Predicated region
    $region50: #{vae_forward.1} parent=1 // pred_check
      _
    $region51: #{vae_forward.1} parent=1 // pred_check_branch
      %2773 = sbr.rel (0) target = $region53
    $region52: #{vae_forward.1} parent=1 // pred_region
      %s2775 = ssub.s32 32, 32
      %2776 = vsyncadd [#allocation5], %s2775
      %s2778 = sshll.u32 [#allocation4], 4
      %s2779 = int_to_ptr.vmem [resolvable:$true] %s2778
      %2781 = dma.vmem_to_hbm [thread:$0]  %s2779, 32, %s12, [#allocation5]
    $region53: #{vae_forward.1} parent=1 // pred_fallthru
      _
    // Predicated region
    $region54: #{vae_forward.1} parent=1 // pred_check
      _
    $region55: #{vae_forward.1} parent=1 // pred_check_branch
      %2783 = sbr.rel (0) target = $region57
    $region56: #{vae_forward.1} parent=1 // pred_region
      _
    $region57: #{vae_forward.1} parent=1 // pred_fallthru
      _
    // Predicated region
    $region58: #{vae_forward.1} parent=1 // pred_check
      _
    $region59: #{vae_forward.1} parent=1 // pred_check_branch
      %2785 = sbr.rel (0) target = $region61
    $region60: #{vae_forward.1} parent=1 // pred_region
      %2786 = dma.done [#allocation3], 32
    $region61: #{vae_forward.1} parent=1 // pred_fallthru
      _
    // Predicated region
    $region62: #{vae_forward.1} parent=1 // pred_check
      _
    $region63: #{vae_forward.1} parent=1 // pred_check_branch
      %2788 = sbr.rel (0) target = $region65
    $region64: #{vae_forward.1} parent=1 // pred_region
      %2789 = dma.done [#allocation5], 32
    $region65: #{vae_forward.1} parent=1 // pred_fallthru
      _
    // Predicated region
    $region66: #{vae_forward.1} parent=1 // pred_check
      _
    $region67: #{vae_forward.1} parent=1 // pred_check_branch
      %2791 = sbr.rel (0) target = $region69
    $region68: #{vae_forward.1} parent=1 // pred_region
      _
    $region69: #{vae_forward.1} parent=1 // pred_fallthru
      _
    %2792 = vsyncpa [#allocation3], 1
    %2793 = vsyncpa [#allocation5], 1

</llo_original>
